<compile_context>
chip_gen: v7x
topology: tpu7x:2x2x1
jax: 0.10.0
libtpu: 0.0.40
codegen_flags: <defaults>
</compile_context>

<pallas_src>
import math

import jax
import jax.numpy as jnp
from jax.experimental import pallas as pl
from jax.experimental.pallas import tpu as pltpu


def _round_up(x, m):
    return -(-x // m) * m


def _layer_norm(h, gamma, beta, eps=1e-5):
    mean = jnp.mean(h, axis=-1, keepdims=True)
    var = jnp.mean((h - mean) ** 2, axis=-1, keepdims=True)
    return (h - mean) * jax.lax.rsqrt(var + eps) * gamma + beta


def _make_kernel(hidden_dim, seq_pad, n_keys, tb, fuse_kv):
    H, SP, NK, TB = hidden_dim, seq_pad, n_keys, tb
    inv_sqrt_h = 1.0 / math.sqrt(H)
    f32, bf16 = jnp.float32, jnp.bfloat16

    def kernel(x_ref, twpe_ref, wq_ref, wkv_ref, wo_ref, w1_ref, w2_ref,
               vec_ref, out_ref):
        # per-row temporal weight (col 0) and positional encoding (col 1);
        # padded sequence rows carry tw = pe = 0.
        twpe = twpe_ref[...]                                   # (SP, 2) f32
        tw = twpe[:, 0:1][None, :, :]                          # (1, SP, 1)
        pe = twpe[:, 1:2][None, :, :]

        # packed row vectors (biases / LN affine / CLS key & value)
        vec = vec_ref[...]                                     # (12, 2H) f32
        b_q = vec[0:1, :H]
        b_o = vec[3:4, :H]
        g1, be1 = vec[4:5, :H], vec[5:6, :H]
        bf1 = vec[6:7, :]                                      # (1, 2H)
        bf2 = vec[7:8, :H]
        g2, be2 = vec[8:9, :H], vec[9:10, :H]
        cls_k = vec[10:11, :H]                                 # CLS key row
        cls_v = vec[11:12, :H]                                 # CLS value row

        # streamed history block arrives as bf16 (half the HBM bytes);
        # temporal weighting + pos-enc in f32, then cast for the MXU.
        x = x_ref[...].astype(f32)                             # (TB, SP, H)
        xw = x * tw + pe
        x0 = xw[:, 0, :]                                       # (TB, H) f32 residual

        # ---- K / V projection over all rows: one tall bf16 MXU matmul ----
        xtall = xw.reshape(TB * SP, H).astype(bf16)
        if fuse_kv:
            b_kv = vec[1:2, :]                                 # [b_k | b_v]
            kv = jnp.dot(xtall, wkv_ref[...],
                         preferred_element_type=f32) + b_kv    # (TB*SP, 2H)
            k3 = kv[:, :H].reshape(TB, SP, H)                  # offset-0 slice
            v3 = kv[:, H:].reshape(TB, SP, H)                  # 128-aligned slice
        else:
            b_k, b_v = vec[1:2, :H], vec[2:3, :H]
            k3 = (jnp.dot(xtall, wkv_ref[0], preferred_element_type=f32)
                  + b_k).reshape(TB, SP, H)
            v3 = (jnp.dot(xtall, wkv_ref[1], preferred_element_type=f32)
                  + b_v).reshape(TB, SP, H)

        # ---- only token 0 feeds the output: 1-row Q path ----
        q = jnp.dot(x0.astype(bf16), wq_ref[...],
                    preferred_element_type=f32) + b_q          # (TB, H)

        # ---- scores on the VPU/XLU (M=1 per sequence: skip tiny MXU pushes);
        #      keepdims lane-reduce keeps the (TB, SP, 1) layout natural ----
        q3 = q[:, None, :]                                     # (TB, 1, H)
        s = jnp.sum(q3 * k3, axis=-1, keepdims=True) * inv_sqrt_h   # (TB, SP, 1)
        if SP > NK:                                            # mask padded keys
            key_ids = jax.lax.broadcasted_iota(jnp.int32, (1, SP, 1), 1)
            s = jnp.where(key_ids < NK, s, -1e30)
        s_cls = jnp.sum(q3 * cls_k[None, :, :], axis=-1,
                        keepdims=True) * inv_sqrt_h            # (TB, 1, 1)

        m = jnp.maximum(jnp.max(s, axis=1, keepdims=True), s_cls)
        p = jnp.exp(s - m)                                     # (TB, SP, 1)
        p_cls = jnp.exp(s_cls - m)                             # (TB, 1, 1)
        denom = jnp.sum(p, axis=1, keepdims=True) + p_cls
        inv_denom = pl.reciprocal(denom, approx=True)          # EUP slot

        ctx = jnp.sum(p * v3, axis=1) + p_cls[:, 0, :] * cls_v  # (TB, H)
        ctx = ctx * inv_denom[:, 0, :]
        attn = jnp.dot(ctx.astype(bf16), wo_ref[...],
                       preferred_element_type=f32) + b_o

        # ---- residual + LayerNorm 1 (post-norm), one row per sequence ----
        h = _layer_norm(x0 + attn, g1, be1)                    # (TB, H)

        # ---- feed-forward (ReLU), one row per sequence ----
        f = jnp.maximum(jnp.dot(h.astype(bf16), w1_ref[...],
                                preferred_element_type=f32) + bf1, 0.0)
        f = jnp.dot(f.astype(bf16), w2_ref[...],
                    preferred_element_type=f32) + bf2

        # ---- residual + LayerNorm 2 ----
        out_ref[...] = _layer_norm(h + f, g2, be2).astype(out_ref.dtype)

    return kernel


def _vmem_limit_bytes():
    """Generation-aware VMEM limit: ~85% of physical (≈54 MiB on v7x's 64 MiB
    TensorCores, ≈109 MiB on 128 MiB v5e/v6e parts); conservative fallback."""
    try:
        cap = int(pltpu.get_tpu_info().vmem_capacity_bytes)
        return max(32 << 20, min(int(cap * 0.85), 112 << 20))
    except Exception:
        return 64 << 20


def _pick_tb(batch, seq_pad, hidden, vmem_limit, weight_bytes):
    """Batch rows per grid step: a multiple of 8, sized so the streamed bf16 x
    block plus in-kernel f32 temporaries (~36 B per x element) fit the VMEM
    budget, and small enough to leave >= 2 grid steps (megacore / pipelining)."""
    budget = max(1 << 20, int(vmem_limit * 0.8) - weight_bytes)
    max_elems = budget // 36
    cap = max(8, (max_elems // max(1, seq_pad * hidden)) // 8 * 8)
    want = _round_up(max(1, -(-batch // 2)), 8)
    return max(8, min(cap, want))


def _temporal_weights(S, weight_type):
    if weight_type == 'exp':
        return 0.9 ** jnp.arange(S - 1, -1, -1, dtype=jnp.float32)
    if weight_type == 'lin':
        return jnp.linspace(1.0, 2.0, S, dtype=jnp.float32)
    return jnp.ones((S,), jnp.float32)


def init_params(key, hidden_dim):
    """Deterministic synthetic params (shapes match the PyTorch layer)."""
    H = hidden_dim
    ks = jax.random.split(key, 12)
    sc = 0.05
    n = lambda k, shape: jax.random.normal(k, shape, jnp.float32) * sc
    return dict(
        cls=jnp.ones((H,), jnp.float32),
        w_q=n(ks[0], (H, H)), b_q=n(ks[1], (H,)),
        w_k=n(ks[2], (H, H)), b_k=n(ks[3], (H,)),
        w_v=n(ks[4], (H, H)), b_v=n(ks[5], (H,)),
        w_o=n(ks[6], (H, H)), b_o=n(ks[7], (H,)),
        g1=jnp.ones((H,), jnp.float32), be1=jnp.zeros((H,), jnp.float32),
        w1=n(ks[8], (H, 2 * H)), bf1=n(ks[9], (2 * H,)),
        w2=n(ks[10], (2 * H, H)), bf2=n(ks[11], (H,)),
        g2=jnp.ones((H,), jnp.float32), be2=jnp.zeros((H,), jnp.float32),
    )


def behavior_encoder(history, params, weight_type='exp'):
    """history: (B, S, H) f32 -> (B, H) f32 (encoder output at token 0)."""
    B, S, H = history.shape
    assert S >= 1, "need at least one history row (softmax mask assumes NK >= 1)"
    S1 = S + 1
    SP = _round_up(S, 8)                    # sequence rows, sublane multiple

    vmem_limit = _vmem_limit_bytes()
    weight_bytes = 16 * H * H               # bf16 wq + wkv + wo + w1 + w2
    TB = _pick_tb(B, SP, H, vmem_limit, weight_bytes)
    G = max(2, -(-B // TB))                 # >= 2 grid steps (megacore, pipelining)
    B_pad = G * TB

    # ---- host glue: bf16 history only; no CLS concat, no padded f32 tensor ----
    x = history.astype(jnp.bfloat16)
    if B_pad != B or SP != S:
        x = jnp.pad(x, ((0, B_pad - B), (0, SP - S), (0, 0)))

    # per-row temporal weight & positional encoding (zero on padded rows)
    tw = jnp.concatenate([_temporal_weights(S, weight_type),
                          jnp.zeros((SP - S,), jnp.float32)])
    pos = jnp.arange(S1, dtype=jnp.float32) / (S1 ** 0.5)
    pe_all = pos * jnp.sin(pos)
    pe = jnp.concatenate([pe_all[:S], jnp.zeros((SP - S,), jnp.float32)])
    twpe = jnp.stack([tw, pe], axis=-1)                       # (SP, 2)

    # CLS token's key/value rows are batch-independent -> precompute once in f32
    cls_row = params["cls"].astype(jnp.float32) + pe_all[S]
    cls_k = cls_row @ params["w_k"] + params["b_k"]
    cls_v = cls_row @ params["w_v"] + params["b_v"]

    # pack all tiny row-vector params into one array (one DMA instead of 12)
    H2 = 2 * H

    def _row(v):
        v = jnp.asarray(v, jnp.float32).reshape(-1)
        return jnp.pad(v, (0, H2 - v.shape[0]))

    vecs = jnp.stack([
        _row(params["b_q"]),
        _row(jnp.concatenate([params["b_k"], params["b_v"]])),   # fused KV bias
        _row(params["b_v"]),
        _row(params["b_o"]),
        _row(params["g1"]), _row(params["be1"]),
        _row(params["bf1"]),
        _row(params["bf2"]),
        _row(params["g2"]), _row(params["be2"]),
        _row(cls_k), _row(cls_v),
    ], axis=0)                                                  # (12, 2H)

    # bf16 weights: halves HBM->VMEM traffic, feeds the MXU at full rate
    bf16 = jnp.bfloat16
    wq = params["w_q"].astype(bf16)
    wo = params["w_o"].astype(bf16)
    w1 = params["w1"].astype(bf16)
    w2 = params["w2"].astype(bf16)
    fuse_kv = (H % 128 == 0)                # V slice lane-aligned only then
    if fuse_kv:
        wkv = jnp.concatenate([params["w_k"], params["w_v"]], axis=1).astype(bf16)
        wkv_shape = (H, 2 * H)
    else:
        wkv = jnp.stack([params["w_k"], params["w_v"]], axis=0).astype(bf16)
        wkv_shape = (2, H, H)

    kernel = _make_kernel(H, SP, S, TB, fuse_kv)

    def run(single_buffer_consts):
        def cspec(shape):
            nd = len(shape)
            if single_buffer_consts:
                # grid-invariant operands: no point double-buffering them
                return pl.BlockSpec(shape, lambda b: (0,) * nd,
                                    pipeline_mode=pl.Buffered(1))
            return pl.BlockSpec(shape, lambda b: (0,) * nd)

        return pl.pallas_call(
            kernel,
            out_shape=jax.ShapeDtypeStruct((B_pad, H), jnp.float32),
            grid=(G,),
            in_specs=[
                pl.BlockSpec((TB, SP, H), lambda b: (b, 0, 0)),   # x (bf16)
                cspec((SP, 2)),                                   # tw / pe
                cspec((H, H)),                                    # w_q
                cspec(wkv_shape),                                 # fused w_k|w_v
                cspec((H, H)),                                    # w_o
                cspec((H, 2 * H)),                                # w1
                cspec((2 * H, H)),                                # w2
                cspec((12, 2 * H)),                               # packed vectors
            ],
            out_specs=pl.BlockSpec((TB, H), lambda b: (b, 0)),
            compiler_params=pltpu.CompilerParams(
                dimension_semantics=("parallel",),
                vmem_limit_bytes=vmem_limit),
        )(x, twpe, wq, wkv, wo, w1, w2, vecs)

    try:
        out = run(True)
    except Exception:
        # fallback for JAX versions without BlockSpec(pipeline_mode=...)
        out = run(False)
    return out[:B]


def behavior_encoder_ref(history, params, weight_type='exp'):
    """Pure-JAX f32 reference for correctness checking."""
    B, S, H = history.shape
    S1 = S + 1
    w_hist = _temporal_weights(S, weight_type)
    cls = jnp.broadcast_to(params["cls"], (B, 1, H)).astype(jnp.float32)
    x = jnp.concatenate([history * w_hist[None, :, None], cls], axis=1)
    pos = jnp.arange(S1, dtype=jnp.float32) / (S1 ** 0.5)
    x = x + (pos * jnp.sin(pos))[None, :, None]

    q = x @ params["w_q"] + params["b_q"]
    k = x @ params["w_k"] + params["b_k"]
    v = x @ params["w_v"] + params["b_v"]
    s = jnp.einsum('bqd,bkd->bqk', q, k) / math.sqrt(H)
    p = jax.nn.softmax(s, axis=-1)
    a = jnp.einsum('bqk,bkd->bqd', p, v) @ params["w_o"] + params["b_o"]

    def ln(h, g, b):
        mu = jnp.mean(h, axis=-1, keepdims=True)
        var = jnp.mean((h - mu) ** 2, axis=-1, keepdims=True)
        return (h - mu) / jnp.sqrt(var + 1e-5) * g + b

    h = ln(x + a, params["g1"], params["be1"])
    f = jax.nn.relu(h @ params["w1"] + params["bf1"]) @ params["w2"] + params["bf2"]
    return ln(h + f, params["g2"], params["be2"])[:, 0]


if __name__ == "__main__":
    B, S, H = 2, 8, 32          # small shapes: batch=2, seq=8, hidden=32
    key = jax.random.PRNGKey(0)
    k_x, k_p = jax.random.split(key)

    history = jax.random.normal(k_x, (B, S, H), jnp.float32)
    params = init_params(k_p, H)

    out = jax.block_until_ready(behavior_encoder(history, params, 'exp'))
    assert out.shape == (B, H)
    assert bool(jnp.all(jnp.isfinite(out)))

    # loose tolerance: kernel uses bf16 streamed x / MXU inputs + approx recip
    ref = behavior_encoder_ref(history, params, 'exp')
    err = float(jnp.max(jnp.abs(out - ref)))
    assert err < 5e-2, f"kernel vs reference max abs err = {err}"
    print("KERNEL_OK")
</pallas_src>

<mosaic_0001>
module attributes {stable_mosaic.version = 11 : i64} {
  func.func @kernel(%arg0: i32, %arg1: memref<8x8x32xbf16, #tpu.memory_space<vmem>>, %arg2: memref<8x2xf32, #tpu.memory_space<vmem>>, %arg3: memref<32x32xbf16, #tpu.memory_space<vmem>>, %arg4: memref<2x32x32xbf16, #tpu.memory_space<vmem>>, %arg5: memref<32x32xbf16, #tpu.memory_space<vmem>>, %arg6: memref<32x64xbf16, #tpu.memory_space<vmem>>, %arg7: memref<64x32xbf16, #tpu.memory_space<vmem>>, %arg8: memref<12x64xf32, #tpu.memory_space<vmem>>, %arg9: memref<8x32xf32, #tpu.memory_space<vmem>>) attributes {dimension_semantics = [#tpu.dimension_semantics<parallel>], iteration_bounds = array<i64: 2>, scalar_prefetch = 0 : i64, scratch_operands = 0 : i64, tpu.core_type = #tpu.core_type<tc>, window_params = [{transform_indices = @transform_0, window_bounds = array<i64: 8, 8, 32>}, {pipeline_mode = #tpu.pipeline_mode<synchronous>, transform_indices = @transform_1, window_bounds = array<i64: 8, 2>}, {pipeline_mode = #tpu.pipeline_mode<synchronous>, transform_indices = @transform_2, window_bounds = array<i64: 32, 32>}, {pipeline_mode = #tpu.pipeline_mode<synchronous>, transform_indices = @transform_3, window_bounds = array<i64: 2, 32, 32>}, {pipeline_mode = #tpu.pipeline_mode<synchronous>, transform_indices = @transform_4, window_bounds = array<i64: 32, 32>}, {pipeline_mode = #tpu.pipeline_mode<synchronous>, transform_indices = @transform_5, window_bounds = array<i64: 32, 64>}, {pipeline_mode = #tpu.pipeline_mode<synchronous>, transform_indices = @transform_6, window_bounds = array<i64: 64, 32>}, {pipeline_mode = #tpu.pipeline_mode<synchronous>, transform_indices = @transform_7, window_bounds = array<i64: 12, 64>}, {transform_indices = @transform_8, window_bounds = array<i64: 8, 32>}]} {
    %c0 = arith.constant 0 : index
    %c0_0 = arith.constant 0 : index
    %0 = vector.load %arg2[%c0, %c0_0] : memref<8x2xf32, #tpu.memory_space<vmem>>, vector<8x2xf32>
    %1 = vector.extract_strided_slice %0 {offsets = [0, 0], sizes = [8, 1], strides = [1, 1]} : vector<8x2xf32> to vector<8x1xf32>
    %2 = vector.shape_cast %1 : vector<8x1xf32> to vector<1x8x1xf32>
    %3 = vector.extract_strided_slice %0 {offsets = [0, 1], sizes = [8, 1], strides = [1, 1]} : vector<8x2xf32> to vector<8x1xf32>
    %4 = vector.shape_cast %3 : vector<8x1xf32> to vector<1x8x1xf32>
    %c0_1 = arith.constant 0 : index
    %c0_2 = arith.constant 0 : index
    %5 = vector.load %arg8[%c0_1, %c0_2] : memref<12x64xf32, #tpu.memory_space<vmem>>, vector<12x64xf32>
    %6 = vector.extract_strided_slice %5 {offsets = [0, 0], sizes = [1, 32], strides = [1, 1]} : vector<12x64xf32> to vector<1x32xf32>
    %7 = vector.extract_strided_slice %5 {offsets = [3, 0], sizes = [1, 32], strides = [1, 1]} : vector<12x64xf32> to vector<1x32xf32>
    %8 = vector.extract_strided_slice %5 {offsets = [4, 0], sizes = [1, 32], strides = [1, 1]} : vector<12x64xf32> to vector<1x32xf32>
    %9 = vector.extract_strided_slice %5 {offsets = [5, 0], sizes = [1, 32], strides = [1, 1]} : vector<12x64xf32> to vector<1x32xf32>
    %10 = vector.extract_strided_slice %5 {offsets = [6, 0], sizes = [1, 64], strides = [1, 1]} : vector<12x64xf32> to vector<1x64xf32>
    %11 = vector.extract_strided_slice %5 {offsets = [7, 0], sizes = [1, 32], strides = [1, 1]} : vector<12x64xf32> to vector<1x32xf32>
    %12 = vector.extract_strided_slice %5 {offsets = [8, 0], sizes = [1, 32], strides = [1, 1]} : vector<12x64xf32> to vector<1x32xf32>
    %13 = vector.extract_strided_slice %5 {offsets = [9, 0], sizes = [1, 32], strides = [1, 1]} : vector<12x64xf32> to vector<1x32xf32>
    %14 = vector.extract_strided_slice %5 {offsets = [10, 0], sizes = [1, 32], strides = [1, 1]} : vector<12x64xf32> to vector<1x32xf32>
    %15 = vector.extract_strided_slice %5 {offsets = [11, 0], sizes = [1, 32], strides = [1, 1]} : vector<12x64xf32> to vector<1x32xf32>
    %c0_3 = arith.constant 0 : index
    %c0_4 = arith.constant 0 : index
    %c0_5 = arith.constant 0 : index
    %16 = vector.load %arg1[%c0_3, %c0_4, %c0_5] : memref<8x8x32xbf16, #tpu.memory_space<vmem>>, vector<8x8x32xbf16>
    %17 = arith.extf %16 : vector<8x8x32xbf16> to vector<8x8x32xf32>
    %18 = vector.broadcast %2 : vector<1x8x1xf32> to vector<8x8x32xf32>
    %19 = arith.mulf %17, %18 : vector<8x8x32xf32>
    %20 = vector.broadcast %4 : vector<1x8x1xf32> to vector<8x8x32xf32>
    %21 = arith.addf %19, %20 : vector<8x8x32xf32>
    %22 = vector.extract_strided_slice %21 {offsets = [0, 0, 0], sizes = [8, 1, 32], strides = [1, 1, 1]} : vector<8x8x32xf32> to vector<8x1x32xf32>
    %23 = vector.shape_cast %22 : vector<8x1x32xf32> to vector<8x32xf32>
    %24 = vector.shape_cast %21 : vector<8x8x32xf32> to vector<64x32xf32>
    %25 = arith.truncf %24 : vector<64x32xf32> to vector<64x32xbf16>
    %26 = vector.extract_strided_slice %5 {offsets = [1, 0], sizes = [1, 32], strides = [1, 1]} : vector<12x64xf32> to vector<1x32xf32>
    %27 = vector.extract_strided_slice %5 {offsets = [2, 0], sizes = [1, 32], strides = [1, 1]} : vector<12x64xf32> to vector<1x32xf32>
    %c0_6 = arith.constant 0 : index
    %c0_7 = arith.constant 0 : index
    %c0_8 = arith.constant 0 : index
    %28 = vector.load %arg4[%c0_6, %c0_7, %c0_8] : memref<2x32x32xbf16, #tpu.memory_space<vmem>>, vector<1x32x32xbf16>
    %29 = vector.shape_cast %28 : vector<1x32x32xbf16> to vector<32x32xbf16>
    %cst = arith.constant dense<0.000000e+00> : vector<64x32xf32>
    %30 = tpu.matmul %25, %29, %cst {dimension_numbers = #tpu.dot_dimension_numbers<[1], [0], [0], [1], [0, 0, 1, 1], [], []>} : vector<64x32xbf16>, vector<32x32xbf16>, vector<64x32xf32> -> vector<64x32xf32>
    %31 = vector.broadcast %26 : vector<1x32xf32> to vector<64x32xf32>
    %32 = arith.addf %30, %31 : vector<64x32xf32>
    %33 = vector.shape_cast %32 : vector<64x32xf32> to vector<8x8x32xf32>
    %c1 = arith.constant 1 : index
    %c0_9 = arith.constant 0 : index
    %c0_10 = arith.constant 0 : index
    %34 = vector.load %arg4[%c1, %c0_9, %c0_10] : memref<2x32x32xbf16, #tpu.memory_space<vmem>>, vector<1x32x32xbf16>
    %35 = vector.shape_cast %34 : vector<1x32x32xbf16> to vector<32x32xbf16>
    %cst_11 = arith.constant dense<0.000000e+00> : vector<64x32xf32>
    %36 = tpu.matmul %25, %35, %cst_11 {dimension_numbers = #tpu.dot_dimension_numbers<[1], [0], [0], [1], [0, 0, 1, 1], [], []>} : vector<64x32xbf16>, vector<32x32xbf16>, vector<64x32xf32> -> vector<64x32xf32>
    %37 = vector.broadcast %27 : vector<1x32xf32> to vector<64x32xf32>
    %38 = arith.addf %36, %37 : vector<64x32xf32>
    %39 = vector.shape_cast %38 : vector<64x32xf32> to vector<8x8x32xf32>
    %40 = arith.truncf %23 : vector<8x32xf32> to vector<8x32xbf16>
    %c0_12 = arith.constant 0 : index
    %c0_13 = arith.constant 0 : index
    %41 = vector.load %arg3[%c0_12, %c0_13] : memref<32x32xbf16, #tpu.memory_space<vmem>>, vector<32x32xbf16>
    %cst_14 = arith.constant dense<0.000000e+00> : vector<8x32xf32>
    %42 = tpu.matmul %40, %41, %cst_14 {dimension_numbers = #tpu.dot_dimension_numbers<[1], [0], [0], [1], [0, 0, 1, 1], [], []>} : vector<8x32xbf16>, vector<32x32xbf16>, vector<8x32xf32> -> vector<8x32xf32>
    %43 = vector.broadcast %6 : vector<1x32xf32> to vector<8x32xf32>
    %44 = arith.addf %42, %43 : vector<8x32xf32>
    %45 = vector.shape_cast %44 : vector<8x32xf32> to vector<8x1x32xf32>
    %46 = vector.broadcast %45 : vector<8x1x32xf32> to vector<8x8x32xf32>
    %47 = arith.mulf %46, %33 : vector<8x8x32xf32>
    %cst_15 = arith.constant dense<0.000000e+00> : vector<8x8xf32>
    %48 = vector.multi_reduction <add>, %47, %cst_15 [2] : vector<8x8x32xf32> to vector<8x8xf32>
    %49 = vector.shape_cast %48 : vector<8x8xf32> to vector<8x8x1xf32>
    %cst_16 = arith.constant 0.176776692 : f32
    %50 = vector.broadcast %cst_16 : f32 to vector<8x8x1xf32>
    %51 = arith.mulf %49, %50 : vector<8x8x1xf32>
    %52 = vector.shape_cast %14 : vector<1x32xf32> to vector<1x1x32xf32>
    %53 = vector.broadcast %52 : vector<1x1x32xf32> to vector<8x1x32xf32>
    %54 = arith.mulf %45, %53 : vector<8x1x32xf32>
    %cst_17 = arith.constant dense<0.000000e+00> : vector<8x1xf32>
    %55 = vector.multi_reduction <add>, %54, %cst_17 [2] : vector<8x1x32xf32> to vector<8x1xf32>
    %56 = vector.shape_cast %55 : vector<8x1xf32> to vector<8x1x1xf32>
    %cst_18 = arith.constant 0.176776692 : f32
    %57 = vector.broadcast %cst_18 : f32 to vector<8x1x1xf32>
    %58 = arith.mulf %56, %57 : vector<8x1x1xf32>
    %cst_19 = arith.constant dense<0xFF800000> : vector<8x1xf32>
    %59 = vector.multi_reduction <maximumf>, %51, %cst_19 [1] : vector<8x8x1xf32> to vector<8x1xf32>
    %60 = vector.shape_cast %59 : vector<8x1xf32> to vector<8x1x1xf32>
    %61 = arith.maximumf %60, %58 : vector<8x1x1xf32>
    %62 = vector.broadcast %61 : vector<8x1x1xf32> to vector<8x8x1xf32>
    %63 = arith.subf %51, %62 : vector<8x8x1xf32>
    %64 = math.exp %63 : vector<8x8x1xf32>
    %65 = arith.subf %58, %61 : vector<8x1x1xf32>
    %66 = math.exp %65 : vector<8x1x1xf32>
    %cst_20 = arith.constant dense<0.000000e+00> : vector<8x1xf32>
    %67 = vector.multi_reduction <add>, %64, %cst_20 [1] : vector<8x8x1xf32> to vector<8x1xf32>
    %68 = vector.shape_cast %67 : vector<8x1xf32> to vector<8x1x1xf32>
    %69 = arith.addf %68, %66 : vector<8x1x1xf32>
    %70 = tpu.reciprocal %69 {approx = true} : vector<8x1x1xf32> -> vector<8x1x1xf32>
    %71 = vector.broadcast %64 : vector<8x8x1xf32> to vector<8x8x32xf32>
    %72 = arith.mulf %71, %39 : vector<8x8x32xf32>
    %cst_21 = arith.constant dense<0.000000e+00> : vector<8x32xf32>
    %73 = vector.multi_reduction <add>, %72, %cst_21 [1] : vector<8x8x32xf32> to vector<8x32xf32>
    %74 = vector.shape_cast %66 : vector<8x1x1xf32> to vector<8x1xf32>
    %75 = vector.broadcast %74 : vector<8x1xf32> to vector<8x32xf32>
    %76 = vector.broadcast %15 : vector<1x32xf32> to vector<8x32xf32>
    %77 = arith.mulf %75, %76 : vector<8x32xf32>
    %78 = arith.addf %73, %77 : vector<8x32xf32>
    %79 = vector.shape_cast %70 : vector<8x1x1xf32> to vector<8x1xf32>
    %80 = vector.broadcast %79 : vector<8x1xf32> to vector<8x32xf32>
    %81 = arith.mulf %78, %80 : vector<8x32xf32>
    %82 = arith.truncf %81 : vector<8x32xf32> to vector<8x32xbf16>
    %c0_22 = arith.constant 0 : index
    %c0_23 = arith.constant 0 : index
    %83 = vector.load %arg5[%c0_22, %c0_23] : memref<32x32xbf16, #tpu.memory_space<vmem>>, vector<32x32xbf16>
    %cst_24 = arith.constant dense<0.000000e+00> : vector<8x32xf32>
    %84 = tpu.matmul %82, %83, %cst_24 {dimension_numbers = #tpu.dot_dimension_numbers<[1], [0], [0], [1], [0, 0, 1, 1], [], []>} : vector<8x32xbf16>, vector<32x32xbf16>, vector<8x32xf32> -> vector<8x32xf32>
    %85 = vector.broadcast %7 : vector<1x32xf32> to vector<8x32xf32>
    %86 = arith.addf %84, %85 : vector<8x32xf32>
    %87 = arith.addf %23, %86 : vector<8x32xf32>
    %cst_25 = arith.constant dense<0.000000e+00> : vector<8xf32>
    %88 = vector.multi_reduction <add>, %87, %cst_25 [1] : vector<8x32xf32> to vector<8xf32>
    %89 = vector.shape_cast %88 : vector<8xf32> to vector<8x1xf32>
    %cst_26 = arith.constant 3.200000e+01 : f32
    %90 = vector.broadcast %cst_26 : f32 to vector<8x1xf32>
    %91 = arith.divf %89, %90 : vector<8x1xf32>
    %92 = vector.broadcast %91 : vector<8x1xf32> to vector<8x32xf32>
    %93 = arith.subf %87, %92 : vector<8x32xf32>
    %94 = arith.mulf %93, %93 : vector<8x32xf32>
    %cst_27 = arith.constant dense<0.000000e+00> : vector<8xf32>
    %95 = vector.multi_reduction <add>, %94, %cst_27 [1] : vector<8x32xf32> to vector<8xf32>
    %96 = vector.shape_cast %95 : vector<8xf32> to vector<8x1xf32>
    %cst_28 = arith.constant 3.200000e+01 : f32
    %97 = vector.broadcast %cst_28 : f32 to vector<8x1xf32>
    %98 = arith.divf %96, %97 : vector<8x1xf32>
    %99 = vector.broadcast %91 : vector<8x1xf32> to vector<8x32xf32>
    %100 = arith.subf %87, %99 : vector<8x32xf32>
    %cst_29 = arith.constant 9.99999974E-6 : f32
    %101 = vector.broadcast %cst_29 : f32 to vector<8x1xf32>
    %102 = arith.addf %98, %101 : vector<8x1xf32>
    %103 = math.rsqrt %102 : vector<8x1xf32>
    %104 = vector.broadcast %103 : vector<8x1xf32> to vector<8x32xf32>
    %105 = arith.mulf %100, %104 : vector<8x32xf32>
    %106 = vector.broadcast %8 : vector<1x32xf32> to vector<8x32xf32>
    %107 = arith.mulf %105, %106 : vector<8x32xf32>
    %108 = vector.broadcast %9 : vector<1x32xf32> to vector<8x32xf32>
    %109 = arith.addf %107, %108 : vector<8x32xf32>
    %110 = arith.truncf %109 : vector<8x32xf32> to vector<8x32xbf16>
    %c0_30 = arith.constant 0 : index
    %c0_31 = arith.constant 0 : index
    %111 = vector.load %arg6[%c0_30, %c0_31] : memref<32x64xbf16, #tpu.memory_space<vmem>>, vector<32x64xbf16>
    %cst_32 = arith.constant dense<0.000000e+00> : vector<8x64xf32>
    %112 = tpu.matmul %110, %111, %cst_32 {dimension_numbers = #tpu.dot_dimension_numbers<[1], [0], [0], [1], [0, 0, 1, 1], [], []>} : vector<8x32xbf16>, vector<32x64xbf16>, vector<8x64xf32> -> vector<8x64xf32>
    %113 = vector.broadcast %10 : vector<1x64xf32> to vector<8x64xf32>
    %114 = arith.addf %112, %113 : vector<8x64xf32>
    %cst_33 = arith.constant 0.000000e+00 : f32
    %115 = vector.broadcast %cst_33 : f32 to vector<8x64xf32>
    %116 = arith.maximumf %114, %115 : vector<8x64xf32>
    %117 = arith.truncf %116 : vector<8x64xf32> to vector<8x64xbf16>
    %c0_34 = arith.constant 0 : index
    %c0_35 = arith.constant 0 : index
    %118 = vector.load %arg7[%c0_34, %c0_35] : memref<64x32xbf16, #tpu.memory_space<vmem>>, vector<64x32xbf16>
    %cst_36 = arith.constant dense<0.000000e+00> : vector<8x32xf32>
    %119 = tpu.matmul %117, %118, %cst_36 {dimension_numbers = #tpu.dot_dimension_numbers<[1], [0], [0], [1], [0, 0, 1, 1], [], []>} : vector<8x64xbf16>, vector<64x32xbf16>, vector<8x32xf32> -> vector<8x32xf32>
    %120 = vector.broadcast %11 : vector<1x32xf32> to vector<8x32xf32>
    %121 = arith.addf %119, %120 : vector<8x32xf32>
    %122 = arith.addf %109, %121 : vector<8x32xf32>
    %cst_37 = arith.constant dense<0.000000e+00> : vector<8xf32>
    %123 = vector.multi_reduction <add>, %122, %cst_37 [1] : vector<8x32xf32> to vector<8xf32>
    %124 = vector.shape_cast %123 : vector<8xf32> to vector<8x1xf32>
    %cst_38 = arith.constant 3.200000e+01 : f32
    %125 = vector.broadcast %cst_38 : f32 to vector<8x1xf32>
    %126 = arith.divf %124, %125 : vector<8x1xf32>
    %127 = vector.broadcast %126 : vector<8x1xf32> to vector<8x32xf32>
    %128 = arith.subf %122, %127 : vector<8x32xf32>
    %129 = arith.mulf %128, %128 : vector<8x32xf32>
    %cst_39 = arith.constant dense<0.000000e+00> : vector<8xf32>
    %130 = vector.multi_reduction <add>, %129, %cst_39 [1] : vector<8x32xf32> to vector<8xf32>
    %131 = vector.shape_cast %130 : vector<8xf32> to vector<8x1xf32>
    %cst_40 = arith.constant 3.200000e+01 : f32
    %132 = vector.broadcast %cst_40 : f32 to vector<8x1xf32>
    %133 = arith.divf %131, %132 : vector<8x1xf32>
    %134 = vector.broadcast %126 : vector<8x1xf32> to vector<8x32xf32>
    %135 = arith.subf %122, %134 : vector<8x32xf32>
    %cst_41 = arith.constant 9.99999974E-6 : f32
    %136 = vector.broadcast %cst_41 : f32 to vector<8x1xf32>
    %137 = arith.addf %133, %136 : vector<8x1xf32>
    %138 = math.rsqrt %137 : vector<8x1xf32>
    %139 = vector.broadcast %138 : vector<8x1xf32> to vector<8x32xf32>
    %140 = arith.mulf %135, %139 : vector<8x32xf32>
    %141 = vector.broadcast %12 : vector<1x32xf32> to vector<8x32xf32>
    %142 = arith.mulf %140, %141 : vector<8x32xf32>
    %143 = vector.broadcast %13 : vector<1x32xf32> to vector<8x32xf32>
    %144 = arith.addf %142, %143 : vector<8x32xf32>
    %c0_42 = arith.constant 0 : index
    %c0_43 = arith.constant 0 : index
    %145 = vector.load %arg9[%c0_42, %c0_43] : memref<8x32xf32, #tpu.memory_space<vmem>>, vector<8x32xf32>
    tpu.vector_store %arg9[%c0_42, %c0_43], %144 {strides = array<i32>} : memref<8x32xf32, #tpu.memory_space<vmem>>, vector<8x32xf32>,
    return
  }
  func.func @transform_0(%arg0: i32) -> (i32, i32, i32) {
    %c0_i32 = arith.constant 0 : i32
    %c0_i32_0 = arith.constant 0 : i32
    %c0_i32_1 = arith.constant 0 : i32
    return %arg0, %c0_i32, %c0_i32_0 : i32, i32, i32
  }
  func.func @transform_1(%arg0: i32) -> (i32, i32) {
    %c0_i32 = arith.constant 0 : i32
    %c0_i32_0 = arith.constant 0 : i32
    %c0_i32_1 = arith.constant 0 : i32
    return %c0_i32, %c0_i32_0 : i32, i32
  }
  func.func @transform_2(%arg0: i32) -> (i32, i32) {
    %c0_i32 = arith.constant 0 : i32
    %c0_i32_0 = arith.constant 0 : i32
    %c0_i32_1 = arith.constant 0 : i32
    return %c0_i32, %c0_i32_0 : i32, i32
  }
  func.func @transform_3(%arg0: i32) -> (i32, i32, i32) {
    %c0_i32 = arith.constant 0 : i32
    %c0_i32_0 = arith.constant 0 : i32
    %c0_i32_1 = arith.constant 0 : i32
    %c0_i32_2 = arith.constant 0 : i32
    return %c0_i32, %c0_i32_0, %c0_i32_1 : i32, i32, i32
  }
  func.func @transform_4(%arg0: i32) -> (i32, i32) {
    %c0_i32 = arith.constant 0 : i32
    %c0_i32_0 = arith.constant 0 : i32
    %c0_i32_1 = arith.constant 0 : i32
    return %c0_i32, %c0_i32_0 : i32, i32
  }
  func.func @transform_5(%arg0: i32) -> (i32, i32) {
    %c0_i32 = arith.constant 0 : i32
    %c0_i32_0 = arith.constant 0 : i32
    %c0_i32_1 = arith.constant 0 : i32
    return %c0_i32, %c0_i32_0 : i32, i32
  }
  func.func @transform_6(%arg0: i32) -> (i32, i32) {
    %c0_i32 = arith.constant 0 : i32
    %c0_i32_0 = arith.constant 0 : i32
    %c0_i32_1 = arith.constant 0 : i32
    return %c0_i32, %c0_i32_0 : i32, i32
  }
  func.func @transform_7(%arg0: i32) -> (i32, i32) {
    %c0_i32 = arith.constant 0 : i32
    %c0_i32_0 = arith.constant 0 : i32
    %c0_i32_1 = arith.constant 0 : i32
    return %c0_i32, %c0_i32_0 : i32, i32
  }
  func.func @transform_8(%arg0: i32) -> (i32, i32) {
    %c0_i32 = arith.constant 0 : i32
    %c0_i32_0 = arith.constant 0 : i32
    return %arg0, %c0_i32 : i32, i32
  }
}

module attributes {stable_mosaic.version = 11 : i64} {
  func.func @kernel(%arg0: i32, %arg1: memref<8x8x32xbf16, #tpu.memory_space<vmem>>, %arg2: memref<8x2xf32, #tpu.memory_space<vmem>>, %arg3: memref<32x32xbf16, #tpu.memory_space<vmem>>, %arg4: memref<2x32x32xbf16, #tpu.memory_space<vmem>>, %arg5: memref<32x32xbf16, #tpu.memory_space<vmem>>, %arg6: memref<32x64xbf16, #tpu.memory_space<vmem>>, %arg7: memref<64x32xbf16, #tpu.memory_space<vmem>>, %arg8: memref<12x64xf32, #tpu.memory_space<vmem>>, %arg9: memref<8x32xf32, #tpu.memory_space<vmem>>) attributes {dimension_semantics = [#tpu.dimension_semantics<parallel>], iteration_bounds = array<i64: 2>, scalar_prefetch = 0 : i64, scratch_operands = 0 : i64, tpu.core_type = #tpu.core_type<tc>, window_params = [{transform_indices = @transform_0, window_bounds = array<i64: 8, 8, 32>}, {pipeline_mode = #tpu.pipeline_mode<synchronous>, transform_indices = @transform_1, window_bounds = array<i64: 8, 2>}, {pipeline_mode = #tpu.pipeline_mode<synchronous>, transform_indices = @transform_2, window_bounds = array<i64: 32, 32>}, {pipeline_mode = #tpu.pipeline_mode<synchronous>, transform_indices = @transform_3, window_bounds = array<i64: 2, 32, 32>}, {pipeline_mode = #tpu.pipeline_mode<synchronous>, transform_indices = @transform_4, window_bounds = array<i64: 32, 32>}, {pipeline_mode = #tpu.pipeline_mode<synchronous>, transform_indices = @transform_5, window_bounds = array<i64: 32, 64>}, {pipeline_mode = #tpu.pipeline_mode<synchronous>, transform_indices = @transform_6, window_bounds = array<i64: 64, 32>}, {pipeline_mode = #tpu.pipeline_mode<synchronous>, transform_indices = @transform_7, window_bounds = array<i64: 12, 64>}, {transform_indices = @transform_8, window_bounds = array<i64: 8, 32>}]} {
    %c0 = arith.constant 0 : index
    %c0_0 = arith.constant 0 : index
    %0 = vector.load %arg2[%c0, %c0_0] : memref<8x2xf32, #tpu.memory_space<vmem>>, vector<8x2xf32>
    %1 = vector.extract_strided_slice %0 {offsets = [0, 0], sizes = [8, 1], strides = [1, 1]} : vector<8x2xf32> to vector<8x1xf32>
    %2 = vector.shape_cast %1 : vector<8x1xf32> to vector<1x8x1xf32>
    %3 = vector.extract_strided_slice %0 {offsets = [0, 1], sizes = [8, 1], strides = [1, 1]} : vector<8x2xf32> to vector<8x1xf32>
    %4 = vector.shape_cast %3 : vector<8x1xf32> to vector<1x8x1xf32>
    %c0_1 = arith.constant 0 : index
    %c0_2 = arith.constant 0 : index
    %5 = vector.load %arg8[%c0_1, %c0_2] : memref<12x64xf32, #tpu.memory_space<vmem>>, vector<12x64xf32>
    %6 = vector.extract_strided_slice %5 {offsets = [0, 0], sizes = [1, 32], strides = [1, 1]} : vector<12x64xf32> to vector<1x32xf32>
    %7 = vector.extract_strided_slice %5 {offsets = [3, 0], sizes = [1, 32], strides = [1, 1]} : vector<12x64xf32> to vector<1x32xf32>
    %8 = vector.extract_strided_slice %5 {offsets = [4, 0], sizes = [1, 32], strides = [1, 1]} : vector<12x64xf32> to vector<1x32xf32>
    %9 = vector.extract_strided_slice %5 {offsets = [5, 0], sizes = [1, 32], strides = [1, 1]} : vector<12x64xf32> to vector<1x32xf32>
    %10 = vector.extract_strided_slice %5 {offsets = [6, 0], sizes = [1, 64], strides = [1, 1]} : vector<12x64xf32> to vector<1x64xf32>
    %11 = vector.extract_strided_slice %5 {offsets = [7, 0], sizes = [1, 32], strides = [1, 1]} : vector<12x64xf32> to vector<1x32xf32>
    %12 = vector.extract_strided_slice %5 {offsets = [8, 0], sizes = [1, 32], strides = [1, 1]} : vector<12x64xf32> to vector<1x32xf32>
    %13 = vector.extract_strided_slice %5 {offsets = [9, 0], sizes = [1, 32], strides = [1, 1]} : vector<12x64xf32> to vector<1x32xf32>
    %14 = vector.extract_strided_slice %5 {offsets = [10, 0], sizes = [1, 32], strides = [1, 1]} : vector<12x64xf32> to vector<1x32xf32>
    %15 = vector.extract_strided_slice %5 {offsets = [11, 0], sizes = [1, 32], strides = [1, 1]} : vector<12x64xf32> to vector<1x32xf32>
    %c0_3 = arith.constant 0 : index
    %c0_4 = arith.constant 0 : index
    %c0_5 = arith.constant 0 : index
    %16 = vector.load %arg1[%c0_3, %c0_4, %c0_5] : memref<8x8x32xbf16, #tpu.memory_space<vmem>>, vector<8x8x32xbf16>
    %17 = arith.extf %16 : vector<8x8x32xbf16> to vector<8x8x32xf32>
    %18 = vector.broadcast %2 : vector<1x8x1xf32> to vector<8x8x32xf32>
    %19 = arith.mulf %17, %18 : vector<8x8x32xf32>
    %20 = vector.broadcast %4 : vector<1x8x1xf32> to vector<8x8x32xf32>
    %21 = arith.addf %19, %20 : vector<8x8x32xf32>
    %22 = vector.extract_strided_slice %21 {offsets = [0, 0, 0], sizes = [8, 1, 32], strides = [1, 1, 1]} : vector<8x8x32xf32> to vector<8x1x32xf32>
    %23 = vector.shape_cast %22 : vector<8x1x32xf32> to vector<8x32xf32>
    %24 = vector.shape_cast %21 : vector<8x8x32xf32> to vector<64x32xf32>
    %25 = arith.truncf %24 : vector<64x32xf32> to vector<64x32xbf16>
    %26 = vector.extract_strided_slice %5 {offsets = [1, 0], sizes = [1, 32], strides = [1, 1]} : vector<12x64xf32> to vector<1x32xf32>
    %27 = vector.extract_strided_slice %5 {offsets = [2, 0], sizes = [1, 32], strides = [1, 1]} : vector<12x64xf32> to vector<1x32xf32>
    %c0_6 = arith.constant 0 : index
    %c0_7 = arith.constant 0 : index
    %c0_8 = arith.constant 0 : index
    %28 = vector.load %arg4[%c0_6, %c0_7, %c0_8] : memref<2x32x32xbf16, #tpu.memory_space<vmem>>, vector<1x32x32xbf16>
    %29 = vector.shape_cast %28 : vector<1x32x32xbf16> to vector<32x32xbf16>
    %cst = arith.constant dense<0.000000e+00> : vector<64x32xf32>
    %30 = tpu.matmul %25, %29, %cst {dimension_numbers = #tpu.dot_dimension_numbers<[1], [0], [0], [1], [0, 0, 1, 1], [], []>} : vector<64x32xbf16>, vector<32x32xbf16>, vector<64x32xf32> -> vector<64x32xf32>
    %31 = vector.broadcast %26 : vector<1x32xf32> to vector<64x32xf32>
    %32 = arith.addf %30, %31 : vector<64x32xf32>
    %33 = vector.shape_cast %32 : vector<64x32xf32> to vector<8x8x32xf32>
    %c1 = arith.constant 1 : index
    %c0_9 = arith.constant 0 : index
    %c0_10 = arith.constant 0 : index
    %34 = vector.load %arg4[%c1, %c0_9, %c0_10] : memref<2x32x32xbf16, #tpu.memory_space<vmem>>, vector<1x32x32xbf16>
    %35 = vector.shape_cast %34 : vector<1x32x32xbf16> to vector<32x32xbf16>
    %cst_11 = arith.constant dense<0.000000e+00> : vector<64x32xf32>
    %36 = tpu.matmul %25, %35, %cst_11 {dimension_numbers = #tpu.dot_dimension_numbers<[1], [0], [0], [1], [0, 0, 1, 1], [], []>} : vector<64x32xbf16>, vector<32x32xbf16>, vector<64x32xf32> -> vector<64x32xf32>
    %37 = vector.broadcast %27 : vector<1x32xf32> to vector<64x32xf32>
    %38 = arith.addf %36, %37 : vector<64x32xf32>
    %39 = vector.shape_cast %38 : vector<64x32xf32> to vector<8x8x32xf32>
    %40 = arith.truncf %23 : vector<8x32xf32> to vector<8x32xbf16>
    %c0_12 = arith.constant 0 : index
    %c0_13 = arith.constant 0 : index
    %41 = vector.load %arg3[%c0_12, %c0_13] : memref<32x32xbf16, #tpu.memory_space<vmem>>, vector<32x32xbf16>
    %cst_14 = arith.constant dense<0.000000e+00> : vector<8x32xf32>
    %42 = tpu.matmul %40, %41, %cst_14 {dimension_numbers = #tpu.dot_dimension_numbers<[1], [0], [0], [1], [0, 0, 1, 1], [], []>} : vector<8x32xbf16>, vector<32x32xbf16>, vector<8x32xf32> -> vector<8x32xf32>
    %43 = vector.broadcast %6 : vector<1x32xf32> to vector<8x32xf32>
    %44 = arith.addf %42, %43 : vector<8x32xf32>
    %45 = vector.shape_cast %44 : vector<8x32xf32> to vector<8x1x32xf32>
    %46 = vector.broadcast %45 : vector<8x1x32xf32> to vector<8x8x32xf32>
    %47 = arith.mulf %46, %33 : vector<8x8x32xf32>
    %cst_15 = arith.constant dense<0.000000e+00> : vector<8x8xf32>
    %48 = vector.multi_reduction <add>, %47, %cst_15 [2] : vector<8x8x32xf32> to vector<8x8xf32>
    %49 = vector.shape_cast %48 : vector<8x8xf32> to vector<8x8x1xf32>
    %cst_16 = arith.constant 0.176776692 : f32
    %50 = vector.broadcast %cst_16 : f32 to vector<8x8x1xf32>
    %51 = arith.mulf %49, %50 : vector<8x8x1xf32>
    %52 = vector.shape_cast %14 : vector<1x32xf32> to vector<1x1x32xf32>
    %53 = vector.broadcast %52 : vector<1x1x32xf32> to vector<8x1x32xf32>
    %54 = arith.mulf %45, %53 : vector<8x1x32xf32>
    %cst_17 = arith.constant dense<0.000000e+00> : vector<8x1xf32>
    %55 = vector.multi_reduction <add>, %54, %cst_17 [2] : vector<8x1x32xf32> to vector<8x1xf32>
    %56 = vector.shape_cast %55 : vector<8x1xf32> to vector<8x1x1xf32>
    %cst_18 = arith.constant 0.176776692 : f32
    %57 = vector.broadcast %cst_18 : f32 to vector<8x1x1xf32>
    %58 = arith.mulf %56, %57 : vector<8x1x1xf32>
    %cst_19 = arith.constant dense<0xFF800000> : vector<8x1xf32>
    %59 = vector.multi_reduction <maximumf>, %51, %cst_19 [1] : vector<8x8x1xf32> to vector<8x1xf32>
    %60 = vector.shape_cast %59 : vector<8x1xf32> to vector<8x1x1xf32>
    %61 = arith.maximumf %60, %58 : vector<8x1x1xf32>
    %62 = vector.broadcast %61 : vector<8x1x1xf32> to vector<8x8x1xf32>
    %63 = arith.subf %51, %62 : vector<8x8x1xf32>
    %64 = math.exp %63 : vector<8x8x1xf32>
    %65 = arith.subf %58, %61 : vector<8x1x1xf32>
    %66 = math.exp %65 : vector<8x1x1xf32>
    %cst_20 = arith.constant dense<0.000000e+00> : vector<8x1xf32>
    %67 = vector.multi_reduction <add>, %64, %cst_20 [1] : vector<8x8x1xf32> to vector<8x1xf32>
    %68 = vector.shape_cast %67 : vector<8x1xf32> to vector<8x1x1xf32>
    %69 = arith.addf %68, %66 : vector<8x1x1xf32>
    %70 = tpu.reciprocal %69 {approx = true} : vector<8x1x1xf32> -> vector<8x1x1xf32>
    %71 = vector.broadcast %64 : vector<8x8x1xf32> to vector<8x8x32xf32>
    %72 = arith.mulf %71, %39 : vector<8x8x32xf32>
    %cst_21 = arith.constant dense<0.000000e+00> : vector<8x32xf32>
    %73 = vector.multi_reduction <add>, %72, %cst_21 [1] : vector<8x8x32xf32> to vector<8x32xf32>
    %74 = vector.shape_cast %66 : vector<8x1x1xf32> to vector<8x1xf32>
    %75 = vector.broadcast %74 : vector<8x1xf32> to vector<8x32xf32>
    %76 = vector.broadcast %15 : vector<1x32xf32> to vector<8x32xf32>
    %77 = arith.mulf %75, %76 : vector<8x32xf32>
    %78 = arith.addf %73, %77 : vector<8x32xf32>
    %79 = vector.shape_cast %70 : vector<8x1x1xf32> to vector<8x1xf32>
    %80 = vector.broadcast %79 : vector<8x1xf32> to vector<8x32xf32>
    %81 = arith.mulf %78, %80 : vector<8x32xf32>
    %82 = arith.truncf %81 : vector<8x32xf32> to vector<8x32xbf16>
    %c0_22 = arith.constant 0 : index
    %c0_23 = arith.constant 0 : index
    %83 = vector.load %arg5[%c0_22, %c0_23] : memref<32x32xbf16, #tpu.memory_space<vmem>>, vector<32x32xbf16>
    %cst_24 = arith.constant dense<0.000000e+00> : vector<8x32xf32>
    %84 = tpu.matmul %82, %83, %cst_24 {dimension_numbers = #tpu.dot_dimension_numbers<[1], [0], [0], [1], [0, 0, 1, 1], [], []>} : vector<8x32xbf16>, vector<32x32xbf16>, vector<8x32xf32> -> vector<8x32xf32>
    %85 = vector.broadcast %7 : vector<1x32xf32> to vector<8x32xf32>
    %86 = arith.addf %84, %85 : vector<8x32xf32>
    %87 = arith.addf %23, %86 : vector<8x32xf32>
    %cst_25 = arith.constant dense<0.000000e+00> : vector<8xf32>
    %88 = vector.multi_reduction <add>, %87, %cst_25 [1] : vector<8x32xf32> to vector<8xf32>
    %89 = vector.shape_cast %88 : vector<8xf32> to vector<8x1xf32>
    %cst_26 = arith.constant 3.200000e+01 : f32
    %90 = vector.broadcast %cst_26 : f32 to vector<8x1xf32>
    %91 = arith.divf %89, %90 : vector<8x1xf32>
    %92 = vector.broadcast %91 : vector<8x1xf32> to vector<8x32xf32>
    %93 = arith.subf %87, %92 : vector<8x32xf32>
    %94 = arith.mulf %93, %93 : vector<8x32xf32>
    %cst_27 = arith.constant dense<0.000000e+00> : vector<8xf32>
    %95 = vector.multi_reduction <add>, %94, %cst_27 [1] : vector<8x32xf32> to vector<8xf32>
    %96 = vector.shape_cast %95 : vector<8xf32> to vector<8x1xf32>
    %cst_28 = arith.constant 3.200000e+01 : f32
    %97 = vector.broadcast %cst_28 : f32 to vector<8x1xf32>
    %98 = arith.divf %96, %97 : vector<8x1xf32>
    %99 = vector.broadcast %91 : vector<8x1xf32> to vector<8x32xf32>
    %100 = arith.subf %87, %99 : vector<8x32xf32>
    %cst_29 = arith.constant 9.99999974E-6 : f32
    %101 = vector.broadcast %cst_29 : f32 to vector<8x1xf32>
    %102 = arith.addf %98, %101 : vector<8x1xf32>
    %103 = math.rsqrt %102 : vector<8x1xf32>
    %104 = vector.broadcast %103 : vector<8x1xf32> to vector<8x32xf32>
    %105 = arith.mulf %100, %104 : vector<8x32xf32>
    %106 = vector.broadcast %8 : vector<1x32xf32> to vector<8x32xf32>
    %107 = arith.mulf %105, %106 : vector<8x32xf32>
    %108 = vector.broadcast %9 : vector<1x32xf32> to vector<8x32xf32>
    %109 = arith.addf %107, %108 : vector<8x32xf32>
    %110 = arith.truncf %109 : vector<8x32xf32> to vector<8x32xbf16>
    %c0_30 = arith.constant 0 : index
    %c0_31 = arith.constant 0 : index
    %111 = vector.load %arg6[%c0_30, %c0_31] : memref<32x64xbf16, #tpu.memory_space<vmem>>, vector<32x64xbf16>
    %cst_32 = arith.constant dense<0.000000e+00> : vector<8x64xf32>
    %112 = tpu.matmul %110, %111, %cst_32 {dimension_numbers = #tpu.dot_dimension_numbers<[1], [0], [0], [1], [0, 0, 1, 1], [], []>} : vector<8x32xbf16>, vector<32x64xbf16>, vector<8x64xf32> -> vector<8x64xf32>
    %113 = vector.broadcast %10 : vector<1x64xf32> to vector<8x64xf32>
    %114 = arith.addf %112, %113 : vector<8x64xf32>
    %cst_33 = arith.constant 0.000000e+00 : f32
    %115 = vector.broadcast %cst_33 : f32 to vector<8x64xf32>
    %116 = arith.maximumf %114, %115 : vector<8x64xf32>
    %117 = arith.truncf %116 : vector<8x64xf32> to vector<8x64xbf16>
    %c0_34 = arith.constant 0 : index
    %c0_35 = arith.constant 0 : index
    %118 = vector.load %arg7[%c0_34, %c0_35] : memref<64x32xbf16, #tpu.memory_space<vmem>>, vector<64x32xbf16>
    %cst_36 = arith.constant dense<0.000000e+00> : vector<8x32xf32>
    %119 = tpu.matmul %117, %118, %cst_36 {dimension_numbers = #tpu.dot_dimension_numbers<[1], [0], [0], [1], [0, 0, 1, 1], [], []>} : vector<8x64xbf16>, vector<64x32xbf16>, vector<8x32xf32> -> vector<8x32xf32>
    %120 = vector.broadcast %11 : vector<1x32xf32> to vector<8x32xf32>
    %121 = arith.addf %119, %120 : vector<8x32xf32>
    %122 = arith.addf %109, %121 : vector<8x32xf32>
    %cst_37 = arith.constant dense<0.000000e+00> : vector<8xf32>
    %123 = vector.multi_reduction <add>, %122, %cst_37 [1] : vector<8x32xf32> to vector<8xf32>
    %124 = vector.shape_cast %123 : vector<8xf32> to vector<8x1xf32>
    %cst_38 = arith.constant 3.200000e+01 : f32
    %125 = vector.broadcast %cst_38 : f32 to vector<8x1xf32>
    %126 = arith.divf %124, %125 : vector<8x1xf32>
    %127 = vector.broadcast %126 : vector<8x1xf32> to vector<8x32xf32>
    %128 = arith.subf %122, %127 : vector<8x32xf32>
    %129 = arith.mulf %128, %128 : vector<8x32xf32>
    %cst_39 = arith.constant dense<0.000000e+00> : vector<8xf32>
    %130 = vector.multi_reduction <add>, %129, %cst_39 [1] : vector<8x32xf32> to vector<8xf32>
    %131 = vector.shape_cast %130 : vector<8xf32> to vector<8x1xf32>
    %cst_40 = arith.constant 3.200000e+01 : f32
    %132 = vector.broadcast %cst_40 : f32 to vector<8x1xf32>
    %133 = arith.divf %131, %132 : vector<8x1xf32>
    %134 = vector.broadcast %126 : vector<8x1xf32> to vector<8x32xf32>
    %135 = arith.subf %122, %134 : vector<8x32xf32>
    %cst_41 = arith.constant 9.99999974E-6 : f32
    %136 = vector.broadcast %cst_41 : f32 to vector<8x1xf32>
    %137 = arith.addf %133, %136 : vector<8x1xf32>
    %138 = math.rsqrt %137 : vector<8x1xf32>
    %139 = vector.broadcast %138 : vector<8x1xf32> to vector<8x32xf32>
    %140 = arith.mulf %135, %139 : vector<8x32xf32>
    %141 = vector.broadcast %12 : vector<1x32xf32> to vector<8x32xf32>
    %142 = arith.mulf %140, %141 : vector<8x32xf32>
    %143 = vector.broadcast %13 : vector<1x32xf32> to vector<8x32xf32>
    %144 = arith.addf %142, %143 : vector<8x32xf32>
    %c0_42 = arith.constant 0 : index
    %c0_43 = arith.constant 0 : index
    %145 = vector.load %arg9[%c0_42, %c0_43] : memref<8x32xf32, #tpu.memory_space<vmem>>, vector<8x32xf32>
    tpu.vector_store %arg9[%c0_42, %c0_43], %144 {strides = array<i32>} : memref<8x32xf32, #tpu.memory_space<vmem>>, vector<8x32xf32>,
    return
  }
  func.func @transform_0(%arg0: i32) -> (i32, i32, i32) {
    %c0_i32 = arith.constant 0 : i32
    %c0_i32_0 = arith.constant 0 : i32
    %c0_i32_1 = arith.constant 0 : i32
    return %arg0, %c0_i32, %c0_i32_0 : i32, i32, i32
  }
  func.func @transform_1(%arg0: i32) -> (i32, i32) {
    %c0_i32 = arith.constant 0 : i32
    %c0_i32_0 = arith.constant 0 : i32
    %c0_i32_1 = arith.constant 0 : i32
    return %c0_i32, %c0_i32_0 : i32, i32
  }
  func.func @transform_2(%arg0: i32) -> (i32, i32) {
    %c0_i32 = arith.constant 0 : i32
    %c0_i32_0 = arith.constant 0 : i32
    %c0_i32_1 = arith.constant 0 : i32
    return %c0_i32, %c0_i32_0 : i32, i32
  }
  func.func @transform_3(%arg0: i32) -> (i32, i32, i32) {
    %c0_i32 = arith.constant 0 : i32
    %c0_i32_0 = arith.constant 0 : i32
    %c0_i32_1 = arith.constant 0 : i32
    %c0_i32_2 = arith.constant 0 : i32
    return %c0_i32, %c0_i32_0, %c0_i32_1 : i32, i32, i32
  }
  func.func @transform_4(%arg0: i32) -> (i32, i32) {
    %c0_i32 = arith.constant 0 : i32
    %c0_i32_0 = arith.constant 0 : i32
    %c0_i32_1 = arith.constant 0 : i32
    return %c0_i32, %c0_i32_0 : i32, i32
  }
  func.func @transform_5(%arg0: i32) -> (i32, i32) {
    %c0_i32 = arith.constant 0 : i32
    %c0_i32_0 = arith.constant 0 : i32
    %c0_i32_1 = arith.constant 0 : i32
    return %c0_i32, %c0_i32_0 : i32, i32
  }
  func.func @transform_6(%arg0: i32) -> (i32, i32) {
    %c0_i32 = arith.constant 0 : i32
    %c0_i32_0 = arith.constant 0 : i32
    %c0_i32_1 = arith.constant 0 : i32
    return %c0_i32, %c0_i32_0 : i32, i32
  }
  func.func @transform_7(%arg0: i32) -> (i32, i32) {
    %c0_i32 = arith.constant 0 : i32
    %c0_i32_0 = arith.constant 0 : i32
    %c0_i32_1 = arith.constant 0 : i32
    return %c0_i32, %c0_i32_0 : i32, i32
  }
  func.func @transform_8(%arg0: i32) -> (i32, i32) {
    %c0_i32 = arith.constant 0 : i32
    %c0_i32_0 = arith.constant 0 : i32
    return %arg0, %c0_i32 : i32, i32
  }
}

</mosaic_0001>

<llo_original>
// kernel: tpu_custom_call.1
$region0: #{tpu_custom_call.1}
  #allocation0 [shape = 'u32[]', space=smem, size = 0x4, offset = 0x4, fixed_abs, tag = 'smem constant byte address 0x4 - core index']
  #allocation1 [shape = 'u32[144,128]{1,0:T(1,128)}', space=vmem, size = 0x12000, scoped, tag = 'internal scratch']
  %s0 = inlined_call_operand.hbm [shape: bf16[16,8,32], index: 0, kind: input, shape index: {}]
  %s1 = inlined_call_operand.hbm [shape: f32[8,2], index: 1, kind: input, shape index: {}]
  %s2 = inlined_call_operand.hbm [shape: bf16[32,32], index: 2, kind: input, shape index: {}]
  %s3 = inlined_call_operand.hbm [shape: bf16[2,32,32], index: 3, kind: input, shape index: {}]
  %s4 = inlined_call_operand.hbm [shape: bf16[32,32], index: 4, kind: input, shape index: {}]
  %s5 = inlined_call_operand.hbm [shape: bf16[32,64], index: 5, kind: input, shape index: {}]
  %s6 = inlined_call_operand.hbm [shape: bf16[64,32], index: 6, kind: input, shape index: {}]
  %s7 = inlined_call_operand.hbm [shape: f32[12,64], index: 7, kind: input, shape index: {}]
  %s8 = inlined_call_operand.hbm [shape: f32[16,32], index: 8, kind: output, shape index: {}]
  %s9 = sld [smem:[#allocation0]]
  $region97: #{tpu_custom_call.1} parent=0
    _
  %s11 = ssub.s32 1, %s9
  %s12 = scalar_select 0, %s11, %s9
  $region1: #{tpu_custom_call.1} parent=0
    #allocation2 [shape = 'u8[32768]{0}', space=vmem, size = 0x8000, scoped, tag = 'input window, operand 0']
    #allocation3 [shape = 's32[2]{0}', space=sflag, size = 0x8, scoped, tag = 'scoped memory for tpu_custom_call.1']
    #allocation4 [shape = 's32[2]{0}', space=sflag, size = 0x8, scoped, tag = 'scoped memory for tpu_custom_call.1']
    #allocation5 [shape = 'u8[4096]{0}', space=vmem, size = 0x1000, scoped, tag = 'input window, operand 1, single buffered']
    #allocation6 [shape = 's32[1]{0}', space=sflag, size = 0x4, scoped, tag = 'scoped memory for tpu_custom_call.1']
    #allocation7 [shape = 'u8[8192]{0}', space=vmem, size = 0x2000, scoped, tag = 'input window, operand 2, single buffered']
    #allocation8 [shape = 'u8[16384]{0}', space=vmem, size = 0x4000, scoped, tag = 'input window, operand 3, single buffered']
    #allocation9 [shape = 's32[1]{0}', space=sflag, size = 0x4, scoped, tag = 'scoped memory for tpu_custom_call.1']
    #allocation10 [shape = 'u8[8192]{0}', space=vmem, size = 0x2000, scoped, tag = 'input window, operand 4, single buffered']
    #allocation11 [shape = 'u8[8192]{0}', space=vmem, size = 0x2000, scoped, tag = 'input window, operand 5, single buffered']
    #allocation12 [shape = 's32[1]{0}', space=sflag, size = 0x4, scoped, tag = 'scoped memory for tpu_custom_call.1']
    #allocation13 [shape = 'u8[16384]{0}', space=vmem, size = 0x4000, scoped, tag = 'input window, operand 6, single buffered']
    #allocation14 [shape = 'u8[8192]{0}', space=vmem, size = 0x2000, scoped, tag = 'input window, operand 7, single buffered']
    #allocation15 [shape = 's32[1]{0}', space=sflag, size = 0x4, scoped, tag = 'scoped memory for tpu_custom_call.1']
    #allocation16 [shape = 'u8[8192]{0}', space=vmem, size = 0x2000, scoped, tag = 'output window, operand 0']
    %13 = vsyncpa [#allocation3], 0
    %s14 = scalar_lea.sflag [#allocation3], 1
    %15 = vsyncpa %s14, 0
    %16 = vsyncpa [#allocation6], 0
    %17 = vsyncpa [#allocation9], 0
    %18 = vsyncpa [#allocation12], 0
    %19 = vsyncpa [#allocation15], 0
    %20 = vsyncpa [#allocation4], 0
    %s21 = scalar_lea.sflag [#allocation4], 1
    %22 = vsyncpa %s21, 0
    loop: start=0, step=1, limit=4
    $region2: #{tpu_custom_call.1} parent=1 // loop_pre_header
      _
    $region3: #{tpu_custom_call.1} parent=1 // loop_header
      %s24 = sphi 0, %s28
      %p25 = scmp.ge.s32.totalorder %s24, 4
      %s34 = sphi 0, %s36
      %s37 = sphi 0, %s34
      %s38 = sphi 0, %s37
      %s54 = sphi 0, %s38
      %s58 = sphi 0, %s58
      %s60 = sphi 0, %s58
      %s61 = sphi 0, %s60
      %s75 = sphi 0, %s61
      %s79 = sphi 0, %s79
      %s81 = sphi 0, %s79
      %s82 = sphi 0, %s81
      %s96 = sphi 0, %s82
      %s100 = sphi 0, %s100
      %s102 = sphi 0, %s100
      %s103 = sphi 0, %s102
      %s117 = sphi 0, %s103
      %s121 = sphi 0, %s121
      %s123 = sphi 0, %s121
      %s124 = sphi 0, %s123
      %s138 = sphi 0, %s124
      %s142 = sphi 0, %s142
      %s144 = sphi 0, %s142
      %s145 = sphi 0, %s144
      %s159 = sphi 0, %s145
      %s163 = sphi 0, %s163
      %s165 = sphi 0, %s163
      %s166 = sphi 0, %s165
      %s180 = sphi 0, %s166
      %s184 = sphi 0, %s184
      %s186 = sphi 0, %s184
      %s187 = sphi 0, %s186
      %s201 = sphi 0, %s187
      %s207 = sphi 0, %s209
      %s210 = sphi 0, %s207
      %s211 = sphi 0, %s210
      %s227 = sphi 0, %s211
    $region4: #{tpu_custom_call.1} parent=1 // loop_header_branch
      %27 = sbr.rel (%p25) target = $region8
    $region5: #{tpu_custom_call.1} parent=1 // loop_body
      %s29 = ssub.s32 %s24, 1
      %s30 = ssub.s32 %s24, 2
      %s31 = sadd.s32 %s24, 1
      %s32 = ssub.s32 %s24, %s31
      %p33 = scmp.eq.s32.totalorder %s32, 0
      %s35 = sadd.s32 %s34, 1
      %s36 = scalar_select %p33, %s34, %s35
      %p39 = pneg %p33
      %p40 = scmp.eq.s32.totalorder %s24, 1
      %p41 = por %p39, %p40
      %p42 = scmp.ne.s32.totalorder %s34, %s37
      %p43 = scmp.eq.s32.totalorder %s24, 0
      %p44 = por %p42, %p43
      %p45 = scmp.ne.s32.totalorder %s34, %s37
      %p46 = scmp.eq.s32.totalorder %s29, 1
      %p47 = por %p45, %p46
      %p48 = scmp.ne.s32.totalorder %s37, %s38
      %p49 = scmp.eq.s32.totalorder %s29, 0
      %p50 = por %p48, %p49
      %p51 = scmp.ne.s32.totalorder %s37, %s38
      %p52 = scmp.eq.s32.totalorder %s30, 1
      %p53 = por %p51, %p52
      %p55 = scmp.ne.s32.totalorder %s38, %s54
      %p56 = scmp.eq.s32.totalorder %s30, 0
      %p57 = por %p55, %p56
      %s59 = sadd.s32 %s58, 1
      %p62 = scmp.eq.s32.totalorder %s24, 1
      %p63 = scmp.ne.s32.totalorder %s58, %s60
      %p64 = scmp.eq.s32.totalorder %s24, 0
      %p65 = por %p63, %p64
      %p66 = scmp.ne.s32.totalorder %s58, %s60
      %p67 = scmp.eq.s32.totalorder %s29, 1
      %p68 = por %p66, %p67
      %p69 = scmp.ne.s32.totalorder %s60, %s61
      %p70 = scmp.eq.s32.totalorder %s29, 0
      %p71 = por %p69, %p70
      %p72 = scmp.ne.s32.totalorder %s60, %s61
      %p73 = scmp.eq.s32.totalorder %s30, 1
      %p74 = por %p72, %p73
      %p76 = scmp.ne.s32.totalorder %s61, %s75
      %p77 = scmp.eq.s32.totalorder %s30, 0
      %p78 = por %p76, %p77
      %s80 = sadd.s32 %s79, 1
      %p83 = scmp.eq.s32.totalorder %s24, 1
      %p84 = scmp.ne.s32.totalorder %s79, %s81
      %p85 = scmp.eq.s32.totalorder %s24, 0
      %p86 = por %p84, %p85
      %p87 = scmp.ne.s32.totalorder %s79, %s81
      %p88 = scmp.eq.s32.totalorder %s29, 1
      %p89 = por %p87, %p88
      %p90 = scmp.ne.s32.totalorder %s81, %s82
      %p91 = scmp.eq.s32.totalorder %s29, 0
      %p92 = por %p90, %p91
      %p93 = scmp.ne.s32.totalorder %s81, %s82
      %p94 = scmp.eq.s32.totalorder %s30, 1
      %p95 = por %p93, %p94
      %p97 = scmp.ne.s32.totalorder %s82, %s96
      %p98 = scmp.eq.s32.totalorder %s30, 0
      %p99 = por %p97, %p98
      %s101 = sadd.s32 %s100, 1
      %p104 = scmp.eq.s32.totalorder %s24, 1
      %p105 = scmp.ne.s32.totalorder %s100, %s102
      %p106 = scmp.eq.s32.totalorder %s24, 0
      %p107 = por %p105, %p106
      %p108 = scmp.ne.s32.totalorder %s100, %s102
      %p109 = scmp.eq.s32.totalorder %s29, 1
      %p110 = por %p108, %p109
      %p111 = scmp.ne.s32.totalorder %s102, %s103
      %p112 = scmp.eq.s32.totalorder %s29, 0
      %p113 = por %p111, %p112
      %p114 = scmp.ne.s32.totalorder %s102, %s103
      %p115 = scmp.eq.s32.totalorder %s30, 1
      %p116 = por %p114, %p115
      %p118 = scmp.ne.s32.totalorder %s103, %s117
      %p119 = scmp.eq.s32.totalorder %s30, 0
      %p120 = por %p118, %p119
      %s122 = sadd.s32 %s121, 1
      %p125 = scmp.eq.s32.totalorder %s24, 1
      %p126 = scmp.ne.s32.totalorder %s121, %s123
      %p127 = scmp.eq.s32.totalorder %s24, 0
      %p128 = por %p126, %p127
      %p129 = scmp.ne.s32.totalorder %s121, %s123
      %p130 = scmp.eq.s32.totalorder %s29, 1
      %p131 = por %p129, %p130
      %p132 = scmp.ne.s32.totalorder %s123, %s124
      %p133 = scmp.eq.s32.totalorder %s29, 0
      %p134 = por %p132, %p133
      %p135 = scmp.ne.s32.totalorder %s123, %s124
      %p136 = scmp.eq.s32.totalorder %s30, 1
      %p137 = por %p135, %p136
      %p139 = scmp.ne.s32.totalorder %s124, %s138
      %p140 = scmp.eq.s32.totalorder %s30, 0
      %p141 = por %p139, %p140
      %s143 = sadd.s32 %s142, 1
      %p146 = scmp.eq.s32.totalorder %s24, 1
      %p147 = scmp.ne.s32.totalorder %s142, %s144
      %p148 = scmp.eq.s32.totalorder %s24, 0
      %p149 = por %p147, %p148
      %p150 = scmp.ne.s32.totalorder %s142, %s144
      %p151 = scmp.eq.s32.totalorder %s29, 1
      %p152 = por %p150, %p151
      %p153 = scmp.ne.s32.totalorder %s144, %s145
      %p154 = scmp.eq.s32.totalorder %s29, 0
      %p155 = por %p153, %p154
      %p156 = scmp.ne.s32.totalorder %s144, %s145
      %p157 = scmp.eq.s32.totalorder %s30, 1
      %p158 = por %p156, %p157
      %p160 = scmp.ne.s32.totalorder %s145, %s159
      %p161 = scmp.eq.s32.totalorder %s30, 0
      %p162 = por %p160, %p161
      %s164 = sadd.s32 %s163, 1
      %p167 = scmp.eq.s32.totalorder %s24, 1
      %p168 = scmp.ne.s32.totalorder %s163, %s165
      %p169 = scmp.eq.s32.totalorder %s24, 0
      %p170 = por %p168, %p169
      %p171 = scmp.ne.s32.totalorder %s163, %s165
      %p172 = scmp.eq.s32.totalorder %s29, 1
      %p173 = por %p171, %p172
      %p174 = scmp.ne.s32.totalorder %s165, %s166
      %p175 = scmp.eq.s32.totalorder %s29, 0
      %p176 = por %p174, %p175
      %p177 = scmp.ne.s32.totalorder %s165, %s166
      %p178 = scmp.eq.s32.totalorder %s30, 1
      %p179 = por %p177, %p178
      %p181 = scmp.ne.s32.totalorder %s166, %s180
      %p182 = scmp.eq.s32.totalorder %s30, 0
      %p183 = por %p181, %p182
      %s185 = sadd.s32 %s184, 1
      %p188 = scmp.eq.s32.totalorder %s24, 1
      %p189 = scmp.ne.s32.totalorder %s184, %s186
      %p190 = scmp.eq.s32.totalorder %s24, 0
      %p191 = por %p189, %p190
      %p192 = scmp.ne.s32.totalorder %s184, %s186
      %p193 = scmp.eq.s32.totalorder %s29, 1
      %p194 = por %p192, %p193
      %p195 = scmp.ne.s32.totalorder %s186, %s187
      %p196 = scmp.eq.s32.totalorder %s29, 0
      %p197 = por %p195, %p196
      %p198 = scmp.ne.s32.totalorder %s186, %s187
      %p199 = scmp.eq.s32.totalorder %s30, 1
      %p200 = por %p198, %p199
      %p202 = scmp.ne.s32.totalorder %s187, %s201
      %p203 = scmp.eq.s32.totalorder %s30, 0
      %p204 = por %p202, %p203
      %s205 = ssub.s32 %s24, %s31
      %p206 = scmp.eq.s32.totalorder %s205, 0
      %s208 = sadd.s32 %s207, 1
      %s209 = scalar_select %p206, %s207, %s208
      %p212 = pneg %p206
      %p213 = scmp.eq.s32.totalorder %s24, 1
      %p214 = por %p212, %p213
      %p215 = scmp.ne.s32.totalorder %s207, %s210
      %p216 = scmp.eq.s32.totalorder %s24, 0
      %p217 = por %p215, %p216
      %p218 = scmp.ne.s32.totalorder %s207, %s210
      %p219 = scmp.eq.s32.totalorder %s29, 1
      %p220 = por %p218, %p219
      %p221 = scmp.ne.s32.totalorder %s210, %s211
      %p222 = scmp.eq.s32.totalorder %s29, 0
      %p223 = por %p221, %p222
      %p224 = scmp.ne.s32.totalorder %s210, %s211
      %p225 = scmp.eq.s32.totalorder %s30, 1
      %p226 = por %p224, %p225
      %p228 = scmp.ne.s32.totalorder %s211, %s227
      %p229 = scmp.eq.s32.totalorder %s30, 0
      %p230 = por %p228, %p229
      %p231 = scmp.le.s32.totalorder 1, %s24
      %p232 = scmp.lt.s32.totalorder %s24, 3
      %p233 = pnand %p231, %p232
      %p234 = pneg %p233
      // Predicated region
      $region9: #{tpu_custom_call.1} parent=5 // pred_check
        _
      $region10: #{tpu_custom_call.1} parent=5 // pred_check_branch
        %236 = sbr.rel (%p233) target = $region12
      $region11: #{tpu_custom_call.1} parent=5 // pred_region
        %s237 = ssub.s32 %s24, 1
        // Predicated region
        $region13: #{tpu_custom_call.1} parent=11 // pred_check
          %p238 = pneg %p71
        $region14: #{tpu_custom_call.1} parent=11 // pred_check_branch
          %240 = sbr.rel (%p238) target = $region16
        $region15: #{tpu_custom_call.1} parent=11 // pred_region
          %s242 = ssub.s32 128, 128
          %243 = vsyncadd [#allocation6], %s242
          %s245 = sshll.u32 [#allocation5], 4
          %s246 = int_to_ptr.vmem [resolvable:$true] %s245
          %248 = dma.hbm_to_vmem [thread:$0]  %s1, 128, %s246, [#allocation6]
        $region16: #{tpu_custom_call.1} parent=11 // pred_fallthru
          _
        // Predicated region
        $region17: #{tpu_custom_call.1} parent=11 // pred_check
          %p249 = pneg %p92
        $region18: #{tpu_custom_call.1} parent=11 // pred_check_branch
          %251 = sbr.rel (%p249) target = $region20
        $region19: #{tpu_custom_call.1} parent=11 // pred_region
          %s253 = ssub.s32 256, 256
          %254 = vsyncadd [#allocation6], %s253
          %s255 = sshll.u32 [#allocation7], 4
          %s256 = int_to_ptr.vmem [resolvable:$true] %s255
          %261 = dma.hbm_to_vmem [thread:$0]  %s2, 256, %s256, [#allocation6], 64, 64, 4
        $region20: #{tpu_custom_call.1} parent=11 // pred_fallthru
          _
        // Predicated region
        $region21: #{tpu_custom_call.1} parent=11 // pred_check
          %p262 = pneg %p113
        $region22: #{tpu_custom_call.1} parent=11 // pred_check_branch
          %264 = sbr.rel (%p262) target = $region24
        $region23: #{tpu_custom_call.1} parent=11 // pred_region
          %s266 = ssub.s32 512, 512
          %267 = vsyncadd [#allocation9], %s266
          %s268 = sshll.u32 [#allocation8], 4
          %s269 = int_to_ptr.vmem [resolvable:$true] %s268
          %274 = dma.hbm_to_vmem [thread:$0]  %s3, 512, %s269, [#allocation9], 64, 64, 4
        $region24: #{tpu_custom_call.1} parent=11 // pred_fallthru
          _
        // Predicated region
        $region25: #{tpu_custom_call.1} parent=11 // pred_check
          %p275 = pneg %p134
        $region26: #{tpu_custom_call.1} parent=11 // pred_check_branch
          %277 = sbr.rel (%p275) target = $region28
        $region27: #{tpu_custom_call.1} parent=11 // pred_region
          %s279 = ssub.s32 256, 256
          %280 = vsyncadd [#allocation9], %s279
          %s281 = sshll.u32 [#allocation10], 4
          %s282 = int_to_ptr.vmem [resolvable:$true] %s281
          %287 = dma.hbm_to_vmem [thread:$0]  %s4, 256, %s282, [#allocation9], 64, 64, 4
        $region28: #{tpu_custom_call.1} parent=11 // pred_fallthru
          _
        // Predicated region
        $region29: #{tpu_custom_call.1} parent=11 // pred_check
          %p288 = pneg %p155
        $region30: #{tpu_custom_call.1} parent=11 // pred_check_branch
          %290 = sbr.rel (%p288) target = $region32
        $region31: #{tpu_custom_call.1} parent=11 // pred_region
          %s292 = ssub.s32 256, 256
          %293 = vsyncadd [#allocation12], %s292
          %s294 = sshll.u32 [#allocation11], 4
          %s295 = int_to_ptr.vmem [resolvable:$true] %s294
          %300 = dma.hbm_to_vmem [thread:$0]  %s5, 256, %s295, [#allocation12], 64, 64, 4
        $region32: #{tpu_custom_call.1} parent=11 // pred_fallthru
          _
        // Predicated region
        $region33: #{tpu_custom_call.1} parent=11 // pred_check
          %p301 = pneg %p176
        $region34: #{tpu_custom_call.1} parent=11 // pred_check_branch
          %303 = sbr.rel (%p301) target = $region36
        $region35: #{tpu_custom_call.1} parent=11 // pred_region
          %s305 = ssub.s32 512, 512
          %306 = vsyncadd [#allocation12], %s305
          %s307 = sshll.u32 [#allocation13], 4
          %s308 = int_to_ptr.vmem [resolvable:$true] %s307
          %313 = dma.hbm_to_vmem [thread:$0]  %s6, 512, %s308, [#allocation12], 64, 64, 4
        $region36: #{tpu_custom_call.1} parent=11 // pred_fallthru
          _
        // Predicated region
        $region37: #{tpu_custom_call.1} parent=11 // pred_check
          %p314 = pneg %p197
        $region38: #{tpu_custom_call.1} parent=11 // pred_check_branch
          %316 = sbr.rel (%p314) target = $region40
        $region39: #{tpu_custom_call.1} parent=11 // pred_region
          %s318 = ssub.s32 256, 256
          %319 = vsyncadd [#allocation15], %s318
          %s320 = sshll.u32 [#allocation14], 4
          %s321 = int_to_ptr.vmem [resolvable:$true] %s320
          %326 = dma.hbm_to_vmem [thread:$0]  %s7, 256, %s321, [#allocation15], 128, 128, 8
        $region40: #{tpu_custom_call.1} parent=11 // pred_fallthru
          _
      $region12: #{tpu_custom_call.1} parent=5 // pred_fallthru
        _
      %p327 = scmp.lt.s32.totalorder %s24, 2
      // Predicated region
      $region41: #{tpu_custom_call.1} parent=5 // pred_check
        %p328 = pneg %p327
      $region42: #{tpu_custom_call.1} parent=5 // pred_check_branch
        %330 = sbr.rel (%p328) target = $region44
      $region43: #{tpu_custom_call.1} parent=5 // pred_region
        // Predicated region
        $region45: #{tpu_custom_call.1} parent=43 // pred_check
          %p331 = pneg %p44
        $region46: #{tpu_custom_call.1} parent=43 // pred_check_branch
          %333 = sbr.rel (%p331) target = $region48
        $region47: #{tpu_custom_call.1} parent=43 // pred_region
          %s334 = sand.u32 %s34, 1
          %s335 = scalar_lea.sflag [#allocation3], %s334
          %s336 = sand.u32 %s34, 1
          %s337 = smul.addr %s336, 32
          %s338 = scalar_lea.vmem [#allocation2], %s337
          %s339 = smul.u32 8, %s24
          %s341 = ssub.s32 512, 512
          %342 = vsyncadd %s335, %s341
          %s343 = smul.addr %s339, 64
          %s344 = scalar_lea.hbm %s0, %s343
          %s345 = sshll.u32 %s338, 4
          %s346 = int_to_ptr.vmem [resolvable:$true] %s345
          %351 = dma.hbm_to_vmem [thread:$0]  %s344, 512, %s346, %s335, 64, 64, 4
        $region48: #{tpu_custom_call.1} parent=43 // pred_fallthru
          _
      $region44: #{tpu_custom_call.1} parent=5 // pred_fallthru
        _
      %p352 = scmp.le.s32.totalorder 1, %s24
      %p353 = scmp.lt.s32.totalorder %s24, 3
      %p354 = pnand %p352, %p353
      %p355 = pneg %p354
      // Predicated region
      $region49: #{tpu_custom_call.1} parent=5 // pred_check
        _
      $region50: #{tpu_custom_call.1} parent=5 // pred_check_branch
        %357 = sbr.rel (%p354) target = $region52
      $region51: #{tpu_custom_call.1} parent=5 // pred_region
        %s358 = ssub.s32 %s24, 1
        %s359 = sand.u32 %s37, 1
        %s360 = scalar_lea.sflag [#allocation3], %s359
        %s361 = sand.u32 %s37, 1
        %s362 = smul.addr %s361, 32
        %s363 = scalar_lea.vmem [#allocation2], %s362
        // Predicated region
        $region53: #{tpu_custom_call.1} parent=51 // pred_check
          %p364 = pneg %p50
        $region54: #{tpu_custom_call.1} parent=51 // pred_check_branch
          %366 = sbr.rel (%p364) target = $region56
        $region55: #{tpu_custom_call.1} parent=51 // pred_region
          %367 = dma.done %s360, 512
        $region56: #{tpu_custom_call.1} parent=51 // pred_fallthru
          _
        // Predicated region
        $region57: #{tpu_custom_call.1} parent=51 // pred_check
          %p368 = pneg %p71
        $region58: #{tpu_custom_call.1} parent=51 // pred_check_branch
          %370 = sbr.rel (%p368) target = $region60
        $region59: #{tpu_custom_call.1} parent=51 // pred_region
          %371 = dma.done [#allocation6], 128
        $region60: #{tpu_custom_call.1} parent=51 // pred_fallthru
          _
        // Predicated region
        $region61: #{tpu_custom_call.1} parent=51 // pred_check
          %p372 = pneg %p92
        $region62: #{tpu_custom_call.1} parent=51 // pred_check_branch
          %374 = sbr.rel (%p372) target = $region64
        $region63: #{tpu_custom_call.1} parent=51 // pred_region
          %375 = dma.done [#allocation6], 256
        $region64: #{tpu_custom_call.1} parent=51 // pred_fallthru
          _
        // Predicated region
        $region65: #{tpu_custom_call.1} parent=51 // pred_check
          %p376 = pneg %p113
        $region66: #{tpu_custom_call.1} parent=51 // pred_check_branch
          %378 = sbr.rel (%p376) target = $region68
        $region67: #{tpu_custom_call.1} parent=51 // pred_region
          %379 = dma.done [#allocation9], 512
        $region68: #{tpu_custom_call.1} parent=51 // pred_fallthru
          _
        // Predicated region
        $region69: #{tpu_custom_call.1} parent=51 // pred_check
          %p380 = pneg %p134
        $region70: #{tpu_custom_call.1} parent=51 // pred_check_branch
          %382 = sbr.rel (%p380) target = $region72
        $region71: #{tpu_custom_call.1} parent=51 // pred_region
          %383 = dma.done [#allocation9], 256
        $region72: #{tpu_custom_call.1} parent=51 // pred_fallthru
          _
        // Predicated region
        $region73: #{tpu_custom_call.1} parent=51 // pred_check
          %p384 = pneg %p155
        $region74: #{tpu_custom_call.1} parent=51 // pred_check_branch
          %386 = sbr.rel (%p384) target = $region76
        $region75: #{tpu_custom_call.1} parent=51 // pred_region
          %387 = dma.done [#allocation12], 256
        $region76: #{tpu_custom_call.1} parent=51 // pred_fallthru
          _
        // Predicated region
        $region77: #{tpu_custom_call.1} parent=51 // pred_check
          %p388 = pneg %p176
        $region78: #{tpu_custom_call.1} parent=51 // pred_check_branch
          %390 = sbr.rel (%p388) target = $region80
        $region79: #{tpu_custom_call.1} parent=51 // pred_region
          %391 = dma.done [#allocation12], 512
        $region80: #{tpu_custom_call.1} parent=51 // pred_fallthru
          _
        // Predicated region
        $region81: #{tpu_custom_call.1} parent=51 // pred_check
          %p392 = pneg %p197
        $region82: #{tpu_custom_call.1} parent=51 // pred_check_branch
          %394 = sbr.rel (%p392) target = $region84
        $region83: #{tpu_custom_call.1} parent=51 // pred_region
          %395 = dma.done [#allocation15], 256
        $region84: #{tpu_custom_call.1} parent=51 // pred_fallthru
          _
        %s396 = sand.u32 %s37, 1
        %s397 = scalar_lea.sflag [#allocation3], %s396
        %s398 = sand.u32 %s37, 1
        %s399 = smul.addr %s398, 32
        %s400 = scalar_lea.vmem [#allocation2], %s399
        %p401 = pneg %p50
        %p402 = pneg %p47
        %p403 = pneg %p71
        %p404 = pneg %p68
        %p405 = pneg %p92
        %p406 = pneg %p89
        %p407 = pneg %p113
        %p408 = pneg %p110
        %p409 = pneg %p134
        %p410 = pneg %p131
        %p411 = pneg %p155
        %p412 = pneg %p152
        %p413 = pneg %p176
        %p414 = pneg %p173
        %p415 = pneg %p197
        %p416 = pneg %p194
        %p417 = pneg %p223
        %p418 = pneg %p220
        %s419 = sand.u32 %s210, 1
        %s420 = scalar_lea.sflag [#allocation4], %s419
        %s421 = sand.u32 %s210, 1
        %s422 = smul.addr %s421, 8
        %s423 = scalar_lea.vmem [#allocation16], %s422
        %s424 = smul.u32 8, %s29
        %v426 = vld [vmem:[#allocation5] sm:$0xff]
        %v427 = vld [vmem:[#allocation14] sm:$0xff]
        %v428 = vld [vmem:[#allocation14 + $0x8] sm:$0xf]
        %v429 = vld [vmem:[%s363] sm:$0xf]
        %v430 = vld [vmem:[%s363 + $0x4] sm:$0xf]
        %v431 = vld [vmem:[%s363 + $0x8] sm:$0xf]
        %v432 = vld [vmem:[%s363 + $0xc] sm:$0xf]
        %v433 = vld [vmem:[%s363 + $0x10] sm:$0xf]
        %v434 = vld [vmem:[%s363 + $0x14] sm:$0xf]
        %v435 = vld [vmem:[%s363 + $0x18] sm:$0xf]
        %v436 = vld [vmem:[%s363 + $0x1c] sm:$0xf]
        %v437 = vunpack.c.l.bf16 %v429
        %v438 = vunpack.c.l.bf16 %v430
        %v439 = vunpack.c.l.bf16 %v431
        %v440 = vunpack.c.l.bf16 %v432
        %v441 = vunpack.c.l.bf16 %v433
        %v442 = vunpack.c.l.bf16 %v434
        %v443 = vunpack.c.l.bf16 %v435
        %v444 = vunpack.c.l.bf16 %v436
        %446 = vset.pattern.permute.xlu0 0
        %447 = vperm.xlu0 %446, %v426
        %v448 = vpop.permute.xlu0 %447
        %v450 = vmul.f32 %v437, %v448
        %v451 = vmul.f32 %v438, %v448
        %v452 = vmul.f32 %v439, %v448
        %v453 = vmul.f32 %v440, %v448
        %v454 = vmul.f32 %v441, %v448
        %v455 = vmul.f32 %v442, %v448
        %v456 = vmul.f32 %v443, %v448
        %v457 = vmul.f32 %v444, %v448
        %458 = vset.pattern.permute.xlu0 1
        %459 = vperm.xlu0 %458, %v426
        %v460 = vpop.permute.xlu0 %459
        %v462 = vadd.f32 %v450, %v460
        %v463 = vadd.f32 %v451, %v460
        %v464 = vadd.f32 %v452, %v460
        %v465 = vadd.f32 %v453, %v460
        %v466 = vadd.f32 %v454, %v460
        %v467 = vadd.f32 %v455, %v460
        %v468 = vadd.f32 %v456, %v460
        %v469 = vadd.f32 %v457, %v460
        %v470 = vpack.c.bf16 %v463, %v462
        %v471 = vpack.c.bf16 %v465, %v464
        %v472 = vpack.c.bf16 %v467, %v466
        %v473 = vpack.c.bf16 %v469, %v468
        %v474 = vld [vmem:[#allocation8] sm:$0xf]
        %v475 = vld [vmem:[#allocation8 + $0x4] sm:$0xf]
        %v476 = vld [vmem:[#allocation8 + $0x8] sm:$0xf]
        %v477 = vld [vmem:[#allocation8 + $0xc] sm:$0xf]
        %v478 = vlaneseq
        %v479 = vshrl.u32 %v478, 7
        %v480 = vsub.s32 1, %v479
        %v481 = vrot.slane %v427, %v480
        %v486 = vunpack.c.l.b16 %v474
        %v487 = vunpack.c.l.b16 %v475
        %v488 = vunpack.c.l.b16 %v476
        %v489 = vunpack.c.l.b16 %v477
        %v490 = vpack.c.b16 %v487, %v486
        %v491 = vpack.c.b16 %v489, %v488
        %vm494 = vcmask 261120
        %v496 = vsel %vm494, %v470, 0
        %v499 = vsel %vm494, %v471, 0
        %v502 = vsel %vm494, %v472, 0
        %v505 = vsel %vm494, %v473, 0
        %507 = vmatprep.subr.bf16.mxu0 0
        %508 = vmatpush1.bf16.msra.mxu0 %v490
        %509 = vmatprep.subr.bf16.mxu0 0
        %510 = vmatpush1.bf16.msra.mxu0 %v491
        %511 = vmatprep.subr.bf16.mxu0 0
        %512 = vmatpush1.bf16.msra.mxu0 0
        %513 = vmatprep.subr.bf16.mxu0 0
        %514 = vmatpush1.bf16.msra.mxu0 0
        %515 = vmatprep.subr.bf16.mxu0 0
        %516 = vmatpush1.bf16.msra.mxu0 0
        %517 = vmatprep.subr.bf16.mxu0 0
        %518 = vmatpush1.bf16.msra.mxu0 0
        %519 = vmatprep.subr.bf16.mxu0 0
        %520 = vmatpush1.bf16.msra.mxu0 0
        %521 = vmatprep.subr.bf16.mxu0 0
        %522 = vmatpush1.bf16.msra.mxu0 0
        %523 = vmatprep.subr.bf16.mxu0 0
        %524 = vmatpush1.bf16.msra.mxu0 0
        %525 = vmatprep.subr.bf16.mxu0 0
        %526 = vmatpush1.bf16.msra.mxu0 0
        %527 = vmatprep.subr.bf16.mxu0 0
        %528 = vmatpush1.bf16.msra.mxu0 0
        %529 = vmatprep.subr.bf16.mxu0 0
        %530 = vmatpush1.bf16.msra.mxu0 0
        %531 = vmatprep.subr.bf16.mxu0 0
        %532 = vmatpush1.bf16.msra.mxu0 0
        %533 = vmatprep.subr.bf16.mxu0 0
        %534 = vmatpush1.bf16.msra.mxu0 0
        %535 = vmatprep.subr.bf16.mxu0 0
        %536 = vmatpush1.bf16.msra.mxu0 0
        %537 = vmatprep.subr.bf16.mxu0 0
        %538 = vmatpush1.bf16.msra.mxu0 0
        %539 = vmatprep.mubr.bf16.mxu0 0
        %540 = vmatmul.mubr.bf16.gmra.mrb[0].mxu0 %v496
        %v541 = vpop.f32.mrb[0].mxu0
        %v542 = vadd.f32 %v481, %v541
        %v543 = vpop.f32.mrb[0].mxu0
        %v544 = vpop.f32.mrb[0].mxu0
        %v545 = vadd.f32 %v481, %v544
        %v546 = vpop.f32.mrb[0].mxu0
        %547 = vmatprep.mubr.bf16.mxu0 0
        %548 = vmatmul.mubr.bf16.gmra.mrb[0].mxu0 %v499
        %v549 = vpop.f32.mrb[0].mxu0
        %v550 = vadd.f32 %v481, %v549
        %v551 = vpop.f32.mrb[0].mxu0
        %v552 = vpop.f32.mrb[0].mxu0
        %v553 = vadd.f32 %v481, %v552
        %v554 = vpop.f32.mrb[0].mxu0
        %555 = vmatprep.mubr.bf16.mxu0 0
        %556 = vmatmul.mubr.bf16.gmra.mrb[0].mxu0 %v502
        %v557 = vpop.f32.mrb[0].mxu0
        %v558 = vadd.f32 %v481, %v557
        %v559 = vpop.f32.mrb[0].mxu0
        %v560 = vpop.f32.mrb[0].mxu0
        %v561 = vadd.f32 %v481, %v560
        %v562 = vpop.f32.mrb[0].mxu0
        %563 = vmatprep.mubr.bf16.mxu0 0
        %564 = vmatmul.mubr.bf16.gmra.mrb[0].mxu0 %v505
        %v565 = vpop.f32.mrb[0].mxu0
        %v566 = vadd.f32 %v481, %v565
        %v567 = vpop.f32.mrb[0].mxu0
        %v568 = vpop.f32.mrb[0].mxu0
        %v569 = vadd.f32 %v481, %v568
        %v570 = vpop.f32.mrb[0].mxu0
        %571 = vdwg.mxu0
        %s572 = scalar_lea.vmem [#allocation8], 16
        %v573 = vld [vmem:[%s572] sm:$0xf]
        %v574 = vld [vmem:[%s572 + $0x4] sm:$0xf]
        %v575 = vld [vmem:[%s572 + $0x8] sm:$0xf]
        %v576 = vld [vmem:[%s572 + $0xc] sm:$0xf]
        %v577 = vlaneseq
        %v578 = vshrl.u32 %v577, 7
        %v579 = vsub.s32 2, %v578
        %v580 = vrot.slane %v427, %v579
        %v585 = vunpack.c.l.b16 %v573
        %v586 = vunpack.c.l.b16 %v574
        %v587 = vunpack.c.l.b16 %v575
        %v588 = vunpack.c.l.b16 %v576
        %v589 = vpack.c.b16 %v586, %v585
        %v590 = vpack.c.b16 %v588, %v587
        %593 = vmatprep.subr.bf16.mxu0 0
        %594 = vmatpush1.bf16.msra.mxu0 %v589
        %595 = vmatprep.subr.bf16.mxu0 0
        %596 = vmatpush1.bf16.msra.mxu0 %v590
        %597 = vmatprep.subr.bf16.mxu0 0
        %598 = vmatpush1.bf16.msra.mxu0 0
        %599 = vmatprep.subr.bf16.mxu0 0
        %600 = vmatpush1.bf16.msra.mxu0 0
        %601 = vmatprep.subr.bf16.mxu0 0
        %602 = vmatpush1.bf16.msra.mxu0 0
        %603 = vmatprep.subr.bf16.mxu0 0
        %604 = vmatpush1.bf16.msra.mxu0 0
        %605 = vmatprep.subr.bf16.mxu0 0
        %606 = vmatpush1.bf16.msra.mxu0 0
        %607 = vmatprep.subr.bf16.mxu0 0
        %608 = vmatpush1.bf16.msra.mxu0 0
        %609 = vmatprep.subr.bf16.mxu0 0
        %610 = vmatpush1.bf16.msra.mxu0 0
        %611 = vmatprep.subr.bf16.mxu0 0
        %612 = vmatpush1.bf16.msra.mxu0 0
        %613 = vmatprep.subr.bf16.mxu0 0
        %614 = vmatpush1.bf16.msra.mxu0 0
        %615 = vmatprep.subr.bf16.mxu0 0
        %616 = vmatpush1.bf16.msra.mxu0 0
        %617 = vmatprep.subr.bf16.mxu0 0
        %618 = vmatpush1.bf16.msra.mxu0 0
        %619 = vmatprep.subr.bf16.mxu0 0
        %620 = vmatpush1.bf16.msra.mxu0 0
        %621 = vmatprep.subr.bf16.mxu0 0
        %622 = vmatpush1.bf16.msra.mxu0 0
        %623 = vmatprep.subr.bf16.mxu0 0
        %624 = vmatpush1.bf16.msra.mxu0 0
        %625 = vmatprep.mubr.bf16.mxu0 0
        %626 = vmatmul.mubr.bf16.gmra.mrb[0].mxu0 %v496
        %v627 = vpop.f32.mrb[0].mxu0
        %v628 = vadd.f32 %v580, %v627
        %v629 = vpop.f32.mrb[0].mxu0
        %v630 = vpop.f32.mrb[0].mxu0
        %v631 = vadd.f32 %v580, %v630
        %v632 = vpop.f32.mrb[0].mxu0
        %633 = vmatprep.mubr.bf16.mxu0 0
        %634 = vmatmul.mubr.bf16.gmra.mrb[0].mxu0 %v499
        %v635 = vpop.f32.mrb[0].mxu0
        %v636 = vadd.f32 %v580, %v635
        %v637 = vpop.f32.mrb[0].mxu0
        %v638 = vpop.f32.mrb[0].mxu0
        %v639 = vadd.f32 %v580, %v638
        %v640 = vpop.f32.mrb[0].mxu0
        %641 = vmatprep.mubr.bf16.mxu0 0
        %642 = vmatmul.mubr.bf16.gmra.mrb[0].mxu0 %v502
        %v643 = vpop.f32.mrb[0].mxu0
        %v644 = vadd.f32 %v580, %v643
        %v645 = vpop.f32.mrb[0].mxu0
        %v646 = vpop.f32.mrb[0].mxu0
        %v647 = vadd.f32 %v580, %v646
        %v648 = vpop.f32.mrb[0].mxu0
        %649 = vmatprep.mubr.bf16.mxu0 0
        %650 = vmatmul.mubr.bf16.gmra.mrb[0].mxu0 %v505
        %v651 = vpop.f32.mrb[0].mxu0
        %v652 = vadd.f32 %v580, %v651
        %v653 = vpop.f32.mrb[0].mxu0
        %v654 = vpop.f32.mrb[0].mxu0
        %v655 = vadd.f32 %v580, %v654
        %v656 = vpop.f32.mrb[0].mxu0
        %657 = vdwg.mxu0
        %v658 = vpack.c.bf16 %v462, %v462
        %v659 = vpack.c.bf16 %v463, %v463
        %v660 = vpack.c.bf16 %v464, %v464
        %v661 = vpack.c.bf16 %v465, %v465
        %v662 = vpack.c.bf16 %v466, %v466
        %v663 = vpack.c.bf16 %v467, %v467
        %v664 = vpack.c.bf16 %v468, %v468
        %v665 = vpack.c.bf16 %v469, %v469
        %v666 = vld [vmem:[#allocation7] sm:$0xf]
        %v667 = vld [vmem:[#allocation7 + $0x4] sm:$0xf]
        %v668 = vld [vmem:[#allocation7 + $0x8] sm:$0xf]
        %v669 = vld [vmem:[#allocation7 + $0xc] sm:$0xf]
        %v670 = vlaneseq
        %v671 = vshrl.u32 %v670, 7
        %v672 = vsub.s32 0, %v671
        %v673 = vrot.slane %v427, %v672
        %v682 = vunpack.c.l.b16 %v658
        %v683 = vunpack.c.l.b16 %v659
        %v684 = vunpack.c.l.b16 %v660
        %v685 = vunpack.c.l.b16 %v661
        %v686 = vunpack.c.l.b16 %v662
        %v687 = vunpack.c.l.b16 %v663
        %v688 = vunpack.c.l.b16 %v664
        %v689 = vunpack.c.l.b16 %v665
        %v690 = vrot.slane %v683, 7
        %vm691 = vcmask 1041409
        %v692 = vsel %vm691, %v690, %v682
        %v693 = vrot.slane %v684, 6
        %vm694 = vcmask 1042434
        %v695 = vsel %vm694, %v693, %v692
        %v696 = vrot.slane %v685, 5
        %vm697 = vcmask 1043459
        %v698 = vsel %vm697, %v696, %v695
        %v699 = vrot.slane %v686, 4
        %vm700 = vcmask 1044484
        %v701 = vsel %vm700, %v699, %v698
        %v702 = vrot.slane %v687, 3
        %vm703 = vcmask 1045509
        %v704 = vsel %vm703, %v702, %v701
        %v705 = vrot.slane %v688, 2
        %vm706 = vcmask 1046534
        %v707 = vsel %vm706, %v705, %v704
        %v708 = vrot.slane %v689, 1
        %vm709 = vcmask 1047559
        %v710 = vsel %vm709, %v708, %v707
        %v711 = vpack.c.b16 %v710, %v710
        %v716 = vunpack.c.l.b16 %v666
        %v717 = vunpack.c.l.b16 %v667
        %v718 = vunpack.c.l.b16 %v668
        %v719 = vunpack.c.l.b16 %v669
        %v720 = vpack.c.b16 %v717, %v716
        %v721 = vpack.c.b16 %v719, %v718
        %v725 = vsel %vm494, %v711, 0
        %727 = vmatprep.subr.bf16.mxu0 0
        %728 = vmatpush1.bf16.msra.mxu0 %v720
        %729 = vmatprep.subr.bf16.mxu0 0
        %730 = vmatpush1.bf16.msra.mxu0 %v721
        %731 = vmatprep.subr.bf16.mxu0 0
        %732 = vmatpush1.bf16.msra.mxu0 0
        %733 = vmatprep.subr.bf16.mxu0 0
        %734 = vmatpush1.bf16.msra.mxu0 0
        %735 = vmatprep.subr.bf16.mxu0 0
        %736 = vmatpush1.bf16.msra.mxu0 0
        %737 = vmatprep.subr.bf16.mxu0 0
        %738 = vmatpush1.bf16.msra.mxu0 0
        %739 = vmatprep.subr.bf16.mxu0 0
        %740 = vmatpush1.bf16.msra.mxu0 0
        %741 = vmatprep.subr.bf16.mxu0 0
        %742 = vmatpush1.bf16.msra.mxu0 0
        %743 = vmatprep.subr.bf16.mxu0 0
        %744 = vmatpush1.bf16.msra.mxu0 0
        %745 = vmatprep.subr.bf16.mxu0 0
        %746 = vmatpush1.bf16.msra.mxu0 0
        %747 = vmatprep.subr.bf16.mxu0 0
        %748 = vmatpush1.bf16.msra.mxu0 0
        %749 = vmatprep.subr.bf16.mxu0 0
        %750 = vmatpush1.bf16.msra.mxu0 0
        %751 = vmatprep.subr.bf16.mxu0 0
        %752 = vmatpush1.bf16.msra.mxu0 0
        %753 = vmatprep.subr.bf16.mxu0 0
        %754 = vmatpush1.bf16.msra.mxu0 0
        %755 = vmatprep.subr.bf16.mxu0 0
        %756 = vmatpush1.bf16.msra.mxu0 0
        %757 = vmatprep.subr.bf16.mxu0 0
        %758 = vmatpush1.bf16.msra.mxu0 0
        %759 = vmatprep.mubr.bf16.mxu0 0
        %760 = vmatmul.mubr.bf16.gmra.mrb[0].mxu0 %v725
        %v761 = vpop.f32.mrb[0].mxu0
        %v762 = vadd.f32 %v673, %v761
        %v763 = vpop.f32.mrb[0].mxu0
        %v764 = vpop.f32.mrb[0].mxu0
        %v765 = vpop.f32.mrb[0].mxu0
        %766 = vdwg.mxu0
        %v768 = vcombine.high %v762, %v762
        %v770 = vunpack.c.l.s4 1966171168
        %v771 = vunpack.c.0.s8 %v770
        %v772 = vlaneseq
        %v773 = vshrl.u32 %v772, 7
        %v774 = vsub.s32 %v771, %v773
        %v775 = vrot.slane %v762, %v774
        %v777 = vunpack.c.l.s4 1966171168
        %v778 = vunpack.c.0.s8 %v777
        %v779 = vlaneseq
        %v780 = vshrl.u32 %v779, 7
        %v781 = vsub.s32 %v778, %v780
        %v782 = vrot.slane %v768, %v781
        %v783 = vcombine.high %v775, %v775
        %v784 = vcombine.high %v782, %v782
        %v786 = vunpack.c.l.s4 1966171168
        %v787 = vunpack.c.0.s8 %v786
        %v788 = vlaneseq
        %v789 = vshrl.u32 %v788, 7
        %v790 = vsub.s32 %v787, %v789
        %v791 = vrot.slane %v775, %v790
        %v793 = vunpack.c.l.s4 1966171168
        %v794 = vunpack.c.0.s8 %v793
        %v795 = vlaneseq
        %v796 = vshrl.u32 %v795, 7
        %v797 = vsub.s32 %v794, %v796
        %v798 = vrot.slane %v782, %v797
        %v800 = vunpack.c.l.s4 1966171168
        %v801 = vunpack.c.0.s8 %v800
        %v802 = vlaneseq
        %v803 = vshrl.u32 %v802, 7
        %v804 = vsub.s32 %v801, %v803
        %v805 = vrot.slane %v783, %v804
        %v807 = vunpack.c.l.s4 1966171168
        %v808 = vunpack.c.0.s8 %v807
        %v809 = vlaneseq
        %v810 = vshrl.u32 %v809, 7
        %v811 = vsub.s32 %v808, %v810
        %v812 = vrot.slane %v784, %v811
        %v813 = vcombine.high %v791, %v791
        %v814 = vcombine.high %v798, %v798
        %v815 = vcombine.high %v805, %v805
        %v816 = vcombine.high %v812, %v812
        %v825 = vlaneseq
        %v826 = vshrl.u32 %v825, 7
        %v827 = vsub.s32 0, %v826
        %v828 = vrot.slane %v791, %v827
        %v829 = vlaneseq
        %v830 = vshrl.u32 %v829, 7
        %v831 = vsub.s32 0, %v830
        %v832 = vrot.slane %v805, %v831
        %v833 = vlaneseq
        %v834 = vshrl.u32 %v833, 7
        %v835 = vsub.s32 0, %v834
        %v836 = vrot.slane %v813, %v835
        %v837 = vlaneseq
        %v838 = vshrl.u32 %v837, 7
        %v839 = vsub.s32 0, %v838
        %v840 = vrot.slane %v815, %v839
        %v841 = vlaneseq
        %v842 = vshrl.u32 %v841, 7
        %v843 = vsub.s32 0, %v842
        %v844 = vrot.slane %v798, %v843
        %v845 = vlaneseq
        %v846 = vshrl.u32 %v845, 7
        %v847 = vsub.s32 0, %v846
        %v848 = vrot.slane %v812, %v847
        %v849 = vlaneseq
        %v850 = vshrl.u32 %v849, 7
        %v851 = vsub.s32 0, %v850
        %v852 = vrot.slane %v814, %v851
        %v853 = vlaneseq
        %v854 = vshrl.u32 %v853, 7
        %v855 = vsub.s32 0, %v854
        %v856 = vrot.slane %v816, %v855
        %v865 = vmul.f32 %v828, %v542
        %v866 = vmul.f32 %v832, %v545
        %v867 = vmul.f32 %v836, %v550
        %v868 = vmul.f32 %v840, %v553
        %v869 = vmul.f32 %v844, %v558
        %v870 = vmul.f32 %v848, %v561
        %v871 = vmul.f32 %v852, %v566
        %v872 = vmul.f32 %v856, %v569
        %v873 = vsel %vm494, %v865, 0.0
        %874 = vadd.xlane.f32.xlu0 %v873
        %v875 = vpop.xlane.xlu0 %874
        %v876 = vsel %vm494, %v866, 0.0
        %877 = vadd.xlane.f32.xlu0 %v876
        %v878 = vpop.xlane.xlu0 %877
        %v879 = vsel %vm494, %v867, 0.0
        %880 = vadd.xlane.f32.xlu0 %v879
        %v881 = vpop.xlane.xlu0 %880
        %v882 = vsel %vm494, %v868, 0.0
        %883 = vadd.xlane.f32.xlu0 %v882
        %v884 = vpop.xlane.xlu0 %883
        %v885 = vsel %vm494, %v869, 0.0
        %886 = vadd.xlane.f32.xlu0 %v885
        %v887 = vpop.xlane.xlu0 %886
        %v888 = vsel %vm494, %v870, 0.0
        %889 = vadd.xlane.f32.xlu0 %v888
        %v890 = vpop.xlane.xlu0 %889
        %v891 = vsel %vm494, %v871, 0.0
        %892 = vadd.xlane.f32.xlu0 %v891
        %v893 = vpop.xlane.xlu0 %892
        %v894 = vsel %vm494, %v872, 0.0
        %895 = vadd.xlane.f32.xlu0 %v894
        %v896 = vpop.xlane.xlu0 %895
        %v897 = vmul.f32 %v875, 0.17677669
        %v898 = vmul.f32 %v878, 0.17677669
        %v899 = vmul.f32 %v881, 0.17677669
        %v900 = vmul.f32 %v884, 0.17677669
        %v901 = vmul.f32 %v887, 0.17677669
        %v902 = vmul.f32 %v890, 0.17677669
        %v903 = vmul.f32 %v893, 0.17677669
        %v904 = vmul.f32 %v896, 0.17677669
        %v907 = vunpack.c.l.s4 1966171168
        %v908 = vunpack.c.0.s8 %v907
        %v909 = vlaneseq
        %v910 = vshrl.u32 %v909, 7
        %v911 = vsub.s32 %v908, %v910
        %v912 = vrot.slane %v428, %v911
        %v914 = vunpack.c.l.s4 1966171168
        %v915 = vunpack.c.0.s8 %v914
        %v916 = vlaneseq
        %v917 = vshrl.u32 %v916, 7
        %v918 = vsub.s32 %v915, %v917
        %v919 = vrot.slane %v912, %v918
        %v920 = vcombine.high %v919, %v919
        %v922 = vmul.f32 %v791, %v920
        %v923 = vmul.f32 %v805, %v920
        %v924 = vmul.f32 %v813, %v920
        %v925 = vmul.f32 %v815, %v920
        %v926 = vmul.f32 %v798, %v920
        %v927 = vmul.f32 %v812, %v920
        %v928 = vmul.f32 %v814, %v920
        %v929 = vmul.f32 %v816, %v920
        %vm930 = vcmask 253952
        %v931 = vsel %vm930, %v922, 0.0
        %932 = vadd.xlane.f32.xlu0 %v931
        %v933 = vpop.xlane.xlu0 %932
        %v934 = vsel %vm930, %v923, 0.0
        %935 = vadd.xlane.f32.xlu0 %v934
        %v936 = vpop.xlane.xlu0 %935
        %v937 = vsel %vm930, %v924, 0.0
        %938 = vadd.xlane.f32.xlu0 %v937
        %v939 = vpop.xlane.xlu0 %938
        %v940 = vsel %vm930, %v925, 0.0
        %941 = vadd.xlane.f32.xlu0 %v940
        %v942 = vpop.xlane.xlu0 %941
        %v943 = vsel %vm930, %v926, 0.0
        %944 = vadd.xlane.f32.xlu0 %v943
        %v945 = vpop.xlane.xlu0 %944
        %v946 = vsel %vm930, %v927, 0.0
        %947 = vadd.xlane.f32.xlu0 %v946
        %v948 = vpop.xlane.xlu0 %947
        %v949 = vsel %vm930, %v928, 0.0
        %950 = vadd.xlane.f32.xlu0 %v949
        %v951 = vpop.xlane.xlu0 %950
        %v952 = vsel %vm930, %v929, 0.0
        %953 = vadd.xlane.f32.xlu0 %v952
        %v954 = vpop.xlane.xlu0 %953
        %v955 = vmul.f32 %v933, 0.17677669
        %v956 = vmul.f32 %v936, 0.17677669
        %v957 = vmul.f32 %v939, 0.17677669
        %v958 = vmul.f32 %v942, 0.17677669
        %v959 = vmul.f32 %v945, 0.17677669
        %v960 = vmul.f32 %v948, 0.17677669
        %v961 = vmul.f32 %v951, 0.17677669
        %v962 = vmul.f32 %v954, 0.17677669
        %v963 = vrot.slane %v897, 4
        %v964 = vmax.f32 %v897, %v963
        %v965 = vrot.slane %v964, 2
        %v966 = vmax.f32 %v964, %v965
        %v967 = vrot.slane %v966, 1
        %v968 = vmax.f32 %v966, %v967
        %v969 = vrot.slane %v898, 4
        %v970 = vmax.f32 %v898, %v969
        %v971 = vrot.slane %v970, 2
        %v972 = vmax.f32 %v970, %v971
        %v973 = vrot.slane %v972, 1
        %v974 = vmax.f32 %v972, %v973
        %v975 = vrot.slane %v899, 4
        %v976 = vmax.f32 %v899, %v975
        %v977 = vrot.slane %v976, 2
        %v978 = vmax.f32 %v976, %v977
        %v979 = vrot.slane %v978, 1
        %v980 = vmax.f32 %v978, %v979
        %v981 = vrot.slane %v900, 4
        %v982 = vmax.f32 %v900, %v981
        %v983 = vrot.slane %v982, 2
        %v984 = vmax.f32 %v982, %v983
        %v985 = vrot.slane %v984, 1
        %v986 = vmax.f32 %v984, %v985
        %v987 = vrot.slane %v901, 4
        %v988 = vmax.f32 %v901, %v987
        %v989 = vrot.slane %v988, 2
        %v990 = vmax.f32 %v988, %v989
        %v991 = vrot.slane %v990, 1
        %v992 = vmax.f32 %v990, %v991
        %v993 = vrot.slane %v902, 4
        %v994 = vmax.f32 %v902, %v993
        %v995 = vrot.slane %v994, 2
        %v996 = vmax.f32 %v994, %v995
        %v997 = vrot.slane %v996, 1
        %v998 = vmax.f32 %v996, %v997
        %v999 = vrot.slane %v903, 4
        %v1000 = vmax.f32 %v903, %v999
        %v1001 = vrot.slane %v1000, 2
        %v1002 = vmax.f32 %v1000, %v1001
        %v1003 = vrot.slane %v1002, 1
        %v1004 = vmax.f32 %v1002, %v1003
        %v1005 = vrot.slane %v904, 4
        %v1006 = vmax.f32 %v904, %v1005
        %v1007 = vrot.slane %v1006, 2
        %v1008 = vmax.f32 %v1006, %v1007
        %v1009 = vrot.slane %v1008, 1
        %v1010 = vmax.f32 %v1008, %v1009
        %v1011 = vmax.f32 %v968, %v955
        %v1012 = vmax.f32 %v974, %v956
        %v1013 = vmax.f32 %v980, %v957
        %v1014 = vmax.f32 %v986, %v958
        %v1015 = vmax.f32 %v992, %v959
        %v1016 = vmax.f32 %v998, %v960
        %v1017 = vmax.f32 %v1004, %v961
        %v1018 = vmax.f32 %v1010, %v962
        %v1019 = vlaneseq
        %v1020 = vshrl.u32 %v1019, 7
        %v1021 = vsub.s32 0, %v1020
        %v1022 = vrot.slane %v1011, %v1021
        %v1023 = vlaneseq
        %v1024 = vshrl.u32 %v1023, 7
        %v1025 = vsub.s32 0, %v1024
        %v1026 = vrot.slane %v1012, %v1025
        %v1027 = vlaneseq
        %v1028 = vshrl.u32 %v1027, 7
        %v1029 = vsub.s32 0, %v1028
        %v1030 = vrot.slane %v1013, %v1029
        %v1031 = vlaneseq
        %v1032 = vshrl.u32 %v1031, 7
        %v1033 = vsub.s32 0, %v1032
        %v1034 = vrot.slane %v1014, %v1033
        %v1035 = vlaneseq
        %v1036 = vshrl.u32 %v1035, 7
        %v1037 = vsub.s32 0, %v1036
        %v1038 = vrot.slane %v1015, %v1037
        %v1039 = vlaneseq
        %v1040 = vshrl.u32 %v1039, 7
        %v1041 = vsub.s32 0, %v1040
        %v1042 = vrot.slane %v1016, %v1041
        %v1043 = vlaneseq
        %v1044 = vshrl.u32 %v1043, 7
        %v1045 = vsub.s32 0, %v1044
        %v1046 = vrot.slane %v1017, %v1045
        %v1047 = vlaneseq
        %v1048 = vshrl.u32 %v1047, 7
        %v1049 = vsub.s32 0, %v1048
        %v1050 = vrot.slane %v1018, %v1049
        %v1051 = vsub.f32 %v897, %v1022
        %v1052 = vsub.f32 %v898, %v1026
        %v1053 = vsub.f32 %v899, %v1030
        %v1054 = vsub.f32 %v900, %v1034
        %v1055 = vsub.f32 %v901, %v1038
        %v1056 = vsub.f32 %v902, %v1042
        %v1057 = vsub.f32 %v903, %v1046
        %v1058 = vsub.f32 %v904, %v1050
        %v1059 = vmul.f32 %v1051, 1.442695
        %v1060 = vpow.pop %v1059
        %v1061 = vmul.f32 %v1052, 1.442695
        %v1062 = vpow.pop %v1061
        %v1063 = vmul.f32 %v1053, 1.442695
        %v1064 = vpow.pop %v1063
        %v1065 = vmul.f32 %v1054, 1.442695
        %v1066 = vpow.pop %v1065
        %v1067 = vmul.f32 %v1055, 1.442695
        %v1068 = vpow.pop %v1067
        %v1069 = vmul.f32 %v1056, 1.442695
        %v1070 = vpow.pop %v1069
        %v1071 = vmul.f32 %v1057, 1.442695
        %v1072 = vpow.pop %v1071
        %v1073 = vmul.f32 %v1058, 1.442695
        %v1074 = vpow.pop %v1073
        %v1075 = vsub.f32 %v955, %v1011
        %v1076 = vsub.f32 %v956, %v1012
        %v1077 = vsub.f32 %v957, %v1013
        %v1078 = vsub.f32 %v958, %v1014
        %v1079 = vsub.f32 %v959, %v1015
        %v1080 = vsub.f32 %v960, %v1016
        %v1081 = vsub.f32 %v961, %v1017
        %v1082 = vsub.f32 %v962, %v1018
        %v1083 = vmul.f32 %v1075, 1.442695
        %v1084 = vpow.pop %v1083
        %v1085 = vmul.f32 %v1076, 1.442695
        %v1086 = vpow.pop %v1085
        %v1087 = vmul.f32 %v1077, 1.442695
        %v1088 = vpow.pop %v1087
        %v1089 = vmul.f32 %v1078, 1.442695
        %v1090 = vpow.pop %v1089
        %v1091 = vmul.f32 %v1079, 1.442695
        %v1092 = vpow.pop %v1091
        %v1093 = vmul.f32 %v1080, 1.442695
        %v1094 = vpow.pop %v1093
        %v1095 = vmul.f32 %v1081, 1.442695
        %v1096 = vpow.pop %v1095
        %v1097 = vmul.f32 %v1082, 1.442695
        %v1098 = vpow.pop %v1097
        %v1099 = vrot.slane %v1060, 4
        %v1100 = vadd.f32 %v1060, %v1099
        %v1101 = vrot.slane %v1100, 2
        %v1102 = vadd.f32 %v1100, %v1101
        %v1103 = vrot.slane %v1102, 1
        %v1104 = vadd.f32 %v1102, %v1103
        %v1105 = vrot.slane %v1062, 4
        %v1106 = vadd.f32 %v1062, %v1105
        %v1107 = vrot.slane %v1106, 2
        %v1108 = vadd.f32 %v1106, %v1107
        %v1109 = vrot.slane %v1108, 1
        %v1110 = vadd.f32 %v1108, %v1109
        %v1111 = vrot.slane %v1064, 4
        %v1112 = vadd.f32 %v1064, %v1111
        %v1113 = vrot.slane %v1112, 2
        %v1114 = vadd.f32 %v1112, %v1113
        %v1115 = vrot.slane %v1114, 1
        %v1116 = vadd.f32 %v1114, %v1115
        %v1117 = vrot.slane %v1066, 4
        %v1118 = vadd.f32 %v1066, %v1117
        %v1119 = vrot.slane %v1118, 2
        %v1120 = vadd.f32 %v1118, %v1119
        %v1121 = vrot.slane %v1120, 1
        %v1122 = vadd.f32 %v1120, %v1121
        %v1123 = vrot.slane %v1068, 4
        %v1124 = vadd.f32 %v1068, %v1123
        %v1125 = vrot.slane %v1124, 2
        %v1126 = vadd.f32 %v1124, %v1125
        %v1127 = vrot.slane %v1126, 1
        %v1128 = vadd.f32 %v1126, %v1127
        %v1129 = vrot.slane %v1070, 4
        %v1130 = vadd.f32 %v1070, %v1129
        %v1131 = vrot.slane %v1130, 2
        %v1132 = vadd.f32 %v1130, %v1131
        %v1133 = vrot.slane %v1132, 1
        %v1134 = vadd.f32 %v1132, %v1133
        %v1135 = vrot.slane %v1072, 4
        %v1136 = vadd.f32 %v1072, %v1135
        %v1137 = vrot.slane %v1136, 2
        %v1138 = vadd.f32 %v1136, %v1137
        %v1139 = vrot.slane %v1138, 1
        %v1140 = vadd.f32 %v1138, %v1139
        %v1141 = vrot.slane %v1074, 4
        %v1142 = vadd.f32 %v1074, %v1141
        %v1143 = vrot.slane %v1142, 2
        %v1144 = vadd.f32 %v1142, %v1143
        %v1145 = vrot.slane %v1144, 1
        %v1146 = vadd.f32 %v1144, %v1145
        %v1147 = vadd.f32 %v1104, %v1084
        %v1148 = vadd.f32 %v1110, %v1086
        %v1149 = vadd.f32 %v1116, %v1088
        %v1150 = vadd.f32 %v1122, %v1090
        %v1151 = vadd.f32 %v1128, %v1092
        %v1152 = vadd.f32 %v1134, %v1094
        %v1153 = vadd.f32 %v1140, %v1096
        %v1154 = vadd.f32 %v1146, %v1098
        %v1155 = vrcp.pop %v1147
        %v1156 = vrcp.pop %v1148
        %v1157 = vrcp.pop %v1149
        %v1158 = vrcp.pop %v1150
        %v1159 = vrcp.pop %v1151
        %v1160 = vrcp.pop %v1152
        %v1161 = vrcp.pop %v1153
        %v1162 = vrcp.pop %v1154
        %v1163 = vmul.f32 %v1060, %v628
        %v1164 = vmul.f32 %v1062, %v631
        %v1165 = vmul.f32 %v1064, %v636
        %v1166 = vmul.f32 %v1066, %v639
        %v1167 = vmul.f32 %v1068, %v644
        %v1168 = vmul.f32 %v1070, %v647
        %v1169 = vmul.f32 %v1072, %v652
        %v1170 = vmul.f32 %v1074, %v655
        %v1171 = vsel %vm494, %v1163, 0.0
        %v1172 = vrot.slane %v1171, 4
        %v1173 = vadd.f32 %v1171, %v1172
        %v1174 = vrot.slane %v1173, 2
        %v1175 = vadd.f32 %v1173, %v1174
        %v1176 = vrot.slane %v1175, 1
        %v1177 = vadd.f32 %v1175, %v1176
        %v1178 = vsel %vm494, %v1164, 0.0
        %v1179 = vrot.slane %v1178, 4
        %v1180 = vadd.f32 %v1178, %v1179
        %v1181 = vrot.slane %v1180, 2
        %v1182 = vadd.f32 %v1180, %v1181
        %v1183 = vrot.slane %v1182, 1
        %v1184 = vadd.f32 %v1182, %v1183
        %v1185 = vsel %vm494, %v1165, 0.0
        %v1186 = vrot.slane %v1185, 4
        %v1187 = vadd.f32 %v1185, %v1186
        %v1188 = vrot.slane %v1187, 2
        %v1189 = vadd.f32 %v1187, %v1188
        %v1190 = vrot.slane %v1189, 1
        %v1191 = vadd.f32 %v1189, %v1190
        %v1192 = vsel %vm494, %v1166, 0.0
        %v1193 = vrot.slane %v1192, 4
        %v1194 = vadd.f32 %v1192, %v1193
        %v1195 = vrot.slane %v1194, 2
        %v1196 = vadd.f32 %v1194, %v1195
        %v1197 = vrot.slane %v1196, 1
        %v1198 = vadd.f32 %v1196, %v1197
        %v1199 = vsel %vm494, %v1167, 0.0
        %v1200 = vrot.slane %v1199, 4
        %v1201 = vadd.f32 %v1199, %v1200
        %v1202 = vrot.slane %v1201, 2
        %v1203 = vadd.f32 %v1201, %v1202
        %v1204 = vrot.slane %v1203, 1
        %v1205 = vadd.f32 %v1203, %v1204
        %v1206 = vsel %vm494, %v1168, 0.0
        %v1207 = vrot.slane %v1206, 4
        %v1208 = vadd.f32 %v1206, %v1207
        %v1209 = vrot.slane %v1208, 2
        %v1210 = vadd.f32 %v1208, %v1209
        %v1211 = vrot.slane %v1210, 1
        %v1212 = vadd.f32 %v1210, %v1211
        %v1213 = vsel %vm494, %v1169, 0.0
        %v1214 = vrot.slane %v1213, 4
        %v1215 = vadd.f32 %v1213, %v1214
        %v1216 = vrot.slane %v1215, 2
        %v1217 = vadd.f32 %v1215, %v1216
        %v1218 = vrot.slane %v1217, 1
        %v1219 = vadd.f32 %v1217, %v1218
        %v1220 = vsel %vm494, %v1170, 0.0
        %v1221 = vrot.slane %v1220, 4
        %v1222 = vadd.f32 %v1220, %v1221
        %v1223 = vrot.slane %v1222, 2
        %v1224 = vadd.f32 %v1222, %v1223
        %v1225 = vrot.slane %v1224, 1
        %v1226 = vadd.f32 %v1224, %v1225
        %v1227 = vlaneseq
        %v1228 = vshrl.u32 %v1227, 7
        %v1229 = vsub.s32 3, %v1228
        %v1230 = vrot.slane %v428, %v1229
        %v1231 = vmul.f32 %v1084, %v1230
        %v1232 = vmul.f32 %v1086, %v1230
        %v1233 = vmul.f32 %v1088, %v1230
        %v1234 = vmul.f32 %v1090, %v1230
        %v1235 = vmul.f32 %v1092, %v1230
        %v1236 = vmul.f32 %v1094, %v1230
        %v1237 = vmul.f32 %v1096, %v1230
        %v1238 = vmul.f32 %v1098, %v1230
        %v1239 = vadd.f32 %v1177, %v1231
        %v1240 = vadd.f32 %v1184, %v1232
        %v1241 = vadd.f32 %v1191, %v1233
        %v1242 = vadd.f32 %v1198, %v1234
        %v1243 = vadd.f32 %v1205, %v1235
        %v1244 = vadd.f32 %v1212, %v1236
        %v1245 = vadd.f32 %v1219, %v1237
        %v1246 = vadd.f32 %v1226, %v1238
        %v1247 = vmul.f32 %v1239, %v1155
        %v1248 = vmul.f32 %v1240, %v1156
        %v1249 = vmul.f32 %v1241, %v1157
        %v1250 = vmul.f32 %v1242, %v1158
        %v1251 = vmul.f32 %v1243, %v1159
        %v1252 = vmul.f32 %v1244, %v1160
        %v1253 = vmul.f32 %v1245, %v1161
        %v1254 = vmul.f32 %v1246, %v1162
        %v1255 = vpack.c.bf16 %v1247, %v1247
        %v1256 = vpack.c.bf16 %v1248, %v1248
        %v1257 = vpack.c.bf16 %v1249, %v1249
        %v1258 = vpack.c.bf16 %v1250, %v1250
        %v1259 = vpack.c.bf16 %v1251, %v1251
        %v1260 = vpack.c.bf16 %v1252, %v1252
        %v1261 = vpack.c.bf16 %v1253, %v1253
        %v1262 = vpack.c.bf16 %v1254, %v1254
        %v1263 = vld [vmem:[#allocation10] sm:$0xf]
        %v1264 = vld [vmem:[#allocation10 + $0x4] sm:$0xf]
        %v1265 = vld [vmem:[#allocation10 + $0x8] sm:$0xf]
        %v1266 = vld [vmem:[#allocation10 + $0xc] sm:$0xf]
        %v1267 = vlaneseq
        %v1268 = vshrl.u32 %v1267, 7
        %v1269 = vsub.s32 3, %v1268
        %v1270 = vrot.slane %v427, %v1269
        %v1279 = vunpack.c.l.b16 %v1255
        %v1280 = vunpack.c.l.b16 %v1256
        %v1281 = vunpack.c.l.b16 %v1257
        %v1282 = vunpack.c.l.b16 %v1258
        %v1283 = vunpack.c.l.b16 %v1259
        %v1284 = vunpack.c.l.b16 %v1260
        %v1285 = vunpack.c.l.b16 %v1261
        %v1286 = vunpack.c.l.b16 %v1262
        %v1287 = vrot.slane %v1280, 7
        %v1288 = vsel %vm691, %v1287, %v1279
        %v1289 = vrot.slane %v1281, 6
        %v1290 = vsel %vm694, %v1289, %v1288
        %v1291 = vrot.slane %v1282, 5
        %v1292 = vsel %vm697, %v1291, %v1290
        %v1293 = vrot.slane %v1283, 4
        %v1294 = vsel %vm700, %v1293, %v1292
        %v1295 = vrot.slane %v1284, 3
        %v1296 = vsel %vm703, %v1295, %v1294
        %v1297 = vrot.slane %v1285, 2
        %v1298 = vsel %vm706, %v1297, %v1296
        %v1299 = vrot.slane %v1286, 1
        %v1300 = vsel %vm709, %v1299, %v1298
        %v1301 = vpack.c.b16 %v1300, %v1300
        %v1306 = vunpack.c.l.b16 %v1263
        %v1307 = vunpack.c.l.b16 %v1264
        %v1308 = vunpack.c.l.b16 %v1265
        %v1309 = vunpack.c.l.b16 %v1266
        %v1310 = vpack.c.b16 %v1307, %v1306
        %v1311 = vpack.c.b16 %v1309, %v1308
        %v1315 = vsel %vm494, %v1301, 0
        %1317 = vmatprep.subr.bf16.mxu0 0
        %1318 = vmatpush1.bf16.msra.mxu0 %v1310
        %1319 = vmatprep.subr.bf16.mxu0 0
        %1320 = vmatpush1.bf16.msra.mxu0 %v1311
        %1321 = vmatprep.subr.bf16.mxu0 0
        %1322 = vmatpush1.bf16.msra.mxu0 0
        %1323 = vmatprep.subr.bf16.mxu0 0
        %1324 = vmatpush1.bf16.msra.mxu0 0
        %1325 = vmatprep.subr.bf16.mxu0 0
        %1326 = vmatpush1.bf16.msra.mxu0 0
        %1327 = vmatprep.subr.bf16.mxu0 0
        %1328 = vmatpush1.bf16.msra.mxu0 0
        %1329 = vmatprep.subr.bf16.mxu0 0
        %1330 = vmatpush1.bf16.msra.mxu0 0
        %1331 = vmatprep.subr.bf16.mxu0 0
        %1332 = vmatpush1.bf16.msra.mxu0 0
        %1333 = vmatprep.subr.bf16.mxu0 0
        %1334 = vmatpush1.bf16.msra.mxu0 0
        %1335 = vmatprep.subr.bf16.mxu0 0
        %1336 = vmatpush1.bf16.msra.mxu0 0
        %1337 = vmatprep.subr.bf16.mxu0 0
        %1338 = vmatpush1.bf16.msra.mxu0 0
        %1339 = vmatprep.subr.bf16.mxu0 0
        %1340 = vmatpush1.bf16.msra.mxu0 0
        %1341 = vmatprep.subr.bf16.mxu0 0
        %1342 = vmatpush1.bf16.msra.mxu0 0
        %1343 = vmatprep.subr.bf16.mxu0 0
        %1344 = vmatpush1.bf16.msra.mxu0 0
        %1345 = vmatprep.subr.bf16.mxu0 0
        %1346 = vmatpush1.bf16.msra.mxu0 0
        %1347 = vmatprep.subr.bf16.mxu0 0
        %1348 = vmatpush1.bf16.msra.mxu0 0
        %1349 = vmatprep.mubr.bf16.mxu0 0
        %1350 = vmatmul.mubr.bf16.gmra.mrb[0].mxu0 %v1315
        %v1351 = vpop.f32.mrb[0].mxu0
        %v1352 = vadd.f32 %v1270, %v1351
        %v1353 = vpop.f32.mrb[0].mxu0
        %v1354 = vpop.f32.mrb[0].mxu0
        %v1355 = vpop.f32.mrb[0].mxu0
        %1356 = vdwg.mxu0
        %v1358 = vrot.slane %v1352, 1
        %v1359 = vrot.slane %v1352, 2
        %v1360 = vrot.slane %v1352, 3
        %v1361 = vrot.slane %v1352, 4
        %v1362 = vrot.slane %v1352, 5
        %v1363 = vrot.slane %v1352, 6
        %v1364 = vrot.slane %v1352, 7
        %v1373 = vadd.f32 %v462, %v1352
        %v1374 = vadd.f32 %v463, %v1358
        %v1375 = vadd.f32 %v464, %v1359
        %v1376 = vadd.f32 %v465, %v1360
        %v1377 = vadd.f32 %v466, %v1361
        %v1378 = vadd.f32 %v467, %v1362
        %v1379 = vadd.f32 %v468, %v1363
        %v1380 = vadd.f32 %v469, %v1364
        %v1389 = vrot.slane %v1374, 7
        %v1390 = vsel %vm691, %v1389, %v1373
        %v1391 = vrot.slane %v1375, 6
        %v1392 = vsel %vm694, %v1391, %v1390
        %v1393 = vrot.slane %v1376, 5
        %v1394 = vsel %vm697, %v1393, %v1392
        %v1395 = vrot.slane %v1377, 4
        %v1396 = vsel %vm700, %v1395, %v1394
        %v1397 = vrot.slane %v1378, 3
        %v1398 = vsel %vm703, %v1397, %v1396
        %v1399 = vrot.slane %v1379, 2
        %v1400 = vsel %vm706, %v1399, %v1398
        %v1401 = vrot.slane %v1380, 1
        %v1402 = vsel %vm709, %v1401, %v1400
        %v1404 = vsel %vm494, %v1402, 0.0
        %1405 = vadd.xlane.f32.xlu0 %v1404
        %v1406 = vpop.xlane.xlu0 %1405
        %v1407 = vrcp.pop 32.0
        %v1408 = vmul.f32 %v1406, %v1407
        %v1410 = vrot.slane %v1408, 1
        %v1411 = vrot.slane %v1408, 2
        %v1412 = vrot.slane %v1408, 3
        %v1413 = vrot.slane %v1408, 4
        %v1414 = vrot.slane %v1408, 5
        %v1415 = vrot.slane %v1408, 6
        %v1416 = vrot.slane %v1408, 7
        %v1425 = vsub.f32 %v1373, %v1408
        %v1426 = vsub.f32 %v1374, %v1410
        %v1427 = vsub.f32 %v1375, %v1411
        %v1428 = vsub.f32 %v1376, %v1412
        %v1429 = vsub.f32 %v1377, %v1413
        %v1430 = vsub.f32 %v1378, %v1414
        %v1431 = vsub.f32 %v1379, %v1415
        %v1432 = vsub.f32 %v1380, %v1416
        %v1433 = vmul.f32 %v1425, %v1425
        %v1434 = vmul.f32 %v1426, %v1426
        %v1435 = vmul.f32 %v1427, %v1427
        %v1436 = vmul.f32 %v1428, %v1428
        %v1437 = vmul.f32 %v1429, %v1429
        %v1438 = vmul.f32 %v1430, %v1430
        %v1439 = vmul.f32 %v1431, %v1431
        %v1440 = vmul.f32 %v1432, %v1432
        %v1449 = vrot.slane %v1434, 7
        %v1450 = vsel %vm691, %v1449, %v1433
        %v1451 = vrot.slane %v1435, 6
        %v1452 = vsel %vm694, %v1451, %v1450
        %v1453 = vrot.slane %v1436, 5
        %v1454 = vsel %vm697, %v1453, %v1452
        %v1455 = vrot.slane %v1437, 4
        %v1456 = vsel %vm700, %v1455, %v1454
        %v1457 = vrot.slane %v1438, 3
        %v1458 = vsel %vm703, %v1457, %v1456
        %v1459 = vrot.slane %v1439, 2
        %v1460 = vsel %vm706, %v1459, %v1458
        %v1461 = vrot.slane %v1440, 1
        %v1462 = vsel %vm709, %v1461, %v1460
        %v1464 = vsel %vm494, %v1462, 0.0
        %1465 = vadd.xlane.f32.xlu0 %v1464
        %v1466 = vpop.xlane.xlu0 %1465
        %v1467 = vmul.f32 %v1466, %v1407
        %v1468 = vadd.f32 %v1467, 1e-05
        %v1469 = vrsqrt.pop %v1468
        %v1471 = vrot.slane %v1469, 1
        %v1472 = vrot.slane %v1469, 2
        %v1473 = vrot.slane %v1469, 3
        %v1474 = vrot.slane %v1469, 4
        %v1475 = vrot.slane %v1469, 5
        %v1476 = vrot.slane %v1469, 6
        %v1477 = vrot.slane %v1469, 7
        %v1486 = vmul.f32 %v1425, %v1469
        %v1487 = vmul.f32 %v1426, %v1471
        %v1488 = vmul.f32 %v1427, %v1472
        %v1489 = vmul.f32 %v1428, %v1473
        %v1490 = vmul.f32 %v1429, %v1474
        %v1491 = vmul.f32 %v1430, %v1475
        %v1492 = vmul.f32 %v1431, %v1476
        %v1493 = vmul.f32 %v1432, %v1477
        %v1494 = vlaneseq
        %v1495 = vshrl.u32 %v1494, 7
        %v1496 = vsub.s32 4, %v1495
        %v1497 = vrot.slane %v427, %v1496
        %v1498 = vmul.f32 %v1486, %v1497
        %v1499 = vmul.f32 %v1487, %v1497
        %v1500 = vmul.f32 %v1488, %v1497
        %v1501 = vmul.f32 %v1489, %v1497
        %v1502 = vmul.f32 %v1490, %v1497
        %v1503 = vmul.f32 %v1491, %v1497
        %v1504 = vmul.f32 %v1492, %v1497
        %v1505 = vmul.f32 %v1493, %v1497
        %v1506 = vlaneseq
        %v1507 = vshrl.u32 %v1506, 7
        %v1508 = vsub.s32 5, %v1507
        %v1509 = vrot.slane %v427, %v1508
        %v1510 = vadd.f32 %v1498, %v1509
        %v1511 = vadd.f32 %v1499, %v1509
        %v1512 = vadd.f32 %v1500, %v1509
        %v1513 = vadd.f32 %v1501, %v1509
        %v1514 = vadd.f32 %v1502, %v1509
        %v1515 = vadd.f32 %v1503, %v1509
        %v1516 = vadd.f32 %v1504, %v1509
        %v1517 = vadd.f32 %v1505, %v1509
        %v1518 = vpack.c.bf16 %v1510, %v1510
        %v1519 = vpack.c.bf16 %v1511, %v1511
        %v1520 = vpack.c.bf16 %v1512, %v1512
        %v1521 = vpack.c.bf16 %v1513, %v1513
        %v1522 = vpack.c.bf16 %v1514, %v1514
        %v1523 = vpack.c.bf16 %v1515, %v1515
        %v1524 = vpack.c.bf16 %v1516, %v1516
        %v1525 = vpack.c.bf16 %v1517, %v1517
        %v1526 = vld [vmem:[#allocation11] sm:$0xf]
        %v1527 = vld [vmem:[#allocation11 + $0x4] sm:$0xf]
        %v1528 = vld [vmem:[#allocation11 + $0x8] sm:$0xf]
        %v1529 = vld [vmem:[#allocation11 + $0xc] sm:$0xf]
        %v1530 = vlaneseq
        %v1531 = vshrl.u32 %v1530, 7
        %v1532 = vsub.s32 6, %v1531
        %v1533 = vrot.slane %v427, %v1532
        %v1542 = vunpack.c.l.b16 %v1518
        %v1543 = vunpack.c.l.b16 %v1519
        %v1544 = vunpack.c.l.b16 %v1520
        %v1545 = vunpack.c.l.b16 %v1521
        %v1546 = vunpack.c.l.b16 %v1522
        %v1547 = vunpack.c.l.b16 %v1523
        %v1548 = vunpack.c.l.b16 %v1524
        %v1549 = vunpack.c.l.b16 %v1525
        %v1550 = vrot.slane %v1543, 7
        %v1551 = vsel %vm691, %v1550, %v1542
        %v1552 = vrot.slane %v1544, 6
        %v1553 = vsel %vm694, %v1552, %v1551
        %v1554 = vrot.slane %v1545, 5
        %v1555 = vsel %vm697, %v1554, %v1553
        %v1556 = vrot.slane %v1546, 4
        %v1557 = vsel %vm700, %v1556, %v1555
        %v1558 = vrot.slane %v1547, 3
        %v1559 = vsel %vm703, %v1558, %v1557
        %v1560 = vrot.slane %v1548, 2
        %v1561 = vsel %vm706, %v1560, %v1559
        %v1562 = vrot.slane %v1549, 1
        %v1563 = vsel %vm709, %v1562, %v1561
        %v1564 = vpack.c.b16 %v1563, %v1563
        %v1569 = vunpack.c.l.b16 %v1526
        %v1570 = vunpack.c.l.b16 %v1527
        %v1571 = vunpack.c.l.b16 %v1528
        %v1572 = vunpack.c.l.b16 %v1529
        %v1573 = vpack.c.b16 %v1570, %v1569
        %v1574 = vpack.c.b16 %v1572, %v1571
        %v1578 = vsel %vm494, %v1564, 0
        %1580 = vmatprep.subr.bf16.mxu0 0
        %1581 = vmatpush1.bf16.msra.mxu0 %v1573
        %1582 = vmatprep.subr.bf16.mxu0 0
        %1583 = vmatpush1.bf16.msra.mxu0 %v1574
        %1584 = vmatprep.subr.bf16.mxu0 0
        %1585 = vmatpush1.bf16.msra.mxu0 0
        %1586 = vmatprep.subr.bf16.mxu0 0
        %1587 = vmatpush1.bf16.msra.mxu0 0
        %1588 = vmatprep.subr.bf16.mxu0 0
        %1589 = vmatpush1.bf16.msra.mxu0 0
        %1590 = vmatprep.subr.bf16.mxu0 0
        %1591 = vmatpush1.bf16.msra.mxu0 0
        %1592 = vmatprep.subr.bf16.mxu0 0
        %1593 = vmatpush1.bf16.msra.mxu0 0
        %1594 = vmatprep.subr.bf16.mxu0 0
        %1595 = vmatpush1.bf16.msra.mxu0 0
        %1596 = vmatprep.subr.bf16.mxu0 0
        %1597 = vmatpush1.bf16.msra.mxu0 0
        %1598 = vmatprep.subr.bf16.mxu0 0
        %1599 = vmatpush1.bf16.msra.mxu0 0
        %1600 = vmatprep.subr.bf16.mxu0 0
        %1601 = vmatpush1.bf16.msra.mxu0 0
        %1602 = vmatprep.subr.bf16.mxu0 0
        %1603 = vmatpush1.bf16.msra.mxu0 0
        %1604 = vmatprep.subr.bf16.mxu0 0
        %1605 = vmatpush1.bf16.msra.mxu0 0
        %1606 = vmatprep.subr.bf16.mxu0 0
        %1607 = vmatpush1.bf16.msra.mxu0 0
        %1608 = vmatprep.subr.bf16.mxu0 0
        %1609 = vmatpush1.bf16.msra.mxu0 0
        %1610 = vmatprep.subr.bf16.mxu0 0
        %1611 = vmatpush1.bf16.msra.mxu0 0
        %1612 = vmatprep.mubr.bf16.mxu0 0
        %1613 = vmatmul.mubr.bf16.gmra.mrb[0].mxu0 %v1578
        %v1614 = vpop.f32.mrb[0].mxu0
        %v1615 = vadd.f32 %v1533, %v1614
        %v1616 = vpop.f32.mrb[0].mxu0
        %v1617 = vpop.f32.mrb[0].mxu0
        %v1618 = vpop.f32.mrb[0].mxu0
        %1619 = vdwg.mxu0
        %v1620 = vmax.f32 %v1615, 0.0
        %v1621 = vpack.c.bf16 %v1620, %v1620
        %v1622 = vld [vmem:[#allocation13] sm:$0xf]
        %v1623 = vld [vmem:[#allocation13 + $0x4] sm:$0xf]
        %v1624 = vld [vmem:[#allocation13 + $0x8] sm:$0xf]
        %v1625 = vld [vmem:[#allocation13 + $0xc] sm:$0xf]
        %v1626 = vld [vmem:[#allocation13 + $0x10] sm:$0xf]
        %v1627 = vld [vmem:[#allocation13 + $0x14] sm:$0xf]
        %v1628 = vld [vmem:[#allocation13 + $0x18] sm:$0xf]
        %v1629 = vld [vmem:[#allocation13 + $0x1c] sm:$0xf]
        %v1630 = vlaneseq
        %v1631 = vshrl.u32 %v1630, 7
        %v1632 = vsub.s32 7, %v1631
        %v1633 = vrot.slane %v427, %v1632
        %v1642 = vunpack.c.l.b16 %v1622
        %v1643 = vunpack.c.l.b16 %v1623
        %v1644 = vunpack.c.l.b16 %v1624
        %v1645 = vunpack.c.l.b16 %v1625
        %v1646 = vunpack.c.l.b16 %v1626
        %v1647 = vunpack.c.l.b16 %v1627
        %v1648 = vunpack.c.l.b16 %v1628
        %v1649 = vunpack.c.l.b16 %v1629
        %v1650 = vpack.c.b16 %v1643, %v1642
        %v1651 = vpack.c.b16 %v1645, %v1644
        %v1652 = vpack.c.b16 %v1647, %v1646
        %v1653 = vpack.c.b16 %v1649, %v1648
        %vm1658 = vcmask 523264
        %v1660 = vsel %vm1658, %v1621, 0
        %1662 = vmatprep.subr.bf16.mxu0 0
        %1663 = vmatpush1.bf16.msra.mxu0 %v1650
        %1664 = vmatprep.subr.bf16.mxu0 0
        %1665 = vmatpush1.bf16.msra.mxu0 %v1651
        %1666 = vmatprep.subr.bf16.mxu0 0
        %1667 = vmatpush1.bf16.msra.mxu0 %v1652
        %1668 = vmatprep.subr.bf16.mxu0 0
        %1669 = vmatpush1.bf16.msra.mxu0 %v1653
        %1670 = vmatprep.subr.bf16.mxu0 0
        %1671 = vmatpush1.bf16.msra.mxu0 0
        %1672 = vmatprep.subr.bf16.mxu0 0
        %1673 = vmatpush1.bf16.msra.mxu0 0
        %1674 = vmatprep.subr.bf16.mxu0 0
        %1675 = vmatpush1.bf16.msra.mxu0 0
        %1676 = vmatprep.subr.bf16.mxu0 0
        %1677 = vmatpush1.bf16.msra.mxu0 0
        %1678 = vmatprep.subr.bf16.mxu0 0
        %1679 = vmatpush1.bf16.msra.mxu0 0
        %1680 = vmatprep.subr.bf16.mxu0 0
        %1681 = vmatpush1.bf16.msra.mxu0 0
        %1682 = vmatprep.subr.bf16.mxu0 0
        %1683 = vmatpush1.bf16.msra.mxu0 0
        %1684 = vmatprep.subr.bf16.mxu0 0
        %1685 = vmatpush1.bf16.msra.mxu0 0
        %1686 = vmatprep.subr.bf16.mxu0 0
        %1687 = vmatpush1.bf16.msra.mxu0 0
        %1688 = vmatprep.subr.bf16.mxu0 0
        %1689 = vmatpush1.bf16.msra.mxu0 0
        %1690 = vmatprep.subr.bf16.mxu0 0
        %1691 = vmatpush1.bf16.msra.mxu0 0
        %1692 = vmatprep.subr.bf16.mxu0 0
        %1693 = vmatpush1.bf16.msra.mxu0 0
        %1694 = vmatprep.mubr.bf16.mxu0 0
        %1695 = vmatmul.mubr.bf16.gmra.mrb[0].mxu0 %v1660
        %v1696 = vpop.f32.mrb[0].mxu0
        %v1697 = vadd.f32 %v1633, %v1696
        %v1698 = vpop.f32.mrb[0].mxu0
        %v1699 = vpop.f32.mrb[0].mxu0
        %v1700 = vpop.f32.mrb[0].mxu0
        %1701 = vdwg.mxu0
        %v1703 = vrot.slane %v1697, 1
        %v1704 = vrot.slane %v1697, 2
        %v1705 = vrot.slane %v1697, 3
        %v1706 = vrot.slane %v1697, 4
        %v1707 = vrot.slane %v1697, 5
        %v1708 = vrot.slane %v1697, 6
        %v1709 = vrot.slane %v1697, 7
        %v1718 = vadd.f32 %v1510, %v1697
        %v1719 = vadd.f32 %v1511, %v1703
        %v1720 = vadd.f32 %v1512, %v1704
        %v1721 = vadd.f32 %v1513, %v1705
        %v1722 = vadd.f32 %v1514, %v1706
        %v1723 = vadd.f32 %v1515, %v1707
        %v1724 = vadd.f32 %v1516, %v1708
        %v1725 = vadd.f32 %v1517, %v1709
        %v1734 = vrot.slane %v1719, 7
        %v1735 = vsel %vm691, %v1734, %v1718
        %v1736 = vrot.slane %v1720, 6
        %v1737 = vsel %vm694, %v1736, %v1735
        %v1738 = vrot.slane %v1721, 5
        %v1739 = vsel %vm697, %v1738, %v1737
        %v1740 = vrot.slane %v1722, 4
        %v1741 = vsel %vm700, %v1740, %v1739
        %v1742 = vrot.slane %v1723, 3
        %v1743 = vsel %vm703, %v1742, %v1741
        %v1744 = vrot.slane %v1724, 2
        %v1745 = vsel %vm706, %v1744, %v1743
        %v1746 = vrot.slane %v1725, 1
        %v1747 = vsel %vm709, %v1746, %v1745
        %v1749 = vsel %vm494, %v1747, 0.0
        %1750 = vadd.xlane.f32.xlu0 %v1749
        %v1751 = vpop.xlane.xlu0 %1750
        %v1752 = vmul.f32 %v1751, %v1407
        %v1754 = vrot.slane %v1752, 1
        %v1755 = vrot.slane %v1752, 2
        %v1756 = vrot.slane %v1752, 3
        %v1757 = vrot.slane %v1752, 4
        %v1758 = vrot.slane %v1752, 5
        %v1759 = vrot.slane %v1752, 6
        %v1760 = vrot.slane %v1752, 7
        %v1769 = vsub.f32 %v1718, %v1752
        %v1770 = vsub.f32 %v1719, %v1754
        %v1771 = vsub.f32 %v1720, %v1755
        %v1772 = vsub.f32 %v1721, %v1756
        %v1773 = vsub.f32 %v1722, %v1757
        %v1774 = vsub.f32 %v1723, %v1758
        %v1775 = vsub.f32 %v1724, %v1759
        %v1776 = vsub.f32 %v1725, %v1760
        %v1777 = vmul.f32 %v1769, %v1769
        %v1778 = vmul.f32 %v1770, %v1770
        %v1779 = vmul.f32 %v1771, %v1771
        %v1780 = vmul.f32 %v1772, %v1772
        %v1781 = vmul.f32 %v1773, %v1773
        %v1782 = vmul.f32 %v1774, %v1774
        %v1783 = vmul.f32 %v1775, %v1775
        %v1784 = vmul.f32 %v1776, %v1776
        %v1793 = vrot.slane %v1778, 7
        %v1794 = vsel %vm691, %v1793, %v1777
        %v1795 = vrot.slane %v1779, 6
        %v1796 = vsel %vm694, %v1795, %v1794
        %v1797 = vrot.slane %v1780, 5
        %v1798 = vsel %vm697, %v1797, %v1796
        %v1799 = vrot.slane %v1781, 4
        %v1800 = vsel %vm700, %v1799, %v1798
        %v1801 = vrot.slane %v1782, 3
        %v1802 = vsel %vm703, %v1801, %v1800
        %v1803 = vrot.slane %v1783, 2
        %v1804 = vsel %vm706, %v1803, %v1802
        %v1805 = vrot.slane %v1784, 1
        %v1806 = vsel %vm709, %v1805, %v1804
        %v1808 = vsel %vm494, %v1806, 0.0
        %1809 = vadd.xlane.f32.xlu0 %v1808
        %v1810 = vpop.xlane.xlu0 %1809
        %v1811 = vmul.f32 %v1810, %v1407
        %v1812 = vadd.f32 %v1811, 1e-05
        %v1813 = vrsqrt.pop %v1812
        %v1815 = vrot.slane %v1813, 1
        %v1816 = vrot.slane %v1813, 2
        %v1817 = vrot.slane %v1813, 3
        %v1818 = vrot.slane %v1813, 4
        %v1819 = vrot.slane %v1813, 5
        %v1820 = vrot.slane %v1813, 6
        %v1821 = vrot.slane %v1813, 7
        %v1830 = vmul.f32 %v1769, %v1813
        %v1831 = vmul.f32 %v1770, %v1815
        %v1832 = vmul.f32 %v1771, %v1816
        %v1833 = vmul.f32 %v1772, %v1817
        %v1834 = vmul.f32 %v1773, %v1818
        %v1835 = vmul.f32 %v1774, %v1819
        %v1836 = vmul.f32 %v1775, %v1820
        %v1837 = vmul.f32 %v1776, %v1821
        %v1838 = vlaneseq
        %v1839 = vshrl.u32 %v1838, 7
        %v1840 = vsub.s32 0, %v1839
        %v1841 = vrot.slane %v428, %v1840
        %v1842 = vmul.f32 %v1830, %v1841
        %v1843 = vmul.f32 %v1831, %v1841
        %v1844 = vmul.f32 %v1832, %v1841
        %v1845 = vmul.f32 %v1833, %v1841
        %v1846 = vmul.f32 %v1834, %v1841
        %v1847 = vmul.f32 %v1835, %v1841
        %v1848 = vmul.f32 %v1836, %v1841
        %v1849 = vmul.f32 %v1837, %v1841
        %v1850 = vlaneseq
        %v1851 = vshrl.u32 %v1850, 7
        %v1852 = vsub.s32 1, %v1851
        %v1853 = vrot.slane %v428, %v1852
        %v1854 = vadd.f32 %v1842, %v1853
        %v1855 = vadd.f32 %v1843, %v1853
        %v1856 = vadd.f32 %v1844, %v1853
        %v1857 = vadd.f32 %v1845, %v1853
        %v1858 = vadd.f32 %v1846, %v1853
        %v1859 = vadd.f32 %v1847, %v1853
        %v1860 = vadd.f32 %v1848, %v1853
        %v1861 = vadd.f32 %v1849, %v1853
        %v1870 = vrot.slane %v1855, 7
        %v1871 = vsel %vm691, %v1870, %v1854
        %v1872 = vrot.slane %v1856, 6
        %v1873 = vsel %vm694, %v1872, %v1871
        %v1874 = vrot.slane %v1857, 5
        %v1875 = vsel %vm697, %v1874, %v1873
        %v1876 = vrot.slane %v1858, 4
        %v1877 = vsel %vm700, %v1876, %v1875
        %v1878 = vrot.slane %v1859, 3
        %v1879 = vsel %vm703, %v1878, %v1877
        %v1880 = vrot.slane %v1860, 2
        %v1881 = vsel %vm706, %v1880, %v1879
        %v1882 = vrot.slane %v1861, 1
        %v1883 = vsel %vm709, %v1882, %v1881
        %1885 = vst.msk [vmem:[%s423] sm:$0xff] %vm494, %v1883
        %s1886 = sand.u32 %s210, 1
        %s1887 = scalar_lea.sflag [#allocation4], %s1886
        %s1888 = sand.u32 %s210, 1
        %s1889 = smul.addr %s1888, 8
        %s1890 = scalar_lea.vmem [#allocation16], %s1889
        // Predicated region
        $region85: #{tpu_custom_call.1} parent=51 // pred_check
          %p1891 = pneg %p220
        $region86: #{tpu_custom_call.1} parent=51 // pred_check_branch
          %1893 = sbr.rel (%p1891) target = $region88
        $region87: #{tpu_custom_call.1} parent=51 // pred_region
          %s1895 = ssub.s32 128, 128
          %1896 = vsyncadd %s1887, %s1895
          %s1897 = smul.addr %s29, 128
          %s1898 = scalar_lea.hbm %s8, %s1897
          %s1900 = sshll.u32 %s1890, 4
          %s1901 = int_to_ptr.vmem [resolvable:$true] %s1900
          %1903 = dma.vmem_to_hbm [thread:$0]  %s1901, 128, %s1898, %s1887
        $region88: #{tpu_custom_call.1} parent=51 // pred_fallthru
          _
      $region52: #{tpu_custom_call.1} parent=5 // pred_fallthru
        _
      %p1904 = scmp.le.s32.totalorder 2, %s24
      // Predicated region
      $region89: #{tpu_custom_call.1} parent=5 // pred_check
        %p1905 = pneg %p1904
      $region90: #{tpu_custom_call.1} parent=5 // pred_check_branch
        %1907 = sbr.rel (%p1905) target = $region92
      $region91: #{tpu_custom_call.1} parent=5 // pred_region
        %s1908 = ssub.s32 %s24, 2
        // Predicated region
        $region93: #{tpu_custom_call.1} parent=91 // pred_check
          %p1909 = pneg %p226
        $region94: #{tpu_custom_call.1} parent=91 // pred_check_branch
          %1911 = sbr.rel (%p1909) target = $region96
        $region95: #{tpu_custom_call.1} parent=91 // pred_region
          %s1912 = sand.u32 %s211, 1
          %s1913 = scalar_lea.sflag [#allocation4], %s1912
          %s1914 = sand.u32 %s211, 1
          %s1915 = smul.addr %s1914, 8
          %s1916 = scalar_lea.vmem [#allocation16], %s1915
          %1917 = dma.done %s1913, 128
        $region96: #{tpu_custom_call.1} parent=91 // pred_fallthru
          _
      $region92: #{tpu_custom_call.1} parent=5 // pred_fallthru
        _
    $region6: #{tpu_custom_call.1} parent=1 // loop_footer
      %s28 = sadd.s32 1, %s24
    $region7: #{tpu_custom_call.1} parent=1 // loop_footer_branch
      %23 = sbr.rel target = $region3
    $region8: #{tpu_custom_call.1} parent=1 // loop_exit
      _
    %1918 = vsyncpa [#allocation3], 1
    %s1919 = scalar_lea.sflag [#allocation3], 1
    %1920 = vsyncpa %s1919, 1
    %1921 = vsyncpa [#allocation6], 1
    %1922 = vsyncpa [#allocation9], 1
    %1923 = vsyncpa [#allocation12], 1
    %1924 = vsyncpa [#allocation15], 1
    %1925 = vsyncpa [#allocation4], 1
    %s1926 = scalar_lea.sflag [#allocation4], 1
    %1927 = vsyncpa %s1926, 1

// kernel: tpu_custom_call.1
$region0: #{tpu_custom_call.1}
  #allocation0 [shape = 'u32[]', space=smem, size = 0x4, offset = 0x4, fixed_abs, tag = 'smem constant byte address 0x4 - core index']
  #allocation1 [shape = 'u32[144,128]{1,0:T(1,128)}', space=vmem, size = 0x12000, scoped, tag = 'internal scratch']
  %s0 = inlined_call_operand.hbm [shape: bf16[16,8,32], index: 0, kind: input, shape index: {}]
  %s1 = inlined_call_operand.hbm [shape: f32[8,2], index: 1, kind: input, shape index: {}]
  %s2 = inlined_call_operand.hbm [shape: bf16[32,32], index: 2, kind: input, shape index: {}]
  %s3 = inlined_call_operand.hbm [shape: bf16[2,32,32], index: 3, kind: input, shape index: {}]
  %s4 = inlined_call_operand.hbm [shape: bf16[32,32], index: 4, kind: input, shape index: {}]
  %s5 = inlined_call_operand.hbm [shape: bf16[32,64], index: 5, kind: input, shape index: {}]
  %s6 = inlined_call_operand.hbm [shape: bf16[64,32], index: 6, kind: input, shape index: {}]
  %s7 = inlined_call_operand.hbm [shape: f32[12,64], index: 7, kind: input, shape index: {}]
  %s8 = inlined_call_operand.hbm [shape: f32[16,32], index: 8, kind: output, shape index: {}]
  %s9 = sld [smem:[#allocation0]]
  $region97: #{tpu_custom_call.1} parent=0
    _
  %s11 = ssub.s32 1, %s9
  %s12 = scalar_select 0, %s11, %s9
  $region1: #{tpu_custom_call.1} parent=0
    #allocation2 [shape = 'u8[32768]{0}', space=vmem, size = 0x8000, scoped, tag = 'input window, operand 0']
    #allocation3 [shape = 's32[2]{0}', space=sflag, size = 0x8, scoped, tag = 'scoped memory for tpu_custom_call.1']
    #allocation4 [shape = 's32[2]{0}', space=sflag, size = 0x8, scoped, tag = 'scoped memory for tpu_custom_call.1']
    #allocation5 [shape = 'u8[4096]{0}', space=vmem, size = 0x1000, scoped, tag = 'input window, operand 1, single buffered']
    #allocation6 [shape = 's32[1]{0}', space=sflag, size = 0x4, scoped, tag = 'scoped memory for tpu_custom_call.1']
    #allocation7 [shape = 'u8[8192]{0}', space=vmem, size = 0x2000, scoped, tag = 'input window, operand 2, single buffered']
    #allocation8 [shape = 'u8[16384]{0}', space=vmem, size = 0x4000, scoped, tag = 'input window, operand 3, single buffered']
    #allocation9 [shape = 's32[1]{0}', space=sflag, size = 0x4, scoped, tag = 'scoped memory for tpu_custom_call.1']
    #allocation10 [shape = 'u8[8192]{0}', space=vmem, size = 0x2000, scoped, tag = 'input window, operand 4, single buffered']
    #allocation11 [shape = 'u8[8192]{0}', space=vmem, size = 0x2000, scoped, tag = 'input window, operand 5, single buffered']
    #allocation12 [shape = 's32[1]{0}', space=sflag, size = 0x4, scoped, tag = 'scoped memory for tpu_custom_call.1']
    #allocation13 [shape = 'u8[16384]{0}', space=vmem, size = 0x4000, scoped, tag = 'input window, operand 6, single buffered']
    #allocation14 [shape = 'u8[8192]{0}', space=vmem, size = 0x2000, scoped, tag = 'input window, operand 7, single buffered']
    #allocation15 [shape = 's32[1]{0}', space=sflag, size = 0x4, scoped, tag = 'scoped memory for tpu_custom_call.1']
    #allocation16 [shape = 'u8[8192]{0}', space=vmem, size = 0x2000, scoped, tag = 'output window, operand 0']
    %13 = vsyncpa [#allocation3], 0
    %s14 = scalar_lea.sflag [#allocation3], 1
    %15 = vsyncpa %s14, 0
    %16 = vsyncpa [#allocation6], 0
    %17 = vsyncpa [#allocation9], 0
    %18 = vsyncpa [#allocation12], 0
    %19 = vsyncpa [#allocation15], 0
    %20 = vsyncpa [#allocation4], 0
    %s21 = scalar_lea.sflag [#allocation4], 1
    %22 = vsyncpa %s21, 0
    loop: start=0, step=1, limit=4
    $region2: #{tpu_custom_call.1} parent=1 // loop_pre_header
      _
    $region3: #{tpu_custom_call.1} parent=1 // loop_header
      %s24 = sphi 0, %s28
      %p25 = scmp.ge.s32.totalorder %s24, 4
      %s34 = sphi 0, %s36
      %s37 = sphi 0, %s34
      %s38 = sphi 0, %s37
      %s54 = sphi 0, %s38
      %s58 = sphi 0, %s58
      %s60 = sphi 0, %s58
      %s61 = sphi 0, %s60
      %s75 = sphi 0, %s61
      %s79 = sphi 0, %s79
      %s81 = sphi 0, %s79
      %s82 = sphi 0, %s81
      %s96 = sphi 0, %s82
      %s100 = sphi 0, %s100
      %s102 = sphi 0, %s100
      %s103 = sphi 0, %s102
      %s117 = sphi 0, %s103
      %s121 = sphi 0, %s121
      %s123 = sphi 0, %s121
      %s124 = sphi 0, %s123
      %s138 = sphi 0, %s124
      %s142 = sphi 0, %s142
      %s144 = sphi 0, %s142
      %s145 = sphi 0, %s144
      %s159 = sphi 0, %s145
      %s163 = sphi 0, %s163
      %s165 = sphi 0, %s163
      %s166 = sphi 0, %s165
      %s180 = sphi 0, %s166
      %s184 = sphi 0, %s184
      %s186 = sphi 0, %s184
      %s187 = sphi 0, %s186
      %s201 = sphi 0, %s187
      %s207 = sphi 0, %s209
      %s210 = sphi 0, %s207
      %s211 = sphi 0, %s210
      %s227 = sphi 0, %s211
    $region4: #{tpu_custom_call.1} parent=1 // loop_header_branch
      %27 = sbr.rel (%p25) target = $region8
    $region5: #{tpu_custom_call.1} parent=1 // loop_body
      %s29 = ssub.s32 %s24, 1
      %s30 = ssub.s32 %s24, 2
      %s31 = sadd.s32 %s24, 1
      %s32 = ssub.s32 %s24, %s31
      %p33 = scmp.eq.s32.totalorder %s32, 0
      %s35 = sadd.s32 %s34, 1
      %s36 = scalar_select %p33, %s34, %s35
      %p39 = pneg %p33
      %p40 = scmp.eq.s32.totalorder %s24, 1
      %p41 = por %p39, %p40
      %p42 = scmp.ne.s32.totalorder %s34, %s37
      %p43 = scmp.eq.s32.totalorder %s24, 0
      %p44 = por %p42, %p43
      %p45 = scmp.ne.s32.totalorder %s34, %s37
      %p46 = scmp.eq.s32.totalorder %s29, 1
      %p47 = por %p45, %p46
      %p48 = scmp.ne.s32.totalorder %s37, %s38
      %p49 = scmp.eq.s32.totalorder %s29, 0
      %p50 = por %p48, %p49
      %p51 = scmp.ne.s32.totalorder %s37, %s38
      %p52 = scmp.eq.s32.totalorder %s30, 1
      %p53 = por %p51, %p52
      %p55 = scmp.ne.s32.totalorder %s38, %s54
      %p56 = scmp.eq.s32.totalorder %s30, 0
      %p57 = por %p55, %p56
      %s59 = sadd.s32 %s58, 1
      %p62 = scmp.eq.s32.totalorder %s24, 1
      %p63 = scmp.ne.s32.totalorder %s58, %s60
      %p64 = scmp.eq.s32.totalorder %s24, 0
      %p65 = por %p63, %p64
      %p66 = scmp.ne.s32.totalorder %s58, %s60
      %p67 = scmp.eq.s32.totalorder %s29, 1
      %p68 = por %p66, %p67
      %p69 = scmp.ne.s32.totalorder %s60, %s61
      %p70 = scmp.eq.s32.totalorder %s29, 0
      %p71 = por %p69, %p70
      %p72 = scmp.ne.s32.totalorder %s60, %s61
      %p73 = scmp.eq.s32.totalorder %s30, 1
      %p74 = por %p72, %p73
      %p76 = scmp.ne.s32.totalorder %s61, %s75
      %p77 = scmp.eq.s32.totalorder %s30, 0
      %p78 = por %p76, %p77
      %s80 = sadd.s32 %s79, 1
      %p83 = scmp.eq.s32.totalorder %s24, 1
      %p84 = scmp.ne.s32.totalorder %s79, %s81
      %p85 = scmp.eq.s32.totalorder %s24, 0
      %p86 = por %p84, %p85
      %p87 = scmp.ne.s32.totalorder %s79, %s81
      %p88 = scmp.eq.s32.totalorder %s29, 1
      %p89 = por %p87, %p88
      %p90 = scmp.ne.s32.totalorder %s81, %s82
      %p91 = scmp.eq.s32.totalorder %s29, 0
      %p92 = por %p90, %p91
      %p93 = scmp.ne.s32.totalorder %s81, %s82
      %p94 = scmp.eq.s32.totalorder %s30, 1
      %p95 = por %p93, %p94
      %p97 = scmp.ne.s32.totalorder %s82, %s96
      %p98 = scmp.eq.s32.totalorder %s30, 0
      %p99 = por %p97, %p98
      %s101 = sadd.s32 %s100, 1
      %p104 = scmp.eq.s32.totalorder %s24, 1
      %p105 = scmp.ne.s32.totalorder %s100, %s102
      %p106 = scmp.eq.s32.totalorder %s24, 0
      %p107 = por %p105, %p106
      %p108 = scmp.ne.s32.totalorder %s100, %s102
      %p109 = scmp.eq.s32.totalorder %s29, 1
      %p110 = por %p108, %p109
      %p111 = scmp.ne.s32.totalorder %s102, %s103
      %p112 = scmp.eq.s32.totalorder %s29, 0
      %p113 = por %p111, %p112
      %p114 = scmp.ne.s32.totalorder %s102, %s103
      %p115 = scmp.eq.s32.totalorder %s30, 1
      %p116 = por %p114, %p115
      %p118 = scmp.ne.s32.totalorder %s103, %s117
      %p119 = scmp.eq.s32.totalorder %s30, 0
      %p120 = por %p118, %p119
      %s122 = sadd.s32 %s121, 1
      %p125 = scmp.eq.s32.totalorder %s24, 1
      %p126 = scmp.ne.s32.totalorder %s121, %s123
      %p127 = scmp.eq.s32.totalorder %s24, 0
      %p128 = por %p126, %p127
      %p129 = scmp.ne.s32.totalorder %s121, %s123
      %p130 = scmp.eq.s32.totalorder %s29, 1
      %p131 = por %p129, %p130
      %p132 = scmp.ne.s32.totalorder %s123, %s124
      %p133 = scmp.eq.s32.totalorder %s29, 0
      %p134 = por %p132, %p133
      %p135 = scmp.ne.s32.totalorder %s123, %s124
      %p136 = scmp.eq.s32.totalorder %s30, 1
      %p137 = por %p135, %p136
      %p139 = scmp.ne.s32.totalorder %s124, %s138
      %p140 = scmp.eq.s32.totalorder %s30, 0
      %p141 = por %p139, %p140
      %s143 = sadd.s32 %s142, 1
      %p146 = scmp.eq.s32.totalorder %s24, 1
      %p147 = scmp.ne.s32.totalorder %s142, %s144
      %p148 = scmp.eq.s32.totalorder %s24, 0
      %p149 = por %p147, %p148
      %p150 = scmp.ne.s32.totalorder %s142, %s144
      %p151 = scmp.eq.s32.totalorder %s29, 1
      %p152 = por %p150, %p151
      %p153 = scmp.ne.s32.totalorder %s144, %s145
      %p154 = scmp.eq.s32.totalorder %s29, 0
      %p155 = por %p153, %p154
      %p156 = scmp.ne.s32.totalorder %s144, %s145
      %p157 = scmp.eq.s32.totalorder %s30, 1
      %p158 = por %p156, %p157
      %p160 = scmp.ne.s32.totalorder %s145, %s159
      %p161 = scmp.eq.s32.totalorder %s30, 0
      %p162 = por %p160, %p161
      %s164 = sadd.s32 %s163, 1
      %p167 = scmp.eq.s32.totalorder %s24, 1
      %p168 = scmp.ne.s32.totalorder %s163, %s165
      %p169 = scmp.eq.s32.totalorder %s24, 0
      %p170 = por %p168, %p169
      %p171 = scmp.ne.s32.totalorder %s163, %s165
      %p172 = scmp.eq.s32.totalorder %s29, 1
      %p173 = por %p171, %p172
      %p174 = scmp.ne.s32.totalorder %s165, %s166
      %p175 = scmp.eq.s32.totalorder %s29, 0
      %p176 = por %p174, %p175
      %p177 = scmp.ne.s32.totalorder %s165, %s166
      %p178 = scmp.eq.s32.totalorder %s30, 1
      %p179 = por %p177, %p178
      %p181 = scmp.ne.s32.totalorder %s166, %s180
      %p182 = scmp.eq.s32.totalorder %s30, 0
      %p183 = por %p181, %p182
      %s185 = sadd.s32 %s184, 1
      %p188 = scmp.eq.s32.totalorder %s24, 1
      %p189 = scmp.ne.s32.totalorder %s184, %s186
      %p190 = scmp.eq.s32.totalorder %s24, 0
      %p191 = por %p189, %p190
      %p192 = scmp.ne.s32.totalorder %s184, %s186
      %p193 = scmp.eq.s32.totalorder %s29, 1
      %p194 = por %p192, %p193
      %p195 = scmp.ne.s32.totalorder %s186, %s187
      %p196 = scmp.eq.s32.totalorder %s29, 0
      %p197 = por %p195, %p196
      %p198 = scmp.ne.s32.totalorder %s186, %s187
      %p199 = scmp.eq.s32.totalorder %s30, 1
      %p200 = por %p198, %p199
      %p202 = scmp.ne.s32.totalorder %s187, %s201
      %p203 = scmp.eq.s32.totalorder %s30, 0
      %p204 = por %p202, %p203
      %s205 = ssub.s32 %s24, %s31
      %p206 = scmp.eq.s32.totalorder %s205, 0
      %s208 = sadd.s32 %s207, 1
      %s209 = scalar_select %p206, %s207, %s208
      %p212 = pneg %p206
      %p213 = scmp.eq.s32.totalorder %s24, 1
      %p214 = por %p212, %p213
      %p215 = scmp.ne.s32.totalorder %s207, %s210
      %p216 = scmp.eq.s32.totalorder %s24, 0
      %p217 = por %p215, %p216
      %p218 = scmp.ne.s32.totalorder %s207, %s210
      %p219 = scmp.eq.s32.totalorder %s29, 1
      %p220 = por %p218, %p219
      %p221 = scmp.ne.s32.totalorder %s210, %s211
      %p222 = scmp.eq.s32.totalorder %s29, 0
      %p223 = por %p221, %p222
      %p224 = scmp.ne.s32.totalorder %s210, %s211
      %p225 = scmp.eq.s32.totalorder %s30, 1
      %p226 = por %p224, %p225
      %p228 = scmp.ne.s32.totalorder %s211, %s227
      %p229 = scmp.eq.s32.totalorder %s30, 0
      %p230 = por %p228, %p229
      %p231 = scmp.le.s32.totalorder 1, %s24
      %p232 = scmp.lt.s32.totalorder %s24, 3
      %p233 = pnand %p231, %p232
      %p234 = pneg %p233
      // Predicated region
      $region9: #{tpu_custom_call.1} parent=5 // pred_check
        _
      $region10: #{tpu_custom_call.1} parent=5 // pred_check_branch
        %236 = sbr.rel (%p233) target = $region12
      $region11: #{tpu_custom_call.1} parent=5 // pred_region
        %s237 = ssub.s32 %s24, 1
        // Predicated region
        $region13: #{tpu_custom_call.1} parent=11 // pred_check
          %p238 = pneg %p71
        $region14: #{tpu_custom_call.1} parent=11 // pred_check_branch
          %240 = sbr.rel (%p238) target = $region16
        $region15: #{tpu_custom_call.1} parent=11 // pred_region
          %s242 = ssub.s32 128, 128
          %243 = vsyncadd [#allocation6], %s242
          %s245 = sshll.u32 [#allocation5], 4
          %s246 = int_to_ptr.vmem [resolvable:$true] %s245
          %248 = dma.hbm_to_vmem [thread:$0]  %s1, 128, %s246, [#allocation6]
        $region16: #{tpu_custom_call.1} parent=11 // pred_fallthru
          _
        // Predicated region
        $region17: #{tpu_custom_call.1} parent=11 // pred_check
          %p249 = pneg %p92
        $region18: #{tpu_custom_call.1} parent=11 // pred_check_branch
          %251 = sbr.rel (%p249) target = $region20
        $region19: #{tpu_custom_call.1} parent=11 // pred_region
          %s253 = ssub.s32 256, 256
          %254 = vsyncadd [#allocation6], %s253
          %s255 = sshll.u32 [#allocation7], 4
          %s256 = int_to_ptr.vmem [resolvable:$true] %s255
          %261 = dma.hbm_to_vmem [thread:$0]  %s2, 256, %s256, [#allocation6], 64, 64, 4
        $region20: #{tpu_custom_call.1} parent=11 // pred_fallthru
          _
        // Predicated region
        $region21: #{tpu_custom_call.1} parent=11 // pred_check
          %p262 = pneg %p113
        $region22: #{tpu_custom_call.1} parent=11 // pred_check_branch
          %264 = sbr.rel (%p262) target = $region24
        $region23: #{tpu_custom_call.1} parent=11 // pred_region
          %s266 = ssub.s32 512, 512
          %267 = vsyncadd [#allocation9], %s266
          %s268 = sshll.u32 [#allocation8], 4
          %s269 = int_to_ptr.vmem [resolvable:$true] %s268
          %274 = dma.hbm_to_vmem [thread:$0]  %s3, 512, %s269, [#allocation9], 64, 64, 4
        $region24: #{tpu_custom_call.1} parent=11 // pred_fallthru
          _
        // Predicated region
        $region25: #{tpu_custom_call.1} parent=11 // pred_check
          %p275 = pneg %p134
        $region26: #{tpu_custom_call.1} parent=11 // pred_check_branch
          %277 = sbr.rel (%p275) target = $region28
        $region27: #{tpu_custom_call.1} parent=11 // pred_region
          %s279 = ssub.s32 256, 256
          %280 = vsyncadd [#allocation9], %s279
          %s281 = sshll.u32 [#allocation10], 4
          %s282 = int_to_ptr.vmem [resolvable:$true] %s281
          %287 = dma.hbm_to_vmem [thread:$0]  %s4, 256, %s282, [#allocation9], 64, 64, 4
        $region28: #{tpu_custom_call.1} parent=11 // pred_fallthru
          _
        // Predicated region
        $region29: #{tpu_custom_call.1} parent=11 // pred_check
          %p288 = pneg %p155
        $region30: #{tpu_custom_call.1} parent=11 // pred_check_branch
          %290 = sbr.rel (%p288) target = $region32
        $region31: #{tpu_custom_call.1} parent=11 // pred_region
          %s292 = ssub.s32 256, 256
          %293 = vsyncadd [#allocation12], %s292
          %s294 = sshll.u32 [#allocation11], 4
          %s295 = int_to_ptr.vmem [resolvable:$true] %s294
          %300 = dma.hbm_to_vmem [thread:$0]  %s5, 256, %s295, [#allocation12], 64, 64, 4
        $region32: #{tpu_custom_call.1} parent=11 // pred_fallthru
          _
        // Predicated region
        $region33: #{tpu_custom_call.1} parent=11 // pred_check
          %p301 = pneg %p176
        $region34: #{tpu_custom_call.1} parent=11 // pred_check_branch
          %303 = sbr.rel (%p301) target = $region36
        $region35: #{tpu_custom_call.1} parent=11 // pred_region
          %s305 = ssub.s32 512, 512
          %306 = vsyncadd [#allocation12], %s305
          %s307 = sshll.u32 [#allocation13], 4
          %s308 = int_to_ptr.vmem [resolvable:$true] %s307
          %313 = dma.hbm_to_vmem [thread:$0]  %s6, 512, %s308, [#allocation12], 64, 64, 4
        $region36: #{tpu_custom_call.1} parent=11 // pred_fallthru
          _
        // Predicated region
        $region37: #{tpu_custom_call.1} parent=11 // pred_check
          %p314 = pneg %p197
        $region38: #{tpu_custom_call.1} parent=11 // pred_check_branch
          %316 = sbr.rel (%p314) target = $region40
        $region39: #{tpu_custom_call.1} parent=11 // pred_region
          %s318 = ssub.s32 256, 256
          %319 = vsyncadd [#allocation15], %s318
          %s320 = sshll.u32 [#allocation14], 4
          %s321 = int_to_ptr.vmem [resolvable:$true] %s320
          %326 = dma.hbm_to_vmem [thread:$0]  %s7, 256, %s321, [#allocation15], 128, 128, 8
        $region40: #{tpu_custom_call.1} parent=11 // pred_fallthru
          _
      $region12: #{tpu_custom_call.1} parent=5 // pred_fallthru
        _
      %p327 = scmp.lt.s32.totalorder %s24, 2
      // Predicated region
      $region41: #{tpu_custom_call.1} parent=5 // pred_check
        %p328 = pneg %p327
      $region42: #{tpu_custom_call.1} parent=5 // pred_check_branch
        %330 = sbr.rel (%p328) target = $region44
      $region43: #{tpu_custom_call.1} parent=5 // pred_region
        // Predicated region
        $region45: #{tpu_custom_call.1} parent=43 // pred_check
          %p331 = pneg %p44
        $region46: #{tpu_custom_call.1} parent=43 // pred_check_branch
          %333 = sbr.rel (%p331) target = $region48
        $region47: #{tpu_custom_call.1} parent=43 // pred_region
          %s334 = sand.u32 %s34, 1
          %s335 = scalar_lea.sflag [#allocation3], %s334
          %s336 = sand.u32 %s34, 1
          %s337 = smul.addr %s336, 32
          %s338 = scalar_lea.vmem [#allocation2], %s337
          %s339 = smul.u32 8, %s24
          %s341 = ssub.s32 512, 512
          %342 = vsyncadd %s335, %s341
          %s343 = smul.addr %s339, 64
          %s344 = scalar_lea.hbm %s0, %s343
          %s345 = sshll.u32 %s338, 4
          %s346 = int_to_ptr.vmem [resolvable:$true] %s345
          %351 = dma.hbm_to_vmem [thread:$0]  %s344, 512, %s346, %s335, 64, 64, 4
        $region48: #{tpu_custom_call.1} parent=43 // pred_fallthru
          _
      $region44: #{tpu_custom_call.1} parent=5 // pred_fallthru
        _
      %p352 = scmp.le.s32.totalorder 1, %s24
      %p353 = scmp.lt.s32.totalorder %s24, 3
      %p354 = pnand %p352, %p353
      %p355 = pneg %p354
      // Predicated region
      $region49: #{tpu_custom_call.1} parent=5 // pred_check
        _
      $region50: #{tpu_custom_call.1} parent=5 // pred_check_branch
        %357 = sbr.rel (%p354) target = $region52
      $region51: #{tpu_custom_call.1} parent=5 // pred_region
        %s358 = ssub.s32 %s24, 1
        %s359 = sand.u32 %s37, 1
        %s360 = scalar_lea.sflag [#allocation3], %s359
        %s361 = sand.u32 %s37, 1
        %s362 = smul.addr %s361, 32
        %s363 = scalar_lea.vmem [#allocation2], %s362
        // Predicated region
        $region53: #{tpu_custom_call.1} parent=51 // pred_check
          %p364 = pneg %p50
        $region54: #{tpu_custom_call.1} parent=51 // pred_check_branch
          %366 = sbr.rel (%p364) target = $region56
        $region55: #{tpu_custom_call.1} parent=51 // pred_region
          %367 = dma.done %s360, 512
        $region56: #{tpu_custom_call.1} parent=51 // pred_fallthru
          _
        // Predicated region
        $region57: #{tpu_custom_call.1} parent=51 // pred_check
          %p368 = pneg %p71
        $region58: #{tpu_custom_call.1} parent=51 // pred_check_branch
          %370 = sbr.rel (%p368) target = $region60
        $region59: #{tpu_custom_call.1} parent=51 // pred_region
          %371 = dma.done [#allocation6], 128
        $region60: #{tpu_custom_call.1} parent=51 // pred_fallthru
          _
        // Predicated region
        $region61: #{tpu_custom_call.1} parent=51 // pred_check
          %p372 = pneg %p92
        $region62: #{tpu_custom_call.1} parent=51 // pred_check_branch
          %374 = sbr.rel (%p372) target = $region64
        $region63: #{tpu_custom_call.1} parent=51 // pred_region
          %375 = dma.done [#allocation6], 256
        $region64: #{tpu_custom_call.1} parent=51 // pred_fallthru
          _
        // Predicated region
        $region65: #{tpu_custom_call.1} parent=51 // pred_check
          %p376 = pneg %p113
        $region66: #{tpu_custom_call.1} parent=51 // pred_check_branch
          %378 = sbr.rel (%p376) target = $region68
        $region67: #{tpu_custom_call.1} parent=51 // pred_region
          %379 = dma.done [#allocation9], 512
        $region68: #{tpu_custom_call.1} parent=51 // pred_fallthru
          _
        // Predicated region
        $region69: #{tpu_custom_call.1} parent=51 // pred_check
          %p380 = pneg %p134
        $region70: #{tpu_custom_call.1} parent=51 // pred_check_branch
          %382 = sbr.rel (%p380) target = $region72
        $region71: #{tpu_custom_call.1} parent=51 // pred_region
          %383 = dma.done [#allocation9], 256
        $region72: #{tpu_custom_call.1} parent=51 // pred_fallthru
          _
        // Predicated region
        $region73: #{tpu_custom_call.1} parent=51 // pred_check
          %p384 = pneg %p155
        $region74: #{tpu_custom_call.1} parent=51 // pred_check_branch
          %386 = sbr.rel (%p384) target = $region76
        $region75: #{tpu_custom_call.1} parent=51 // pred_region
          %387 = dma.done [#allocation12], 256
        $region76: #{tpu_custom_call.1} parent=51 // pred_fallthru
          _
        // Predicated region
        $region77: #{tpu_custom_call.1} parent=51 // pred_check
          %p388 = pneg %p176
        $region78: #{tpu_custom_call.1} parent=51 // pred_check_branch
          %390 = sbr.rel (%p388) target = $region80
        $region79: #{tpu_custom_call.1} parent=51 // pred_region
          %391 = dma.done [#allocation12], 512
        $region80: #{tpu_custom_call.1} parent=51 // pred_fallthru
          _
        // Predicated region
        $region81: #{tpu_custom_call.1} parent=51 // pred_check
          %p392 = pneg %p197
        $region82: #{tpu_custom_call.1} parent=51 // pred_check_branch
          %394 = sbr.rel (%p392) target = $region84
        $region83: #{tpu_custom_call.1} parent=51 // pred_region
          %395 = dma.done [#allocation15], 256
        $region84: #{tpu_custom_call.1} parent=51 // pred_fallthru
          _
        %s396 = sand.u32 %s37, 1
        %s397 = scalar_lea.sflag [#allocation3], %s396
        %s398 = sand.u32 %s37, 1
        %s399 = smul.addr %s398, 32
        %s400 = scalar_lea.vmem [#allocation2], %s399
        %p401 = pneg %p50
        %p402 = pneg %p47
        %p403 = pneg %p71
        %p404 = pneg %p68
        %p405 = pneg %p92
        %p406 = pneg %p89
        %p407 = pneg %p113
        %p408 = pneg %p110
        %p409 = pneg %p134
        %p410 = pneg %p131
        %p411 = pneg %p155
        %p412 = pneg %p152
        %p413 = pneg %p176
        %p414 = pneg %p173
        %p415 = pneg %p197
        %p416 = pneg %p194
        %p417 = pneg %p223
        %p418 = pneg %p220
        %s419 = sand.u32 %s210, 1
        %s420 = scalar_lea.sflag [#allocation4], %s419
        %s421 = sand.u32 %s210, 1
        %s422 = smul.addr %s421, 8
        %s423 = scalar_lea.vmem [#allocation16], %s422
        %s424 = smul.u32 8, %s29
        %v426 = vld [vmem:[#allocation5] sm:$0xff]
        %v427 = vld [vmem:[#allocation14] sm:$0xff]
        %v428 = vld [vmem:[#allocation14 + $0x8] sm:$0xf]
        %v429 = vld [vmem:[%s363] sm:$0xf]
        %v430 = vld [vmem:[%s363 + $0x4] sm:$0xf]
        %v431 = vld [vmem:[%s363 + $0x8] sm:$0xf]
        %v432 = vld [vmem:[%s363 + $0xc] sm:$0xf]
        %v433 = vld [vmem:[%s363 + $0x10] sm:$0xf]
        %v434 = vld [vmem:[%s363 + $0x14] sm:$0xf]
        %v435 = vld [vmem:[%s363 + $0x18] sm:$0xf]
        %v436 = vld [vmem:[%s363 + $0x1c] sm:$0xf]
        %v437 = vunpack.c.l.bf16 %v429
        %v438 = vunpack.c.l.bf16 %v430
        %v439 = vunpack.c.l.bf16 %v431
        %v440 = vunpack.c.l.bf16 %v432
        %v441 = vunpack.c.l.bf16 %v433
        %v442 = vunpack.c.l.bf16 %v434
        %v443 = vunpack.c.l.bf16 %v435
        %v444 = vunpack.c.l.bf16 %v436
        %446 = vset.pattern.permute.xlu0 0
        %447 = vperm.xlu0 %446, %v426
        %v448 = vpop.permute.xlu0 %447
        %v450 = vmul.f32 %v437, %v448
        %v451 = vmul.f32 %v438, %v448
        %v452 = vmul.f32 %v439, %v448
        %v453 = vmul.f32 %v440, %v448
        %v454 = vmul.f32 %v441, %v448
        %v455 = vmul.f32 %v442, %v448
        %v456 = vmul.f32 %v443, %v448
        %v457 = vmul.f32 %v444, %v448
        %458 = vset.pattern.permute.xlu0 1
        %459 = vperm.xlu0 %458, %v426
        %v460 = vpop.permute.xlu0 %459
        %v462 = vadd.f32 %v450, %v460
        %v463 = vadd.f32 %v451, %v460
        %v464 = vadd.f32 %v452, %v460
        %v465 = vadd.f32 %v453, %v460
        %v466 = vadd.f32 %v454, %v460
        %v467 = vadd.f32 %v455, %v460
        %v468 = vadd.f32 %v456, %v460
        %v469 = vadd.f32 %v457, %v460
        %v470 = vpack.c.bf16 %v463, %v462
        %v471 = vpack.c.bf16 %v465, %v464
        %v472 = vpack.c.bf16 %v467, %v466
        %v473 = vpack.c.bf16 %v469, %v468
        %v474 = vld [vmem:[#allocation8] sm:$0xf]
        %v475 = vld [vmem:[#allocation8 + $0x4] sm:$0xf]
        %v476 = vld [vmem:[#allocation8 + $0x8] sm:$0xf]
        %v477 = vld [vmem:[#allocation8 + $0xc] sm:$0xf]
        %v478 = vlaneseq
        %v479 = vshrl.u32 %v478, 7
        %v480 = vsub.s32 1, %v479
        %v481 = vrot.slane %v427, %v480
        %v486 = vunpack.c.l.b16 %v474
        %v487 = vunpack.c.l.b16 %v475
        %v488 = vunpack.c.l.b16 %v476
        %v489 = vunpack.c.l.b16 %v477
        %v490 = vpack.c.b16 %v487, %v486
        %v491 = vpack.c.b16 %v489, %v488
        %vm494 = vcmask 261120
        %v496 = vsel %vm494, %v470, 0
        %v499 = vsel %vm494, %v471, 0
        %v502 = vsel %vm494, %v472, 0
        %v505 = vsel %vm494, %v473, 0
        %507 = vmatprep.subr.bf16.mxu0 0
        %508 = vmatpush1.bf16.msra.mxu0 %v490
        %509 = vmatprep.subr.bf16.mxu0 0
        %510 = vmatpush1.bf16.msra.mxu0 %v491
        %511 = vmatprep.subr.bf16.mxu0 0
        %512 = vmatpush1.bf16.msra.mxu0 0
        %513 = vmatprep.subr.bf16.mxu0 0
        %514 = vmatpush1.bf16.msra.mxu0 0
        %515 = vmatprep.subr.bf16.mxu0 0
        %516 = vmatpush1.bf16.msra.mxu0 0
        %517 = vmatprep.subr.bf16.mxu0 0
        %518 = vmatpush1.bf16.msra.mxu0 0
        %519 = vmatprep.subr.bf16.mxu0 0
        %520 = vmatpush1.bf16.msra.mxu0 0
        %521 = vmatprep.subr.bf16.mxu0 0
        %522 = vmatpush1.bf16.msra.mxu0 0
        %523 = vmatprep.subr.bf16.mxu0 0
        %524 = vmatpush1.bf16.msra.mxu0 0
        %525 = vmatprep.subr.bf16.mxu0 0
        %526 = vmatpush1.bf16.msra.mxu0 0
        %527 = vmatprep.subr.bf16.mxu0 0
        %528 = vmatpush1.bf16.msra.mxu0 0
        %529 = vmatprep.subr.bf16.mxu0 0
        %530 = vmatpush1.bf16.msra.mxu0 0
        %531 = vmatprep.subr.bf16.mxu0 0
        %532 = vmatpush1.bf16.msra.mxu0 0
        %533 = vmatprep.subr.bf16.mxu0 0
        %534 = vmatpush1.bf16.msra.mxu0 0
        %535 = vmatprep.subr.bf16.mxu0 0
        %536 = vmatpush1.bf16.msra.mxu0 0
        %537 = vmatprep.subr.bf16.mxu0 0
        %538 = vmatpush1.bf16.msra.mxu0 0
        %539 = vmatprep.mubr.bf16.mxu0 0
        %540 = vmatmul.mubr.bf16.gmra.mrb[0].mxu0 %v496
        %v541 = vpop.f32.mrb[0].mxu0
        %v542 = vadd.f32 %v481, %v541
        %v543 = vpop.f32.mrb[0].mxu0
        %v544 = vpop.f32.mrb[0].mxu0
        %v545 = vadd.f32 %v481, %v544
        %v546 = vpop.f32.mrb[0].mxu0
        %547 = vmatprep.mubr.bf16.mxu0 0
        %548 = vmatmul.mubr.bf16.gmra.mrb[0].mxu0 %v499
        %v549 = vpop.f32.mrb[0].mxu0
        %v550 = vadd.f32 %v481, %v549
        %v551 = vpop.f32.mrb[0].mxu0
        %v552 = vpop.f32.mrb[0].mxu0
        %v553 = vadd.f32 %v481, %v552
        %v554 = vpop.f32.mrb[0].mxu0
        %555 = vmatprep.mubr.bf16.mxu0 0
        %556 = vmatmul.mubr.bf16.gmra.mrb[0].mxu0 %v502
        %v557 = vpop.f32.mrb[0].mxu0
        %v558 = vadd.f32 %v481, %v557
        %v559 = vpop.f32.mrb[0].mxu0
        %v560 = vpop.f32.mrb[0].mxu0
        %v561 = vadd.f32 %v481, %v560
        %v562 = vpop.f32.mrb[0].mxu0
        %563 = vmatprep.mubr.bf16.mxu0 0
        %564 = vmatmul.mubr.bf16.gmra.mrb[0].mxu0 %v505
        %v565 = vpop.f32.mrb[0].mxu0
        %v566 = vadd.f32 %v481, %v565
        %v567 = vpop.f32.mrb[0].mxu0
        %v568 = vpop.f32.mrb[0].mxu0
        %v569 = vadd.f32 %v481, %v568
        %v570 = vpop.f32.mrb[0].mxu0
        %571 = vdwg.mxu0
        %s572 = scalar_lea.vmem [#allocation8], 16
        %v573 = vld [vmem:[%s572] sm:$0xf]
        %v574 = vld [vmem:[%s572 + $0x4] sm:$0xf]
        %v575 = vld [vmem:[%s572 + $0x8] sm:$0xf]
        %v576 = vld [vmem:[%s572 + $0xc] sm:$0xf]
        %v577 = vlaneseq
        %v578 = vshrl.u32 %v577, 7
        %v579 = vsub.s32 2, %v578
        %v580 = vrot.slane %v427, %v579
        %v585 = vunpack.c.l.b16 %v573
        %v586 = vunpack.c.l.b16 %v574
        %v587 = vunpack.c.l.b16 %v575
        %v588 = vunpack.c.l.b16 %v576
        %v589 = vpack.c.b16 %v586, %v585
        %v590 = vpack.c.b16 %v588, %v587
        %593 = vmatprep.subr.bf16.mxu0 0
        %594 = vmatpush1.bf16.msra.mxu0 %v589
        %595 = vmatprep.subr.bf16.mxu0 0
        %596 = vmatpush1.bf16.msra.mxu0 %v590
        %597 = vmatprep.subr.bf16.mxu0 0
        %598 = vmatpush1.bf16.msra.mxu0 0
        %599 = vmatprep.subr.bf16.mxu0 0
        %600 = vmatpush1.bf16.msra.mxu0 0
        %601 = vmatprep.subr.bf16.mxu0 0
        %602 = vmatpush1.bf16.msra.mxu0 0
        %603 = vmatprep.subr.bf16.mxu0 0
        %604 = vmatpush1.bf16.msra.mxu0 0
        %605 = vmatprep.subr.bf16.mxu0 0
        %606 = vmatpush1.bf16.msra.mxu0 0
        %607 = vmatprep.subr.bf16.mxu0 0
        %608 = vmatpush1.bf16.msra.mxu0 0
        %609 = vmatprep.subr.bf16.mxu0 0
        %610 = vmatpush1.bf16.msra.mxu0 0
        %611 = vmatprep.subr.bf16.mxu0 0
        %612 = vmatpush1.bf16.msra.mxu0 0
        %613 = vmatprep.subr.bf16.mxu0 0
        %614 = vmatpush1.bf16.msra.mxu0 0
        %615 = vmatprep.subr.bf16.mxu0 0
        %616 = vmatpush1.bf16.msra.mxu0 0
        %617 = vmatprep.subr.bf16.mxu0 0
        %618 = vmatpush1.bf16.msra.mxu0 0
        %619 = vmatprep.subr.bf16.mxu0 0
        %620 = vmatpush1.bf16.msra.mxu0 0
        %621 = vmatprep.subr.bf16.mxu0 0
        %622 = vmatpush1.bf16.msra.mxu0 0
        %623 = vmatprep.subr.bf16.mxu0 0
        %624 = vmatpush1.bf16.msra.mxu0 0
        %625 = vmatprep.mubr.bf16.mxu0 0
        %626 = vmatmul.mubr.bf16.gmra.mrb[0].mxu0 %v496
        %v627 = vpop.f32.mrb[0].mxu0
        %v628 = vadd.f32 %v580, %v627
        %v629 = vpop.f32.mrb[0].mxu0
        %v630 = vpop.f32.mrb[0].mxu0
        %v631 = vadd.f32 %v580, %v630
        %v632 = vpop.f32.mrb[0].mxu0
        %633 = vmatprep.mubr.bf16.mxu0 0
        %634 = vmatmul.mubr.bf16.gmra.mrb[0].mxu0 %v499
        %v635 = vpop.f32.mrb[0].mxu0
        %v636 = vadd.f32 %v580, %v635
        %v637 = vpop.f32.mrb[0].mxu0
        %v638 = vpop.f32.mrb[0].mxu0
        %v639 = vadd.f32 %v580, %v638
        %v640 = vpop.f32.mrb[0].mxu0
        %641 = vmatprep.mubr.bf16.mxu0 0
        %642 = vmatmul.mubr.bf16.gmra.mrb[0].mxu0 %v502
        %v643 = vpop.f32.mrb[0].mxu0
        %v644 = vadd.f32 %v580, %v643
        %v645 = vpop.f32.mrb[0].mxu0
        %v646 = vpop.f32.mrb[0].mxu0
        %v647 = vadd.f32 %v580, %v646
        %v648 = vpop.f32.mrb[0].mxu0
        %649 = vmatprep.mubr.bf16.mxu0 0
        %650 = vmatmul.mubr.bf16.gmra.mrb[0].mxu0 %v505
        %v651 = vpop.f32.mrb[0].mxu0
        %v652 = vadd.f32 %v580, %v651
        %v653 = vpop.f32.mrb[0].mxu0
        %v654 = vpop.f32.mrb[0].mxu0
        %v655 = vadd.f32 %v580, %v654
        %v656 = vpop.f32.mrb[0].mxu0
        %657 = vdwg.mxu0
        %v658 = vpack.c.bf16 %v462, %v462
        %v659 = vpack.c.bf16 %v463, %v463
        %v660 = vpack.c.bf16 %v464, %v464
        %v661 = vpack.c.bf16 %v465, %v465
        %v662 = vpack.c.bf16 %v466, %v466
        %v663 = vpack.c.bf16 %v467, %v467
        %v664 = vpack.c.bf16 %v468, %v468
        %v665 = vpack.c.bf16 %v469, %v469
        %v666 = vld [vmem:[#allocation7] sm:$0xf]
        %v667 = vld [vmem:[#allocation7 + $0x4] sm:$0xf]
        %v668 = vld [vmem:[#allocation7 + $0x8] sm:$0xf]
        %v669 = vld [vmem:[#allocation7 + $0xc] sm:$0xf]
        %v670 = vlaneseq
        %v671 = vshrl.u32 %v670, 7
        %v672 = vsub.s32 0, %v671
        %v673 = vrot.slane %v427, %v672
        %v682 = vunpack.c.l.b16 %v658
        %v683 = vunpack.c.l.b16 %v659
        %v684 = vunpack.c.l.b16 %v660
        %v685 = vunpack.c.l.b16 %v661
        %v686 = vunpack.c.l.b16 %v662
        %v687 = vunpack.c.l.b16 %v663
        %v688 = vunpack.c.l.b16 %v664
        %v689 = vunpack.c.l.b16 %v665
        %v690 = vrot.slane %v683, 7
        %vm691 = vcmask 1041409
        %v692 = vsel %vm691, %v690, %v682
        %v693 = vrot.slane %v684, 6
        %vm694 = vcmask 1042434
        %v695 = vsel %vm694, %v693, %v692
        %v696 = vrot.slane %v685, 5
        %vm697 = vcmask 1043459
        %v698 = vsel %vm697, %v696, %v695
        %v699 = vrot.slane %v686, 4
        %vm700 = vcmask 1044484
        %v701 = vsel %vm700, %v699, %v698
        %v702 = vrot.slane %v687, 3
        %vm703 = vcmask 1045509
        %v704 = vsel %vm703, %v702, %v701
        %v705 = vrot.slane %v688, 2
        %vm706 = vcmask 1046534
        %v707 = vsel %vm706, %v705, %v704
        %v708 = vrot.slane %v689, 1
        %vm709 = vcmask 1047559
        %v710 = vsel %vm709, %v708, %v707
        %v711 = vpack.c.b16 %v710, %v710
        %v716 = vunpack.c.l.b16 %v666
        %v717 = vunpack.c.l.b16 %v667
        %v718 = vunpack.c.l.b16 %v668
        %v719 = vunpack.c.l.b16 %v669
        %v720 = vpack.c.b16 %v717, %v716
        %v721 = vpack.c.b16 %v719, %v718
        %v725 = vsel %vm494, %v711, 0
        %727 = vmatprep.subr.bf16.mxu0 0
        %728 = vmatpush1.bf16.msra.mxu0 %v720
        %729 = vmatprep.subr.bf16.mxu0 0
        %730 = vmatpush1.bf16.msra.mxu0 %v721
        %731 = vmatprep.subr.bf16.mxu0 0
        %732 = vmatpush1.bf16.msra.mxu0 0
        %733 = vmatprep.subr.bf16.mxu0 0
        %734 = vmatpush1.bf16.msra.mxu0 0
        %735 = vmatprep.subr.bf16.mxu0 0
        %736 = vmatpush1.bf16.msra.mxu0 0
        %737 = vmatprep.subr.bf16.mxu0 0
        %738 = vmatpush1.bf16.msra.mxu0 0
        %739 = vmatprep.subr.bf16.mxu0 0
        %740 = vmatpush1.bf16.msra.mxu0 0
        %741 = vmatprep.subr.bf16.mxu0 0
        %742 = vmatpush1.bf16.msra.mxu0 0
        %743 = vmatprep.subr.bf16.mxu0 0
        %744 = vmatpush1.bf16.msra.mxu0 0
        %745 = vmatprep.subr.bf16.mxu0 0
        %746 = vmatpush1.bf16.msra.mxu0 0
        %747 = vmatprep.subr.bf16.mxu0 0
        %748 = vmatpush1.bf16.msra.mxu0 0
        %749 = vmatprep.subr.bf16.mxu0 0
        %750 = vmatpush1.bf16.msra.mxu0 0
        %751 = vmatprep.subr.bf16.mxu0 0
        %752 = vmatpush1.bf16.msra.mxu0 0
        %753 = vmatprep.subr.bf16.mxu0 0
        %754 = vmatpush1.bf16.msra.mxu0 0
        %755 = vmatprep.subr.bf16.mxu0 0
        %756 = vmatpush1.bf16.msra.mxu0 0
        %757 = vmatprep.subr.bf16.mxu0 0
        %758 = vmatpush1.bf16.msra.mxu0 0
        %759 = vmatprep.mubr.bf16.mxu0 0
        %760 = vmatmul.mubr.bf16.gmra.mrb[0].mxu0 %v725
        %v761 = vpop.f32.mrb[0].mxu0
        %v762 = vadd.f32 %v673, %v761
        %v763 = vpop.f32.mrb[0].mxu0
        %v764 = vpop.f32.mrb[0].mxu0
        %v765 = vpop.f32.mrb[0].mxu0
        %766 = vdwg.mxu0
        %v768 = vcombine.high %v762, %v762
        %v770 = vunpack.c.l.s4 1966171168
        %v771 = vunpack.c.0.s8 %v770
        %v772 = vlaneseq
        %v773 = vshrl.u32 %v772, 7
        %v774 = vsub.s32 %v771, %v773
        %v775 = vrot.slane %v762, %v774
        %v777 = vunpack.c.l.s4 1966171168
        %v778 = vunpack.c.0.s8 %v777
        %v779 = vlaneseq
        %v780 = vshrl.u32 %v779, 7
        %v781 = vsub.s32 %v778, %v780
        %v782 = vrot.slane %v768, %v781
        %v783 = vcombine.high %v775, %v775
        %v784 = vcombine.high %v782, %v782
        %v786 = vunpack.c.l.s4 1966171168
        %v787 = vunpack.c.0.s8 %v786
        %v788 = vlaneseq
        %v789 = vshrl.u32 %v788, 7
        %v790 = vsub.s32 %v787, %v789
        %v791 = vrot.slane %v775, %v790
        %v793 = vunpack.c.l.s4 1966171168
        %v794 = vunpack.c.0.s8 %v793
        %v795 = vlaneseq
        %v796 = vshrl.u32 %v795, 7
        %v797 = vsub.s32 %v794, %v796
        %v798 = vrot.slane %v782, %v797
        %v800 = vunpack.c.l.s4 1966171168
        %v801 = vunpack.c.0.s8 %v800
        %v802 = vlaneseq
        %v803 = vshrl.u32 %v802, 7
        %v804 = vsub.s32 %v801, %v803
        %v805 = vrot.slane %v783, %v804
        %v807 = vunpack.c.l.s4 1966171168
        %v808 = vunpack.c.0.s8 %v807
        %v809 = vlaneseq
        %v810 = vshrl.u32 %v809, 7
        %v811 = vsub.s32 %v808, %v810
        %v812 = vrot.slane %v784, %v811
        %v813 = vcombine.high %v791, %v791
        %v814 = vcombine.high %v798, %v798
        %v815 = vcombine.high %v805, %v805
        %v816 = vcombine.high %v812, %v812
        %v825 = vlaneseq
        %v826 = vshrl.u32 %v825, 7
        %v827 = vsub.s32 0, %v826
        %v828 = vrot.slane %v791, %v827
        %v829 = vlaneseq
        %v830 = vshrl.u32 %v829, 7
        %v831 = vsub.s32 0, %v830
        %v832 = vrot.slane %v805, %v831
        %v833 = vlaneseq
        %v834 = vshrl.u32 %v833, 7
        %v835 = vsub.s32 0, %v834
        %v836 = vrot.slane %v813, %v835
        %v837 = vlaneseq
        %v838 = vshrl.u32 %v837, 7
        %v839 = vsub.s32 0, %v838
        %v840 = vrot.slane %v815, %v839
        %v841 = vlaneseq
        %v842 = vshrl.u32 %v841, 7
        %v843 = vsub.s32 0, %v842
        %v844 = vrot.slane %v798, %v843
        %v845 = vlaneseq
        %v846 = vshrl.u32 %v845, 7
        %v847 = vsub.s32 0, %v846
        %v848 = vrot.slane %v812, %v847
        %v849 = vlaneseq
        %v850 = vshrl.u32 %v849, 7
        %v851 = vsub.s32 0, %v850
        %v852 = vrot.slane %v814, %v851
        %v853 = vlaneseq
        %v854 = vshrl.u32 %v853, 7
        %v855 = vsub.s32 0, %v854
        %v856 = vrot.slane %v816, %v855
        %v865 = vmul.f32 %v828, %v542
        %v866 = vmul.f32 %v832, %v545
        %v867 = vmul.f32 %v836, %v550
        %v868 = vmul.f32 %v840, %v553
        %v869 = vmul.f32 %v844, %v558
        %v870 = vmul.f32 %v848, %v561
        %v871 = vmul.f32 %v852, %v566
        %v872 = vmul.f32 %v856, %v569
        %v873 = vsel %vm494, %v865, 0.0
        %874 = vadd.xlane.f32.xlu0 %v873
        %v875 = vpop.xlane.xlu0 %874
        %v876 = vsel %vm494, %v866, 0.0
        %877 = vadd.xlane.f32.xlu0 %v876
        %v878 = vpop.xlane.xlu0 %877
        %v879 = vsel %vm494, %v867, 0.0
        %880 = vadd.xlane.f32.xlu0 %v879
        %v881 = vpop.xlane.xlu0 %880
        %v882 = vsel %vm494, %v868, 0.0
        %883 = vadd.xlane.f32.xlu0 %v882
        %v884 = vpop.xlane.xlu0 %883
        %v885 = vsel %vm494, %v869, 0.0
        %886 = vadd.xlane.f32.xlu0 %v885
        %v887 = vpop.xlane.xlu0 %886
        %v888 = vsel %vm494, %v870, 0.0
        %889 = vadd.xlane.f32.xlu0 %v888
        %v890 = vpop.xlane.xlu0 %889
        %v891 = vsel %vm494, %v871, 0.0
        %892 = vadd.xlane.f32.xlu0 %v891
        %v893 = vpop.xlane.xlu0 %892
        %v894 = vsel %vm494, %v872, 0.0
        %895 = vadd.xlane.f32.xlu0 %v894
        %v896 = vpop.xlane.xlu0 %895
        %v897 = vmul.f32 %v875, 0.17677669
        %v898 = vmul.f32 %v878, 0.17677669
        %v899 = vmul.f32 %v881, 0.17677669
        %v900 = vmul.f32 %v884, 0.17677669
        %v901 = vmul.f32 %v887, 0.17677669
        %v902 = vmul.f32 %v890, 0.17677669
        %v903 = vmul.f32 %v893, 0.17677669
        %v904 = vmul.f32 %v896, 0.17677669
        %v907 = vunpack.c.l.s4 1966171168
        %v908 = vunpack.c.0.s8 %v907
        %v909 = vlaneseq
        %v910 = vshrl.u32 %v909, 7
        %v911 = vsub.s32 %v908, %v910
        %v912 = vrot.slane %v428, %v911
        %v914 = vunpack.c.l.s4 1966171168
        %v915 = vunpack.c.0.s8 %v914
        %v916 = vlaneseq
        %v917 = vshrl.u32 %v916, 7
        %v918 = vsub.s32 %v915, %v917
        %v919 = vrot.slane %v912, %v918
        %v920 = vcombine.high %v919, %v919
        %v922 = vmul.f32 %v791, %v920
        %v923 = vmul.f32 %v805, %v920
        %v924 = vmul.f32 %v813, %v920
        %v925 = vmul.f32 %v815, %v920
        %v926 = vmul.f32 %v798, %v920
        %v927 = vmul.f32 %v812, %v920
        %v928 = vmul.f32 %v814, %v920
        %v929 = vmul.f32 %v816, %v920
        %vm930 = vcmask 253952
        %v931 = vsel %vm930, %v922, 0.0
        %932 = vadd.xlane.f32.xlu0 %v931
        %v933 = vpop.xlane.xlu0 %932
        %v934 = vsel %vm930, %v923, 0.0
        %935 = vadd.xlane.f32.xlu0 %v934
        %v936 = vpop.xlane.xlu0 %935
        %v937 = vsel %vm930, %v924, 0.0
        %938 = vadd.xlane.f32.xlu0 %v937
        %v939 = vpop.xlane.xlu0 %938
        %v940 = vsel %vm930, %v925, 0.0
        %941 = vadd.xlane.f32.xlu0 %v940
        %v942 = vpop.xlane.xlu0 %941
        %v943 = vsel %vm930, %v926, 0.0
        %944 = vadd.xlane.f32.xlu0 %v943
        %v945 = vpop.xlane.xlu0 %944
        %v946 = vsel %vm930, %v927, 0.0
        %947 = vadd.xlane.f32.xlu0 %v946
        %v948 = vpop.xlane.xlu0 %947
        %v949 = vsel %vm930, %v928, 0.0
        %950 = vadd.xlane.f32.xlu0 %v949
        %v951 = vpop.xlane.xlu0 %950
        %v952 = vsel %vm930, %v929, 0.0
        %953 = vadd.xlane.f32.xlu0 %v952
        %v954 = vpop.xlane.xlu0 %953
        %v955 = vmul.f32 %v933, 0.17677669
        %v956 = vmul.f32 %v936, 0.17677669
        %v957 = vmul.f32 %v939, 0.17677669
        %v958 = vmul.f32 %v942, 0.17677669
        %v959 = vmul.f32 %v945, 0.17677669
        %v960 = vmul.f32 %v948, 0.17677669
        %v961 = vmul.f32 %v951, 0.17677669
        %v962 = vmul.f32 %v954, 0.17677669
        %v963 = vrot.slane %v897, 4
        %v964 = vmax.f32 %v897, %v963
        %v965 = vrot.slane %v964, 2
        %v966 = vmax.f32 %v964, %v965
        %v967 = vrot.slane %v966, 1
        %v968 = vmax.f32 %v966, %v967
        %v969 = vrot.slane %v898, 4
        %v970 = vmax.f32 %v898, %v969
        %v971 = vrot.slane %v970, 2
        %v972 = vmax.f32 %v970, %v971
        %v973 = vrot.slane %v972, 1
        %v974 = vmax.f32 %v972, %v973
        %v975 = vrot.slane %v899, 4
        %v976 = vmax.f32 %v899, %v975
        %v977 = vrot.slane %v976, 2
        %v978 = vmax.f32 %v976, %v977
        %v979 = vrot.slane %v978, 1
        %v980 = vmax.f32 %v978, %v979
        %v981 = vrot.slane %v900, 4
        %v982 = vmax.f32 %v900, %v981
        %v983 = vrot.slane %v982, 2
        %v984 = vmax.f32 %v982, %v983
        %v985 = vrot.slane %v984, 1
        %v986 = vmax.f32 %v984, %v985
        %v987 = vrot.slane %v901, 4
        %v988 = vmax.f32 %v901, %v987
        %v989 = vrot.slane %v988, 2
        %v990 = vmax.f32 %v988, %v989
        %v991 = vrot.slane %v990, 1
        %v992 = vmax.f32 %v990, %v991
        %v993 = vrot.slane %v902, 4
        %v994 = vmax.f32 %v902, %v993
        %v995 = vrot.slane %v994, 2
        %v996 = vmax.f32 %v994, %v995
        %v997 = vrot.slane %v996, 1
        %v998 = vmax.f32 %v996, %v997
        %v999 = vrot.slane %v903, 4
        %v1000 = vmax.f32 %v903, %v999
        %v1001 = vrot.slane %v1000, 2
        %v1002 = vmax.f32 %v1000, %v1001
        %v1003 = vrot.slane %v1002, 1
        %v1004 = vmax.f32 %v1002, %v1003
        %v1005 = vrot.slane %v904, 4
        %v1006 = vmax.f32 %v904, %v1005
        %v1007 = vrot.slane %v1006, 2
        %v1008 = vmax.f32 %v1006, %v1007
        %v1009 = vrot.slane %v1008, 1
        %v1010 = vmax.f32 %v1008, %v1009
        %v1011 = vmax.f32 %v968, %v955
        %v1012 = vmax.f32 %v974, %v956
        %v1013 = vmax.f32 %v980, %v957
        %v1014 = vmax.f32 %v986, %v958
        %v1015 = vmax.f32 %v992, %v959
        %v1016 = vmax.f32 %v998, %v960
        %v1017 = vmax.f32 %v1004, %v961
        %v1018 = vmax.f32 %v1010, %v962
        %v1019 = vlaneseq
        %v1020 = vshrl.u32 %v1019, 7
        %v1021 = vsub.s32 0, %v1020
        %v1022 = vrot.slane %v1011, %v1021
        %v1023 = vlaneseq
        %v1024 = vshrl.u32 %v1023, 7
        %v1025 = vsub.s32 0, %v1024
        %v1026 = vrot.slane %v1012, %v1025
        %v1027 = vlaneseq
        %v1028 = vshrl.u32 %v1027, 7
        %v1029 = vsub.s32 0, %v1028
        %v1030 = vrot.slane %v1013, %v1029
        %v1031 = vlaneseq
        %v1032 = vshrl.u32 %v1031, 7
        %v1033 = vsub.s32 0, %v1032
        %v1034 = vrot.slane %v1014, %v1033
        %v1035 = vlaneseq
        %v1036 = vshrl.u32 %v1035, 7
        %v1037 = vsub.s32 0, %v1036
        %v1038 = vrot.slane %v1015, %v1037
        %v1039 = vlaneseq
        %v1040 = vshrl.u32 %v1039, 7
        %v1041 = vsub.s32 0, %v1040
        %v1042 = vrot.slane %v1016, %v1041
        %v1043 = vlaneseq
        %v1044 = vshrl.u32 %v1043, 7
        %v1045 = vsub.s32 0, %v1044
        %v1046 = vrot.slane %v1017, %v1045
        %v1047 = vlaneseq
        %v1048 = vshrl.u32 %v1047, 7
        %v1049 = vsub.s32 0, %v1048
        %v1050 = vrot.slane %v1018, %v1049
        %v1051 = vsub.f32 %v897, %v1022
        %v1052 = vsub.f32 %v898, %v1026
        %v1053 = vsub.f32 %v899, %v1030
        %v1054 = vsub.f32 %v900, %v1034
        %v1055 = vsub.f32 %v901, %v1038
        %v1056 = vsub.f32 %v902, %v1042
        %v1057 = vsub.f32 %v903, %v1046
        %v1058 = vsub.f32 %v904, %v1050
        %v1059 = vmul.f32 %v1051, 1.442695
        %v1060 = vpow.pop %v1059
        %v1061 = vmul.f32 %v1052, 1.442695
        %v1062 = vpow.pop %v1061
        %v1063 = vmul.f32 %v1053, 1.442695
        %v1064 = vpow.pop %v1063
        %v1065 = vmul.f32 %v1054, 1.442695
        %v1066 = vpow.pop %v1065
        %v1067 = vmul.f32 %v1055, 1.442695
        %v1068 = vpow.pop %v1067
        %v1069 = vmul.f32 %v1056, 1.442695
        %v1070 = vpow.pop %v1069
        %v1071 = vmul.f32 %v1057, 1.442695
        %v1072 = vpow.pop %v1071
        %v1073 = vmul.f32 %v1058, 1.442695
        %v1074 = vpow.pop %v1073
        %v1075 = vsub.f32 %v955, %v1011
        %v1076 = vsub.f32 %v956, %v1012
        %v1077 = vsub.f32 %v957, %v1013
        %v1078 = vsub.f32 %v958, %v1014
        %v1079 = vsub.f32 %v959, %v1015
        %v1080 = vsub.f32 %v960, %v1016
        %v1081 = vsub.f32 %v961, %v1017
        %v1082 = vsub.f32 %v962, %v1018
        %v1083 = vmul.f32 %v1075, 1.442695
        %v1084 = vpow.pop %v1083
        %v1085 = vmul.f32 %v1076, 1.442695
        %v1086 = vpow.pop %v1085
        %v1087 = vmul.f32 %v1077, 1.442695
        %v1088 = vpow.pop %v1087
        %v1089 = vmul.f32 %v1078, 1.442695
        %v1090 = vpow.pop %v1089
        %v1091 = vmul.f32 %v1079, 1.442695
        %v1092 = vpow.pop %v1091
        %v1093 = vmul.f32 %v1080, 1.442695
        %v1094 = vpow.pop %v1093
        %v1095 = vmul.f32 %v1081, 1.442695
        %v1096 = vpow.pop %v1095
        %v1097 = vmul.f32 %v1082, 1.442695
        %v1098 = vpow.pop %v1097
        %v1099 = vrot.slane %v1060, 4
        %v1100 = vadd.f32 %v1060, %v1099
        %v1101 = vrot.slane %v1100, 2
        %v1102 = vadd.f32 %v1100, %v1101
        %v1103 = vrot.slane %v1102, 1
        %v1104 = vadd.f32 %v1102, %v1103
        %v1105 = vrot.slane %v1062, 4
        %v1106 = vadd.f32 %v1062, %v1105
        %v1107 = vrot.slane %v1106, 2
        %v1108 = vadd.f32 %v1106, %v1107
        %v1109 = vrot.slane %v1108, 1
        %v1110 = vadd.f32 %v1108, %v1109
        %v1111 = vrot.slane %v1064, 4
        %v1112 = vadd.f32 %v1064, %v1111
        %v1113 = vrot.slane %v1112, 2
        %v1114 = vadd.f32 %v1112, %v1113
        %v1115 = vrot.slane %v1114, 1
        %v1116 = vadd.f32 %v1114, %v1115
        %v1117 = vrot.slane %v1066, 4
        %v1118 = vadd.f32 %v1066, %v1117
        %v1119 = vrot.slane %v1118, 2
        %v1120 = vadd.f32 %v1118, %v1119
        %v1121 = vrot.slane %v1120, 1
        %v1122 = vadd.f32 %v1120, %v1121
        %v1123 = vrot.slane %v1068, 4
        %v1124 = vadd.f32 %v1068, %v1123
        %v1125 = vrot.slane %v1124, 2
        %v1126 = vadd.f32 %v1124, %v1125
        %v1127 = vrot.slane %v1126, 1
        %v1128 = vadd.f32 %v1126, %v1127
        %v1129 = vrot.slane %v1070, 4
        %v1130 = vadd.f32 %v1070, %v1129
        %v1131 = vrot.slane %v1130, 2
        %v1132 = vadd.f32 %v1130, %v1131
        %v1133 = vrot.slane %v1132, 1
        %v1134 = vadd.f32 %v1132, %v1133
        %v1135 = vrot.slane %v1072, 4
        %v1136 = vadd.f32 %v1072, %v1135
        %v1137 = vrot.slane %v1136, 2
        %v1138 = vadd.f32 %v1136, %v1137
        %v1139 = vrot.slane %v1138, 1
        %v1140 = vadd.f32 %v1138, %v1139
        %v1141 = vrot.slane %v1074, 4
        %v1142 = vadd.f32 %v1074, %v1141
        %v1143 = vrot.slane %v1142, 2
        %v1144 = vadd.f32 %v1142, %v1143
        %v1145 = vrot.slane %v1144, 1
        %v1146 = vadd.f32 %v1144, %v1145
        %v1147 = vadd.f32 %v1104, %v1084
        %v1148 = vadd.f32 %v1110, %v1086
        %v1149 = vadd.f32 %v1116, %v1088
        %v1150 = vadd.f32 %v1122, %v1090
        %v1151 = vadd.f32 %v1128, %v1092
        %v1152 = vadd.f32 %v1134, %v1094
        %v1153 = vadd.f32 %v1140, %v1096
        %v1154 = vadd.f32 %v1146, %v1098
        %v1155 = vrcp.pop %v1147
        %v1156 = vrcp.pop %v1148
        %v1157 = vrcp.pop %v1149
        %v1158 = vrcp.pop %v1150
        %v1159 = vrcp.pop %v1151
        %v1160 = vrcp.pop %v1152
        %v1161 = vrcp.pop %v1153
        %v1162 = vrcp.pop %v1154
        %v1163 = vmul.f32 %v1060, %v628
        %v1164 = vmul.f32 %v1062, %v631
        %v1165 = vmul.f32 %v1064, %v636
        %v1166 = vmul.f32 %v1066, %v639
        %v1167 = vmul.f32 %v1068, %v644
        %v1168 = vmul.f32 %v1070, %v647
        %v1169 = vmul.f32 %v1072, %v652
        %v1170 = vmul.f32 %v1074, %v655
        %v1171 = vsel %vm494, %v1163, 0.0
        %v1172 = vrot.slane %v1171, 4
        %v1173 = vadd.f32 %v1171, %v1172
        %v1174 = vrot.slane %v1173, 2
        %v1175 = vadd.f32 %v1173, %v1174
        %v1176 = vrot.slane %v1175, 1
        %v1177 = vadd.f32 %v1175, %v1176
        %v1178 = vsel %vm494, %v1164, 0.0
        %v1179 = vrot.slane %v1178, 4
        %v1180 = vadd.f32 %v1178, %v1179
        %v1181 = vrot.slane %v1180, 2
        %v1182 = vadd.f32 %v1180, %v1181
        %v1183 = vrot.slane %v1182, 1
        %v1184 = vadd.f32 %v1182, %v1183
        %v1185 = vsel %vm494, %v1165, 0.0
        %v1186 = vrot.slane %v1185, 4
        %v1187 = vadd.f32 %v1185, %v1186
        %v1188 = vrot.slane %v1187, 2
        %v1189 = vadd.f32 %v1187, %v1188
        %v1190 = vrot.slane %v1189, 1
        %v1191 = vadd.f32 %v1189, %v1190
        %v1192 = vsel %vm494, %v1166, 0.0
        %v1193 = vrot.slane %v1192, 4
        %v1194 = vadd.f32 %v1192, %v1193
        %v1195 = vrot.slane %v1194, 2
        %v1196 = vadd.f32 %v1194, %v1195
        %v1197 = vrot.slane %v1196, 1
        %v1198 = vadd.f32 %v1196, %v1197
        %v1199 = vsel %vm494, %v1167, 0.0
        %v1200 = vrot.slane %v1199, 4
        %v1201 = vadd.f32 %v1199, %v1200
        %v1202 = vrot.slane %v1201, 2
        %v1203 = vadd.f32 %v1201, %v1202
        %v1204 = vrot.slane %v1203, 1
        %v1205 = vadd.f32 %v1203, %v1204
        %v1206 = vsel %vm494, %v1168, 0.0
        %v1207 = vrot.slane %v1206, 4
        %v1208 = vadd.f32 %v1206, %v1207
        %v1209 = vrot.slane %v1208, 2
        %v1210 = vadd.f32 %v1208, %v1209
        %v1211 = vrot.slane %v1210, 1
        %v1212 = vadd.f32 %v1210, %v1211
        %v1213 = vsel %vm494, %v1169, 0.0
        %v1214 = vrot.slane %v1213, 4
        %v1215 = vadd.f32 %v1213, %v1214
        %v1216 = vrot.slane %v1215, 2
        %v1217 = vadd.f32 %v1215, %v1216
        %v1218 = vrot.slane %v1217, 1
        %v1219 = vadd.f32 %v1217, %v1218
        %v1220 = vsel %vm494, %v1170, 0.0
        %v1221 = vrot.slane %v1220, 4
        %v1222 = vadd.f32 %v1220, %v1221
        %v1223 = vrot.slane %v1222, 2
        %v1224 = vadd.f32 %v1222, %v1223
        %v1225 = vrot.slane %v1224, 1
        %v1226 = vadd.f32 %v1224, %v1225
        %v1227 = vlaneseq
        %v1228 = vshrl.u32 %v1227, 7
        %v1229 = vsub.s32 3, %v1228
        %v1230 = vrot.slane %v428, %v1229
        %v1231 = vmul.f32 %v1084, %v1230
        %v1232 = vmul.f32 %v1086, %v1230
        %v1233 = vmul.f32 %v1088, %v1230
        %v1234 = vmul.f32 %v1090, %v1230
        %v1235 = vmul.f32 %v1092, %v1230
        %v1236 = vmul.f32 %v1094, %v1230
        %v1237 = vmul.f32 %v1096, %v1230
        %v1238 = vmul.f32 %v1098, %v1230
        %v1239 = vadd.f32 %v1177, %v1231
        %v1240 = vadd.f32 %v1184, %v1232
        %v1241 = vadd.f32 %v1191, %v1233
        %v1242 = vadd.f32 %v1198, %v1234
        %v1243 = vadd.f32 %v1205, %v1235
        %v1244 = vadd.f32 %v1212, %v1236
        %v1245 = vadd.f32 %v1219, %v1237
        %v1246 = vadd.f32 %v1226, %v1238
        %v1247 = vmul.f32 %v1239, %v1155
        %v1248 = vmul.f32 %v1240, %v1156
        %v1249 = vmul.f32 %v1241, %v1157
        %v1250 = vmul.f32 %v1242, %v1158
        %v1251 = vmul.f32 %v1243, %v1159
        %v1252 = vmul.f32 %v1244, %v1160
        %v1253 = vmul.f32 %v1245, %v1161
        %v1254 = vmul.f32 %v1246, %v1162
        %v1255 = vpack.c.bf16 %v1247, %v1247
        %v1256 = vpack.c.bf16 %v1248, %v1248
        %v1257 = vpack.c.bf16 %v1249, %v1249
        %v1258 = vpack.c.bf16 %v1250, %v1250
        %v1259 = vpack.c.bf16 %v1251, %v1251
        %v1260 = vpack.c.bf16 %v1252, %v1252
        %v1261 = vpack.c.bf16 %v1253, %v1253
        %v1262 = vpack.c.bf16 %v1254, %v1254
        %v1263 = vld [vmem:[#allocation10] sm:$0xf]
        %v1264 = vld [vmem:[#allocation10 + $0x4] sm:$0xf]
        %v1265 = vld [vmem:[#allocation10 + $0x8] sm:$0xf]
        %v1266 = vld [vmem:[#allocation10 + $0xc] sm:$0xf]
        %v1267 = vlaneseq
        %v1268 = vshrl.u32 %v1267, 7
        %v1269 = vsub.s32 3, %v1268
        %v1270 = vrot.slane %v427, %v1269
        %v1279 = vunpack.c.l.b16 %v1255
        %v1280 = vunpack.c.l.b16 %v1256
        %v1281 = vunpack.c.l.b16 %v1257
        %v1282 = vunpack.c.l.b16 %v1258
        %v1283 = vunpack.c.l.b16 %v1259
        %v1284 = vunpack.c.l.b16 %v1260
        %v1285 = vunpack.c.l.b16 %v1261
        %v1286 = vunpack.c.l.b16 %v1262
        %v1287 = vrot.slane %v1280, 7
        %v1288 = vsel %vm691, %v1287, %v1279
        %v1289 = vrot.slane %v1281, 6
        %v1290 = vsel %vm694, %v1289, %v1288
        %v1291 = vrot.slane %v1282, 5
        %v1292 = vsel %vm697, %v1291, %v1290
        %v1293 = vrot.slane %v1283, 4
        %v1294 = vsel %vm700, %v1293, %v1292
        %v1295 = vrot.slane %v1284, 3
        %v1296 = vsel %vm703, %v1295, %v1294
        %v1297 = vrot.slane %v1285, 2
        %v1298 = vsel %vm706, %v1297, %v1296
        %v1299 = vrot.slane %v1286, 1
        %v1300 = vsel %vm709, %v1299, %v1298
        %v1301 = vpack.c.b16 %v1300, %v1300
        %v1306 = vunpack.c.l.b16 %v1263
        %v1307 = vunpack.c.l.b16 %v1264
        %v1308 = vunpack.c.l.b16 %v1265
        %v1309 = vunpack.c.l.b16 %v1266
        %v1310 = vpack.c.b16 %v1307, %v1306
        %v1311 = vpack.c.b16 %v1309, %v1308
        %v1315 = vsel %vm494, %v1301, 0
        %1317 = vmatprep.subr.bf16.mxu0 0
        %1318 = vmatpush1.bf16.msra.mxu0 %v1310
        %1319 = vmatprep.subr.bf16.mxu0 0
        %1320 = vmatpush1.bf16.msra.mxu0 %v1311
        %1321 = vmatprep.subr.bf16.mxu0 0
        %1322 = vmatpush1.bf16.msra.mxu0 0
        %1323 = vmatprep.subr.bf16.mxu0 0
        %1324 = vmatpush1.bf16.msra.mxu0 0
        %1325 = vmatprep.subr.bf16.mxu0 0
        %1326 = vmatpush1.bf16.msra.mxu0 0
        %1327 = vmatprep.subr.bf16.mxu0 0
        %1328 = vmatpush1.bf16.msra.mxu0 0
        %1329 = vmatprep.subr.bf16.mxu0 0
        %1330 = vmatpush1.bf16.msra.mxu0 0
        %1331 = vmatprep.subr.bf16.mxu0 0
        %1332 = vmatpush1.bf16.msra.mxu0 0
        %1333 = vmatprep.subr.bf16.mxu0 0
        %1334 = vmatpush1.bf16.msra.mxu0 0
        %1335 = vmatprep.subr.bf16.mxu0 0
        %1336 = vmatpush1.bf16.msra.mxu0 0
        %1337 = vmatprep.subr.bf16.mxu0 0
        %1338 = vmatpush1.bf16.msra.mxu0 0
        %1339 = vmatprep.subr.bf16.mxu0 0
        %1340 = vmatpush1.bf16.msra.mxu0 0
        %1341 = vmatprep.subr.bf16.mxu0 0
        %1342 = vmatpush1.bf16.msra.mxu0 0
        %1343 = vmatprep.subr.bf16.mxu0 0
        %1344 = vmatpush1.bf16.msra.mxu0 0
        %1345 = vmatprep.subr.bf16.mxu0 0
        %1346 = vmatpush1.bf16.msra.mxu0 0
        %1347 = vmatprep.subr.bf16.mxu0 0
        %1348 = vmatpush1.bf16.msra.mxu0 0
        %1349 = vmatprep.mubr.bf16.mxu0 0
        %1350 = vmatmul.mubr.bf16.gmra.mrb[0].mxu0 %v1315
        %v1351 = vpop.f32.mrb[0].mxu0
        %v1352 = vadd.f32 %v1270, %v1351
        %v1353 = vpop.f32.mrb[0].mxu0
        %v1354 = vpop.f32.mrb[0].mxu0
        %v1355 = vpop.f32.mrb[0].mxu0
        %1356 = vdwg.mxu0
        %v1358 = vrot.slane %v1352, 1
        %v1359 = vrot.slane %v1352, 2
        %v1360 = vrot.slane %v1352, 3
        %v1361 = vrot.slane %v1352, 4
        %v1362 = vrot.slane %v1352, 5
        %v1363 = vrot.slane %v1352, 6
        %v1364 = vrot.slane %v1352, 7
        %v1373 = vadd.f32 %v462, %v1352
        %v1374 = vadd.f32 %v463, %v1358
        %v1375 = vadd.f32 %v464, %v1359
        %v1376 = vadd.f32 %v465, %v1360
        %v1377 = vadd.f32 %v466, %v1361
        %v1378 = vadd.f32 %v467, %v1362
        %v1379 = vadd.f32 %v468, %v1363
        %v1380 = vadd.f32 %v469, %v1364
        %v1389 = vrot.slane %v1374, 7
        %v1390 = vsel %vm691, %v1389, %v1373
        %v1391 = vrot.slane %v1375, 6
        %v1392 = vsel %vm694, %v1391, %v1390
        %v1393 = vrot.slane %v1376, 5
        %v1394 = vsel %vm697, %v1393, %v1392
        %v1395 = vrot.slane %v1377, 4
        %v1396 = vsel %vm700, %v1395, %v1394
        %v1397 = vrot.slane %v1378, 3
        %v1398 = vsel %vm703, %v1397, %v1396
        %v1399 = vrot.slane %v1379, 2
        %v1400 = vsel %vm706, %v1399, %v1398
        %v1401 = vrot.slane %v1380, 1
        %v1402 = vsel %vm709, %v1401, %v1400
        %v1404 = vsel %vm494, %v1402, 0.0
        %1405 = vadd.xlane.f32.xlu0 %v1404
        %v1406 = vpop.xlane.xlu0 %1405
        %v1407 = vrcp.pop 32.0
        %v1408 = vmul.f32 %v1406, %v1407
        %v1410 = vrot.slane %v1408, 1
        %v1411 = vrot.slane %v1408, 2
        %v1412 = vrot.slane %v1408, 3
        %v1413 = vrot.slane %v1408, 4
        %v1414 = vrot.slane %v1408, 5
        %v1415 = vrot.slane %v1408, 6
        %v1416 = vrot.slane %v1408, 7
        %v1425 = vsub.f32 %v1373, %v1408
        %v1426 = vsub.f32 %v1374, %v1410
        %v1427 = vsub.f32 %v1375, %v1411
        %v1428 = vsub.f32 %v1376, %v1412
        %v1429 = vsub.f32 %v1377, %v1413
        %v1430 = vsub.f32 %v1378, %v1414
        %v1431 = vsub.f32 %v1379, %v1415
        %v1432 = vsub.f32 %v1380, %v1416
        %v1433 = vmul.f32 %v1425, %v1425
        %v1434 = vmul.f32 %v1426, %v1426
        %v1435 = vmul.f32 %v1427, %v1427
        %v1436 = vmul.f32 %v1428, %v1428
        %v1437 = vmul.f32 %v1429, %v1429
        %v1438 = vmul.f32 %v1430, %v1430
        %v1439 = vmul.f32 %v1431, %v1431
        %v1440 = vmul.f32 %v1432, %v1432
        %v1449 = vrot.slane %v1434, 7
        %v1450 = vsel %vm691, %v1449, %v1433
        %v1451 = vrot.slane %v1435, 6
        %v1452 = vsel %vm694, %v1451, %v1450
        %v1453 = vrot.slane %v1436, 5
        %v1454 = vsel %vm697, %v1453, %v1452
        %v1455 = vrot.slane %v1437, 4
        %v1456 = vsel %vm700, %v1455, %v1454
        %v1457 = vrot.slane %v1438, 3
        %v1458 = vsel %vm703, %v1457, %v1456
        %v1459 = vrot.slane %v1439, 2
        %v1460 = vsel %vm706, %v1459, %v1458
        %v1461 = vrot.slane %v1440, 1
        %v1462 = vsel %vm709, %v1461, %v1460
        %v1464 = vsel %vm494, %v1462, 0.0
        %1465 = vadd.xlane.f32.xlu0 %v1464
        %v1466 = vpop.xlane.xlu0 %1465
        %v1467 = vmul.f32 %v1466, %v1407
        %v1468 = vadd.f32 %v1467, 1e-05
        %v1469 = vrsqrt.pop %v1468
        %v1471 = vrot.slane %v1469, 1
        %v1472 = vrot.slane %v1469, 2
        %v1473 = vrot.slane %v1469, 3
        %v1474 = vrot.slane %v1469, 4
        %v1475 = vrot.slane %v1469, 5
        %v1476 = vrot.slane %v1469, 6
        %v1477 = vrot.slane %v1469, 7
        %v1486 = vmul.f32 %v1425, %v1469
        %v1487 = vmul.f32 %v1426, %v1471
        %v1488 = vmul.f32 %v1427, %v1472
        %v1489 = vmul.f32 %v1428, %v1473
        %v1490 = vmul.f32 %v1429, %v1474
        %v1491 = vmul.f32 %v1430, %v1475
        %v1492 = vmul.f32 %v1431, %v1476
        %v1493 = vmul.f32 %v1432, %v1477
        %v1494 = vlaneseq
        %v1495 = vshrl.u32 %v1494, 7
        %v1496 = vsub.s32 4, %v1495
        %v1497 = vrot.slane %v427, %v1496
        %v1498 = vmul.f32 %v1486, %v1497
        %v1499 = vmul.f32 %v1487, %v1497
        %v1500 = vmul.f32 %v1488, %v1497
        %v1501 = vmul.f32 %v1489, %v1497
        %v1502 = vmul.f32 %v1490, %v1497
        %v1503 = vmul.f32 %v1491, %v1497
        %v1504 = vmul.f32 %v1492, %v1497
        %v1505 = vmul.f32 %v1493, %v1497
        %v1506 = vlaneseq
        %v1507 = vshrl.u32 %v1506, 7
        %v1508 = vsub.s32 5, %v1507
        %v1509 = vrot.slane %v427, %v1508
        %v1510 = vadd.f32 %v1498, %v1509
        %v1511 = vadd.f32 %v1499, %v1509
        %v1512 = vadd.f32 %v1500, %v1509
        %v1513 = vadd.f32 %v1501, %v1509
        %v1514 = vadd.f32 %v1502, %v1509
        %v1515 = vadd.f32 %v1503, %v1509
        %v1516 = vadd.f32 %v1504, %v1509
        %v1517 = vadd.f32 %v1505, %v1509
        %v1518 = vpack.c.bf16 %v1510, %v1510
        %v1519 = vpack.c.bf16 %v1511, %v1511
        %v1520 = vpack.c.bf16 %v1512, %v1512
        %v1521 = vpack.c.bf16 %v1513, %v1513
        %v1522 = vpack.c.bf16 %v1514, %v1514
        %v1523 = vpack.c.bf16 %v1515, %v1515
        %v1524 = vpack.c.bf16 %v1516, %v1516
        %v1525 = vpack.c.bf16 %v1517, %v1517
        %v1526 = vld [vmem:[#allocation11] sm:$0xf]
        %v1527 = vld [vmem:[#allocation11 + $0x4] sm:$0xf]
        %v1528 = vld [vmem:[#allocation11 + $0x8] sm:$0xf]
        %v1529 = vld [vmem:[#allocation11 + $0xc] sm:$0xf]
        %v1530 = vlaneseq
        %v1531 = vshrl.u32 %v1530, 7
        %v1532 = vsub.s32 6, %v1531
        %v1533 = vrot.slane %v427, %v1532
        %v1542 = vunpack.c.l.b16 %v1518
        %v1543 = vunpack.c.l.b16 %v1519
        %v1544 = vunpack.c.l.b16 %v1520
        %v1545 = vunpack.c.l.b16 %v1521
        %v1546 = vunpack.c.l.b16 %v1522
        %v1547 = vunpack.c.l.b16 %v1523
        %v1548 = vunpack.c.l.b16 %v1524
        %v1549 = vunpack.c.l.b16 %v1525
        %v1550 = vrot.slane %v1543, 7
        %v1551 = vsel %vm691, %v1550, %v1542
        %v1552 = vrot.slane %v1544, 6
        %v1553 = vsel %vm694, %v1552, %v1551
        %v1554 = vrot.slane %v1545, 5
        %v1555 = vsel %vm697, %v1554, %v1553
        %v1556 = vrot.slane %v1546, 4
        %v1557 = vsel %vm700, %v1556, %v1555
        %v1558 = vrot.slane %v1547, 3
        %v1559 = vsel %vm703, %v1558, %v1557
        %v1560 = vrot.slane %v1548, 2
        %v1561 = vsel %vm706, %v1560, %v1559
        %v1562 = vrot.slane %v1549, 1
        %v1563 = vsel %vm709, %v1562, %v1561
        %v1564 = vpack.c.b16 %v1563, %v1563
        %v1569 = vunpack.c.l.b16 %v1526
        %v1570 = vunpack.c.l.b16 %v1527
        %v1571 = vunpack.c.l.b16 %v1528
        %v1572 = vunpack.c.l.b16 %v1529
        %v1573 = vpack.c.b16 %v1570, %v1569
        %v1574 = vpack.c.b16 %v1572, %v1571
        %v1578 = vsel %vm494, %v1564, 0
        %1580 = vmatprep.subr.bf16.mxu0 0
        %1581 = vmatpush1.bf16.msra.mxu0 %v1573
        %1582 = vmatprep.subr.bf16.mxu0 0
        %1583 = vmatpush1.bf16.msra.mxu0 %v1574
        %1584 = vmatprep.subr.bf16.mxu0 0
        %1585 = vmatpush1.bf16.msra.mxu0 0
        %1586 = vmatprep.subr.bf16.mxu0 0
        %1587 = vmatpush1.bf16.msra.mxu0 0
        %1588 = vmatprep.subr.bf16.mxu0 0
        %1589 = vmatpush1.bf16.msra.mxu0 0
        %1590 = vmatprep.subr.bf16.mxu0 0
        %1591 = vmatpush1.bf16.msra.mxu0 0
        %1592 = vmatprep.subr.bf16.mxu0 0
        %1593 = vmatpush1.bf16.msra.mxu0 0
        %1594 = vmatprep.subr.bf16.mxu0 0
        %1595 = vmatpush1.bf16.msra.mxu0 0
        %1596 = vmatprep.subr.bf16.mxu0 0
        %1597 = vmatpush1.bf16.msra.mxu0 0
        %1598 = vmatprep.subr.bf16.mxu0 0
        %1599 = vmatpush1.bf16.msra.mxu0 0
        %1600 = vmatprep.subr.bf16.mxu0 0
        %1601 = vmatpush1.bf16.msra.mxu0 0
        %1602 = vmatprep.subr.bf16.mxu0 0
        %1603 = vmatpush1.bf16.msra.mxu0 0
        %1604 = vmatprep.subr.bf16.mxu0 0
        %1605 = vmatpush1.bf16.msra.mxu0 0
        %1606 = vmatprep.subr.bf16.mxu0 0
        %1607 = vmatpush1.bf16.msra.mxu0 0
        %1608 = vmatprep.subr.bf16.mxu0 0
        %1609 = vmatpush1.bf16.msra.mxu0 0
        %1610 = vmatprep.subr.bf16.mxu0 0
        %1611 = vmatpush1.bf16.msra.mxu0 0
        %1612 = vmatprep.mubr.bf16.mxu0 0
        %1613 = vmatmul.mubr.bf16.gmra.mrb[0].mxu0 %v1578
        %v1614 = vpop.f32.mrb[0].mxu0
        %v1615 = vadd.f32 %v1533, %v1614
        %v1616 = vpop.f32.mrb[0].mxu0
        %v1617 = vpop.f32.mrb[0].mxu0
        %v1618 = vpop.f32.mrb[0].mxu0
        %1619 = vdwg.mxu0
        %v1620 = vmax.f32 %v1615, 0.0
        %v1621 = vpack.c.bf16 %v1620, %v1620
        %v1622 = vld [vmem:[#allocation13] sm:$0xf]
        %v1623 = vld [vmem:[#allocation13 + $0x4] sm:$0xf]
        %v1624 = vld [vmem:[#allocation13 + $0x8] sm:$0xf]
        %v1625 = vld [vmem:[#allocation13 + $0xc] sm:$0xf]
        %v1626 = vld [vmem:[#allocation13 + $0x10] sm:$0xf]
        %v1627 = vld [vmem:[#allocation13 + $0x14] sm:$0xf]
        %v1628 = vld [vmem:[#allocation13 + $0x18] sm:$0xf]
        %v1629 = vld [vmem:[#allocation13 + $0x1c] sm:$0xf]
        %v1630 = vlaneseq
        %v1631 = vshrl.u32 %v1630, 7
        %v1632 = vsub.s32 7, %v1631
        %v1633 = vrot.slane %v427, %v1632
        %v1642 = vunpack.c.l.b16 %v1622
        %v1643 = vunpack.c.l.b16 %v1623
        %v1644 = vunpack.c.l.b16 %v1624
        %v1645 = vunpack.c.l.b16 %v1625
        %v1646 = vunpack.c.l.b16 %v1626
        %v1647 = vunpack.c.l.b16 %v1627
        %v1648 = vunpack.c.l.b16 %v1628
        %v1649 = vunpack.c.l.b16 %v1629
        %v1650 = vpack.c.b16 %v1643, %v1642
        %v1651 = vpack.c.b16 %v1645, %v1644
        %v1652 = vpack.c.b16 %v1647, %v1646
        %v1653 = vpack.c.b16 %v1649, %v1648
        %vm1658 = vcmask 523264
        %v1660 = vsel %vm1658, %v1621, 0
        %1662 = vmatprep.subr.bf16.mxu0 0
        %1663 = vmatpush1.bf16.msra.mxu0 %v1650
        %1664 = vmatprep.subr.bf16.mxu0 0
        %1665 = vmatpush1.bf16.msra.mxu0 %v1651
        %1666 = vmatprep.subr.bf16.mxu0 0
        %1667 = vmatpush1.bf16.msra.mxu0 %v1652
        %1668 = vmatprep.subr.bf16.mxu0 0
        %1669 = vmatpush1.bf16.msra.mxu0 %v1653
        %1670 = vmatprep.subr.bf16.mxu0 0
        %1671 = vmatpush1.bf16.msra.mxu0 0
        %1672 = vmatprep.subr.bf16.mxu0 0
        %1673 = vmatpush1.bf16.msra.mxu0 0
        %1674 = vmatprep.subr.bf16.mxu0 0
        %1675 = vmatpush1.bf16.msra.mxu0 0
        %1676 = vmatprep.subr.bf16.mxu0 0
        %1677 = vmatpush1.bf16.msra.mxu0 0
        %1678 = vmatprep.subr.bf16.mxu0 0
        %1679 = vmatpush1.bf16.msra.mxu0 0
        %1680 = vmatprep.subr.bf16.mxu0 0
        %1681 = vmatpush1.bf16.msra.mxu0 0
        %1682 = vmatprep.subr.bf16.mxu0 0
        %1683 = vmatpush1.bf16.msra.mxu0 0
        %1684 = vmatprep.subr.bf16.mxu0 0
        %1685 = vmatpush1.bf16.msra.mxu0 0
        %1686 = vmatprep.subr.bf16.mxu0 0
        %1687 = vmatpush1.bf16.msra.mxu0 0
        %1688 = vmatprep.subr.bf16.mxu0 0
        %1689 = vmatpush1.bf16.msra.mxu0 0
        %1690 = vmatprep.subr.bf16.mxu0 0
        %1691 = vmatpush1.bf16.msra.mxu0 0
        %1692 = vmatprep.subr.bf16.mxu0 0
        %1693 = vmatpush1.bf16.msra.mxu0 0
        %1694 = vmatprep.mubr.bf16.mxu0 0
        %1695 = vmatmul.mubr.bf16.gmra.mrb[0].mxu0 %v1660
        %v1696 = vpop.f32.mrb[0].mxu0
        %v1697 = vadd.f32 %v1633, %v1696
        %v1698 = vpop.f32.mrb[0].mxu0
        %v1699 = vpop.f32.mrb[0].mxu0
        %v1700 = vpop.f32.mrb[0].mxu0
        %1701 = vdwg.mxu0
        %v1703 = vrot.slane %v1697, 1
        %v1704 = vrot.slane %v1697, 2
        %v1705 = vrot.slane %v1697, 3
        %v1706 = vrot.slane %v1697, 4
        %v1707 = vrot.slane %v1697, 5
        %v1708 = vrot.slane %v1697, 6
        %v1709 = vrot.slane %v1697, 7
        %v1718 = vadd.f32 %v1510, %v1697
        %v1719 = vadd.f32 %v1511, %v1703
        %v1720 = vadd.f32 %v1512, %v1704
        %v1721 = vadd.f32 %v1513, %v1705
        %v1722 = vadd.f32 %v1514, %v1706
        %v1723 = vadd.f32 %v1515, %v1707
        %v1724 = vadd.f32 %v1516, %v1708
        %v1725 = vadd.f32 %v1517, %v1709
        %v1734 = vrot.slane %v1719, 7
        %v1735 = vsel %vm691, %v1734, %v1718
        %v1736 = vrot.slane %v1720, 6
        %v1737 = vsel %vm694, %v1736, %v1735
        %v1738 = vrot.slane %v1721, 5
        %v1739 = vsel %vm697, %v1738, %v1737
        %v1740 = vrot.slane %v1722, 4
        %v1741 = vsel %vm700, %v1740, %v1739
        %v1742 = vrot.slane %v1723, 3
        %v1743 = vsel %vm703, %v1742, %v1741
        %v1744 = vrot.slane %v1724, 2
        %v1745 = vsel %vm706, %v1744, %v1743
        %v1746 = vrot.slane %v1725, 1
        %v1747 = vsel %vm709, %v1746, %v1745
        %v1749 = vsel %vm494, %v1747, 0.0
        %1750 = vadd.xlane.f32.xlu0 %v1749
        %v1751 = vpop.xlane.xlu0 %1750
        %v1752 = vmul.f32 %v1751, %v1407
        %v1754 = vrot.slane %v1752, 1
        %v1755 = vrot.slane %v1752, 2
        %v1756 = vrot.slane %v1752, 3
        %v1757 = vrot.slane %v1752, 4
        %v1758 = vrot.slane %v1752, 5
        %v1759 = vrot.slane %v1752, 6
        %v1760 = vrot.slane %v1752, 7
        %v1769 = vsub.f32 %v1718, %v1752
        %v1770 = vsub.f32 %v1719, %v1754
        %v1771 = vsub.f32 %v1720, %v1755
        %v1772 = vsub.f32 %v1721, %v1756
        %v1773 = vsub.f32 %v1722, %v1757
        %v1774 = vsub.f32 %v1723, %v1758
        %v1775 = vsub.f32 %v1724, %v1759
        %v1776 = vsub.f32 %v1725, %v1760
        %v1777 = vmul.f32 %v1769, %v1769
        %v1778 = vmul.f32 %v1770, %v1770
        %v1779 = vmul.f32 %v1771, %v1771
        %v1780 = vmul.f32 %v1772, %v1772
        %v1781 = vmul.f32 %v1773, %v1773
        %v1782 = vmul.f32 %v1774, %v1774
        %v1783 = vmul.f32 %v1775, %v1775
        %v1784 = vmul.f32 %v1776, %v1776
        %v1793 = vrot.slane %v1778, 7
        %v1794 = vsel %vm691, %v1793, %v1777
        %v1795 = vrot.slane %v1779, 6
        %v1796 = vsel %vm694, %v1795, %v1794
        %v1797 = vrot.slane %v1780, 5
        %v1798 = vsel %vm697, %v1797, %v1796
        %v1799 = vrot.slane %v1781, 4
        %v1800 = vsel %vm700, %v1799, %v1798
        %v1801 = vrot.slane %v1782, 3
        %v1802 = vsel %vm703, %v1801, %v1800
        %v1803 = vrot.slane %v1783, 2
        %v1804 = vsel %vm706, %v1803, %v1802
        %v1805 = vrot.slane %v1784, 1
        %v1806 = vsel %vm709, %v1805, %v1804
        %v1808 = vsel %vm494, %v1806, 0.0
        %1809 = vadd.xlane.f32.xlu0 %v1808
        %v1810 = vpop.xlane.xlu0 %1809
        %v1811 = vmul.f32 %v1810, %v1407
        %v1812 = vadd.f32 %v1811, 1e-05
        %v1813 = vrsqrt.pop %v1812
        %v1815 = vrot.slane %v1813, 1
        %v1816 = vrot.slane %v1813, 2
        %v1817 = vrot.slane %v1813, 3
        %v1818 = vrot.slane %v1813, 4
        %v1819 = vrot.slane %v1813, 5
        %v1820 = vrot.slane %v1813, 6
        %v1821 = vrot.slane %v1813, 7
        %v1830 = vmul.f32 %v1769, %v1813
        %v1831 = vmul.f32 %v1770, %v1815
        %v1832 = vmul.f32 %v1771, %v1816
        %v1833 = vmul.f32 %v1772, %v1817
        %v1834 = vmul.f32 %v1773, %v1818
        %v1835 = vmul.f32 %v1774, %v1819
        %v1836 = vmul.f32 %v1775, %v1820
        %v1837 = vmul.f32 %v1776, %v1821
        %v1838 = vlaneseq
        %v1839 = vshrl.u32 %v1838, 7
        %v1840 = vsub.s32 0, %v1839
        %v1841 = vrot.slane %v428, %v1840
        %v1842 = vmul.f32 %v1830, %v1841
        %v1843 = vmul.f32 %v1831, %v1841
        %v1844 = vmul.f32 %v1832, %v1841
        %v1845 = vmul.f32 %v1833, %v1841
        %v1846 = vmul.f32 %v1834, %v1841
        %v1847 = vmul.f32 %v1835, %v1841
        %v1848 = vmul.f32 %v1836, %v1841
        %v1849 = vmul.f32 %v1837, %v1841
        %v1850 = vlaneseq
        %v1851 = vshrl.u32 %v1850, 7
        %v1852 = vsub.s32 1, %v1851
        %v1853 = vrot.slane %v428, %v1852
        %v1854 = vadd.f32 %v1842, %v1853
        %v1855 = vadd.f32 %v1843, %v1853
        %v1856 = vadd.f32 %v1844, %v1853
        %v1857 = vadd.f32 %v1845, %v1853
        %v1858 = vadd.f32 %v1846, %v1853
        %v1859 = vadd.f32 %v1847, %v1853
        %v1860 = vadd.f32 %v1848, %v1853
        %v1861 = vadd.f32 %v1849, %v1853
        %v1870 = vrot.slane %v1855, 7
        %v1871 = vsel %vm691, %v1870, %v1854
        %v1872 = vrot.slane %v1856, 6
        %v1873 = vsel %vm694, %v1872, %v1871
        %v1874 = vrot.slane %v1857, 5
        %v1875 = vsel %vm697, %v1874, %v1873
        %v1876 = vrot.slane %v1858, 4
        %v1877 = vsel %vm700, %v1876, %v1875
        %v1878 = vrot.slane %v1859, 3
        %v1879 = vsel %vm703, %v1878, %v1877
        %v1880 = vrot.slane %v1860, 2
        %v1881 = vsel %vm706, %v1880, %v1879
        %v1882 = vrot.slane %v1861, 1
        %v1883 = vsel %vm709, %v1882, %v1881
        %1885 = vst.msk [vmem:[%s423] sm:$0xff] %vm494, %v1883
        %s1886 = sand.u32 %s210, 1
        %s1887 = scalar_lea.sflag [#allocation4], %s1886
        %s1888 = sand.u32 %s210, 1
        %s1889 = smul.addr %s1888, 8
        %s1890 = scalar_lea.vmem [#allocation16], %s1889
        // Predicated region
        $region85: #{tpu_custom_call.1} parent=51 // pred_check
          %p1891 = pneg %p220
        $region86: #{tpu_custom_call.1} parent=51 // pred_check_branch
          %1893 = sbr.rel (%p1891) target = $region88
        $region87: #{tpu_custom_call.1} parent=51 // pred_region
          %s1895 = ssub.s32 128, 128
          %1896 = vsyncadd %s1887, %s1895
          %s1897 = smul.addr %s29, 128
          %s1898 = scalar_lea.hbm %s8, %s1897
          %s1900 = sshll.u32 %s1890, 4
          %s1901 = int_to_ptr.vmem [resolvable:$true] %s1900
          %1903 = dma.vmem_to_hbm [thread:$0]  %s1901, 128, %s1898, %s1887
        $region88: #{tpu_custom_call.1} parent=51 // pred_fallthru
          _
      $region52: #{tpu_custom_call.1} parent=5 // pred_fallthru
        _
      %p1904 = scmp.le.s32.totalorder 2, %s24
      // Predicated region
      $region89: #{tpu_custom_call.1} parent=5 // pred_check
        %p1905 = pneg %p1904
      $region90: #{tpu_custom_call.1} parent=5 // pred_check_branch
        %1907 = sbr.rel (%p1905) target = $region92
      $region91: #{tpu_custom_call.1} parent=5 // pred_region
        %s1908 = ssub.s32 %s24, 2
        // Predicated region
        $region93: #{tpu_custom_call.1} parent=91 // pred_check
          %p1909 = pneg %p226
        $region94: #{tpu_custom_call.1} parent=91 // pred_check_branch
          %1911 = sbr.rel (%p1909) target = $region96
        $region95: #{tpu_custom_call.1} parent=91 // pred_region
          %s1912 = sand.u32 %s211, 1
          %s1913 = scalar_lea.sflag [#allocation4], %s1912
          %s1914 = sand.u32 %s211, 1
          %s1915 = smul.addr %s1914, 8
          %s1916 = scalar_lea.vmem [#allocation16], %s1915
          %1917 = dma.done %s1913, 128
        $region96: #{tpu_custom_call.1} parent=91 // pred_fallthru
          _
      $region92: #{tpu_custom_call.1} parent=5 // pred_fallthru
        _
    $region6: #{tpu_custom_call.1} parent=1 // loop_footer
      %s28 = sadd.s32 1, %s24
    $region7: #{tpu_custom_call.1} parent=1 // loop_footer_branch
      %23 = sbr.rel target = $region3
    $region8: #{tpu_custom_call.1} parent=1 // loop_exit
      _
    %1918 = vsyncpa [#allocation3], 1
    %s1919 = scalar_lea.sflag [#allocation3], 1
    %1920 = vsyncpa %s1919, 1
    %1921 = vsyncpa [#allocation6], 1
    %1922 = vsyncpa [#allocation9], 1
    %1923 = vsyncpa [#allocation12], 1
    %1924 = vsyncpa [#allocation15], 1
    %1925 = vsyncpa [#allocation4], 1
    %s1926 = scalar_lea.sflag [#allocation4], 1
    %1927 = vsyncpa %s1926, 1

</llo_original>
